<compile_context>
chip_gen: v7x
topology: tpu7x:2x2x1
jax: 0.10.0
libtpu: 0.0.40
codegen_flags: <defaults>
</compile_context>

<pallas_src>
import numpy as np
import jax
import jax.numpy as jnp
from jax import lax
from jax.experimental import pallas as pl
from jax.experimental.pallas import tpu as pltpu


def _round_up(x, m):
    return ((x + m - 1) // m) * m


# ----------------------------------------------------------------------------
# LSTM kernel: single invocation, layer loop unrolled in Python, time loop as
# lax.fori_loop.  PyTorch gate order i, f, g, o.  Weights pre-transposed and
# padded:  w_ih (in_pad, 4*Hp) bf16, w_hh (Hp, 4*Hp) bf16, b (1, 4*Hp) f32.
# x is time-major flattened (T*Bp, Ep) bf16; output is (T*Bp, Hp) f32.
# ----------------------------------------------------------------------------
def make_lstm_kernel(num_layers, T, B, H):
    def kernel(x_ref, *refs):
        wrefs = refs[: 3 * num_layers]
        out_ref = refs[3 * num_layers]
        gates_sc = refs[3 * num_layers + 1]   # (T*B, 4H) f32: hoisted input proj
        h_sc = refs[3 * num_layers + 2]       # (B, H) f32
        c_sc = refs[3 * num_layers + 3]       # (B, H) f32

        for l in range(num_layers):
            w_ih = wrefs[3 * l][...]          # (in_pad, 4H) bf16
            w_hh = wrefs[3 * l + 1][...]      # (H, 4H) bf16
            b = wrefs[3 * l + 2][...]         # (1, 4H) f32

            # Layer input: x for layer 0, previous layer's full output otherwise
            # (out_ref is VMEM-resident and fully written by the previous layer).
            if l == 0:
                layer_in = x_ref[...]                         # bf16
            else:
                layer_in = out_ref[...].astype(jnp.bfloat16)  # f32 -> bf16

            # Hoisted input projection: one big MXU matmul (M = T*B).
            gates_sc[...] = (
                jnp.dot(layer_in, w_ih, preferred_element_type=jnp.float32) + b
            )

            h_sc[...] = jnp.zeros_like(h_sc)
            c_sc[...] = jnp.zeros_like(c_sc)

            def step(t, carry):
                r0 = pl.multiple_of(t * B, B)
                gates = gates_sc[pl.ds(r0, B), :] + jnp.dot(
                    h_sc[...].astype(jnp.bfloat16), w_hh,
                    preferred_element_type=jnp.float32,
                )  # (B, 4H) f32, each gate a full 128-lane tile
                i_g = jax.nn.sigmoid(gates[:, 0 * H:1 * H])
                f_g = jax.nn.sigmoid(gates[:, 1 * H:2 * H])
                g_g = jnp.tanh(gates[:, 2 * H:3 * H])
                o_g = jax.nn.sigmoid(gates[:, 3 * H:4 * H])
                c_new = f_g * c_sc[...] + i_g * g_g
                h_new = o_g * jnp.tanh(c_new)
                c_sc[...] = c_new
                h_sc[...] = h_new
                out_ref[pl.ds(r0, B), :] = h_new
                return carry

            lax.fori_loop(0, T, step, 0, unroll=(T <= 16))

    return kernel


def lstm_forward_pallas(x2d, layer_params, T, B, H):
    """x2d: (T*B, E_pad) bf16.  layer_params: list of (w_ih, w_hh, b) padded."""
    TB = x2d.shape[0]
    L = len(layer_params)
    flat_weights = []
    for p in layer_params:
        flat_weights += list(p)
    return pl.pallas_call(
        make_lstm_kernel(L, T, B, H),
        out_shape=jax.ShapeDtypeStruct((TB, H), jnp.float32),
        scratch_shapes=[
            pltpu.VMEM((TB, 4 * H), jnp.float32),  # hoisted input-proj gates
            pltpu.VMEM((B, H), jnp.float32),       # h state
            pltpu.VMEM((B, H), jnp.float32),       # c state
        ],
    )(x2d, *flat_weights)


# ----------------------------------------------------------------------------
# Linear kernel on the packed rows, tiled over (rows, vocab): both axes parallel.
# x (Np, Hp) bf16, w (Hp, Dp) bf16, b (1, Dp) f32 -> out (Np, Dp) f32.
# ----------------------------------------------------------------------------
def linear_kernel(x_ref, w_ref, b_ref, o_ref):
    o_ref[...] = (
        jnp.dot(x_ref[...], w_ref[...], preferred_element_type=jnp.float32)
        + b_ref[...]
    )


def linear_forward_pallas(x, w, b, tm, td):
    Np, Hp = x.shape
    Dp = w.shape[1]
    return pl.pallas_call(
        linear_kernel,
        out_shape=jax.ShapeDtypeStruct((Np, Dp), jnp.float32),
        grid=(Np // tm, Dp // td),
        in_specs=[
            pl.BlockSpec((tm, Hp), lambda i, j: (i, 0)),
            pl.BlockSpec((Hp, td), lambda i, j: (0, j)),
            pl.BlockSpec((1, td), lambda i, j: (0, j)),
        ],
        out_specs=pl.BlockSpec((tm, td), lambda i, j: (i, j)),
        compiler_params=pltpu.CompilerParams(
            dimension_semantics=("parallel", "parallel")
        ),
    )(x, w, b)


# ----------------------------------------------------------------------------
# Decoder: parameters + forward glue
# ----------------------------------------------------------------------------
class DecoderPallas:
    def __init__(self, embed_size, hidden_size, dict_size, num_layers, key):
        self.embed_size = embed_size
        self.hidden_size = hidden_size
        self.dict_size = dict_size
        self.num_layers = num_layers

        self.E_pad = _round_up(embed_size, 128)
        self.H_pad = _round_up(hidden_size, 128)
        self.TD = min(_round_up(dict_size, 128), 512)
        self.D_pad = _round_up(dict_size, self.TD)

        keys = jax.random.split(key, 2 + 4 * num_layers)
        k_iter = iter(keys)

        # nn.Embedding weight, uniform(-0.1, 0.1)
        self.embed_w = jax.random.uniform(
            next(k_iter), (dict_size, embed_size), jnp.float32, -0.1, 0.1
        )

        # nn.Linear: weight uniform(-0.1, 0.1), bias 0 (stored transposed (H, D)).
        self.linear_w = jax.random.uniform(
            next(k_iter), (hidden_size, dict_size), jnp.float32, -0.1, 0.1
        )
        self.linear_b = jnp.zeros((1, dict_size), jnp.float32)
        lw = jnp.zeros((self.H_pad, self.D_pad), jnp.float32)
        lw = lw.at[:hidden_size, :dict_size].set(self.linear_w)
        self.linear_w_pad = lw.astype(jnp.bfloat16)
        self.linear_b_pad = (
            jnp.zeros((1, self.D_pad), jnp.float32).at[:, :dict_size].set(self.linear_b)
        )

        # nn.LSTM default init: uniform(-1/sqrt(H), 1/sqrt(H)), gate order i,f,g,o.
        bound = 1.0 / np.sqrt(hidden_size)
        H, Hp = hidden_size, self.H_pad
        self.lstm_params_master = []   # unpadded f32 (for reference)
        self.lstm_params_pad = []      # padded bf16 weights (+ f32 bias) for kernel
        for l in range(num_layers):
            in_sz = embed_size if l == 0 else hidden_size
            in_pad = self.E_pad if l == 0 else self.H_pad
            w_ih = jax.random.uniform(
                next(k_iter), (in_sz, 4 * H), jnp.float32, -bound, bound
            )
            w_hh = jax.random.uniform(
                next(k_iter), (H, 4 * H), jnp.float32, -bound, bound
            )
            b_ih = jax.random.uniform(
                next(k_iter), (1, 4 * H), jnp.float32, -bound, bound
            )
            b_hh = jax.random.uniform(
                next(k_iter), (1, 4 * H), jnp.float32, -bound, bound
            )
            b = b_ih + b_hh
            self.lstm_params_master.append((w_ih, w_hh, b))

            # Place each gate block at a lane-aligned offset (k*Hp); zero pad.
            # Padded hidden lanes stay exactly 0 through the recurrence.
            w_ih_p = jnp.zeros((in_pad, 4 * Hp), jnp.float32)
            w_hh_p = jnp.zeros((Hp, 4 * Hp), jnp.float32)
            b_p = jnp.zeros((1, 4 * Hp), jnp.float32)
            for g in range(4):
                w_ih_p = w_ih_p.at[:in_sz, g * Hp:g * Hp + H].set(
                    w_ih[:, g * H:(g + 1) * H])
                w_hh_p = w_hh_p.at[:H, g * Hp:g * Hp + H].set(
                    w_hh[:, g * H:(g + 1) * H])
                b_p = b_p.at[:, g * Hp:g * Hp + H].set(b[:, g * H:(g + 1) * H])
            self.lstm_params_pad.append(
                (w_ih_p.astype(jnp.bfloat16), w_hh_p.astype(jnp.bfloat16), b_p)
            )

    @staticmethod
    def _packed_indices(lengths):
        """Row order of PyTorch's PackedSequence.data (time-major, batch order)."""
        lengths = np.asarray(lengths)
        assert np.all(lengths[:-1] >= lengths[1:]), "lengths must be sorted descending"
        t_idx, b_idx = [], []
        for t in range(int(lengths.max())):
            for b in range(len(lengths)):
                if lengths[b] > t:
                    t_idx.append(t)
                    b_idx.append(b)
        return np.array(t_idx, np.int32), np.array(b_idx, np.int32)

    def forward(self, features, captions, lengths):
        """features: (B, E) f32; captions: (B, T) int32; lengths sorted descending,
        each <= T + 1.  Returns (sum(lengths), dict_size) f32."""
        B, T = captions.shape
        lengths = np.asarray(lengths)
        T_eff = int(lengths.max())          # only run valid timesteps
        B_pad = _round_up(B, 8)

        # Embedding lookup directly in time-major order (no XLA transpose),
        # concat image features as timestep 0 (host glue, as in PyTorch).
        emb = jnp.take(self.embed_w, captions.T, axis=0)             # (T, B, E)
        x = jnp.concatenate([features[None, :, :], emb], axis=0)     # (T+1, B, E)
        x = x[:T_eff]                                                 # (T_eff, B, E)
        x = jnp.pad(x, ((0, 0), (0, B_pad - B), (0, self.E_pad - self.embed_size)))
        x2d = x.reshape(T_eff * B_pad, self.E_pad).astype(jnp.bfloat16)

        # LSTM (Pallas): hoisted input projection + sequential recurrence.
        lstm_out = lstm_forward_pallas(
            x2d, self.lstm_params_pad, T_eff, B_pad, self.H_pad
        )                                                             # (T_eff*Bp, Hp) f32

        # pack_padded_sequence row gather (host glue, static lengths).
        t_idx, b_idx = self._packed_indices(lengths)
        flat_idx = jnp.asarray(t_idx * B_pad + b_idx, jnp.int32)
        packed = jnp.take(lstm_out, flat_idx, axis=0)                 # (N, Hp)
        N = int(flat_idx.shape[0])
        TM = min(_round_up(N, 8), 128)
        N_pad = _round_up(N, TM)
        packed = jnp.pad(packed, ((0, N_pad - N), (0, 0))).astype(jnp.bfloat16)

        # Final linear projection (Pallas, tiled over rows x vocab).
        out_pad = linear_forward_pallas(
            packed, self.linear_w_pad, self.linear_b_pad, TM, self.TD
        )
        return out_pad[:N, :self.dict_size]

    # Pure-JAX reference (mirrors the kernel's bf16 matmul operands, f32 accum).
    def forward_ref(self, features, captions, lengths):
        B, T = captions.shape
        H, L = self.hidden_size, self.num_layers
        lengths = np.asarray(lengths)
        T_eff = int(lengths.max())
        bf16 = jnp.bfloat16

        emb = jnp.take(self.embed_w, captions.T, axis=0)
        x = jnp.concatenate([features[None, :, :], emb], axis=0)[:T_eff]
        h = [jnp.zeros((B, H), jnp.float32) for _ in range(L)]
        c = [jnp.zeros((B, H), jnp.float32) for _ in range(L)]
        outs = []
        for t in range(T_eff):
            inp = x[t]
            for l in range(L):
                w_ih, w_hh, b = self.lstm_params_master[l]
                gates = (
                    jnp.dot(inp.astype(bf16), w_ih.astype(bf16),
                            preferred_element_type=jnp.float32)
                    + jnp.dot(h[l].astype(bf16), w_hh.astype(bf16),
                              preferred_element_type=jnp.float32)
                    + b
                )
                i_g = jax.nn.sigmoid(gates[:, 0 * H:1 * H])
                f_g = jax.nn.sigmoid(gates[:, 1 * H:2 * H])
                g_g = jnp.tanh(gates[:, 2 * H:3 * H])
                o_g = jax.nn.sigmoid(gates[:, 3 * H:4 * H])
                c[l] = f_g * c[l] + i_g * g_g
                h[l] = o_g * jnp.tanh(c[l])
                inp = h[l]
            outs.append(inp)
        lstm_out = jnp.stack(outs, axis=0)                 # (T_eff, B, H)
        t_idx, b_idx = self._packed_indices(lengths)
        packed = lstm_out[t_idx, b_idx]                    # (N, H)
        return (
            jnp.dot(packed.astype(bf16), self.linear_w.astype(bf16),
                    preferred_element_type=jnp.float32)
            + self.linear_b
        )


# TODO(synk): hidden/cell final states (h_n, c_n) are not exposed; padded timesteps
# beyond each sequence's length are computed and discarded by the gather, which
# matches the returned packed outputs but not PyTorch's h_n/c_n semantics.

if __name__ == "__main__":
    embed_size, hidden_size, dict_size, num_layers = 32, 32, 50, 2
    B, T = 2, 8

    key = jax.random.PRNGKey(0)
    k_model, k_feat, k_cap = jax.random.split(key, 3)

    decoder = DecoderPallas(embed_size, hidden_size, dict_size, num_layers, k_model)

    features = jax.random.normal(k_feat, (B, embed_size), jnp.float32)
    captions = jax.random.randint(k_cap, (B, T), 0, dict_size, jnp.int32)
    lengths = [9, 6]  # sorted descending, each <= T + 1

    out = jax.block_until_ready(decoder.forward(features, captions, lengths))
    ref = jax.block_until_ready(decoder.forward_ref(features, captions, lengths))

    assert out.shape == (sum(lengths), dict_size), out.shape
    np.testing.assert_allclose(np.asarray(out), np.asarray(ref), rtol=1e-2, atol=1e-2)

    print("KERNEL_OK")
</pallas_src>

<mosaic_0001>
module attributes {stable_mosaic.version = 11 : i64} {
  func.func @kernel(%arg0: memref<72x128xbf16, #tpu.memory_space<vmem>>, %arg1: memref<128x512xbf16, #tpu.memory_space<vmem>>, %arg2: memref<128x512xbf16, #tpu.memory_space<vmem>>, %arg3: memref<1x512xf32, #tpu.memory_space<vmem>>, %arg4: memref<128x512xbf16, #tpu.memory_space<vmem>>, %arg5: memref<128x512xbf16, #tpu.memory_space<vmem>>, %arg6: memref<1x512xf32, #tpu.memory_space<vmem>>, %arg7: memref<72x128xf32, #tpu.memory_space<vmem>>, %arg8: memref<72x512xf32, #tpu.memory_space<vmem>>, %arg9: memref<8x128xf32, #tpu.memory_space<vmem>>, %arg10: memref<8x128xf32, #tpu.memory_space<vmem>>) attributes {dimension_semantics = [], scalar_prefetch = 0 : i64, scratch_operands = 3 : i64, tpu.core_type = #tpu.core_type<tc>} {
    %c0 = arith.constant 0 : index
    %c0_0 = arith.constant 0 : index
    %0 = vector.load %arg1[%c0, %c0_0] : memref<128x512xbf16, #tpu.memory_space<vmem>>, vector<128x512xbf16>
    %c0_1 = arith.constant 0 : index
    %c0_2 = arith.constant 0 : index
    %1 = vector.load %arg2[%c0_1, %c0_2] : memref<128x512xbf16, #tpu.memory_space<vmem>>, vector<128x512xbf16>
    %c0_3 = arith.constant 0 : index
    %c0_4 = arith.constant 0 : index
    %2 = vector.load %arg3[%c0_3, %c0_4] : memref<1x512xf32, #tpu.memory_space<vmem>>, vector<1x512xf32>
    %c0_5 = arith.constant 0 : index
    %c0_6 = arith.constant 0 : index
    %3 = vector.load %arg0[%c0_5, %c0_6] : memref<72x128xbf16, #tpu.memory_space<vmem>>, vector<72x128xbf16>
    %cst = arith.constant dense<0.000000e+00> : vector<72x512xf32>
    %4 = tpu.matmul %3, %0, %cst {dimension_numbers = #tpu.dot_dimension_numbers<[1], [0], [0], [1], [0, 0, 1, 1], [], []>} : vector<72x128xbf16>, vector<128x512xbf16>, vector<72x512xf32> -> vector<72x512xf32>
    %5 = vector.broadcast %2 : vector<1x512xf32> to vector<72x512xf32>
    %6 = arith.addf %4, %5 : vector<72x512xf32>
    %c0_7 = arith.constant 0 : index
    %c0_8 = arith.constant 0 : index
    %7 = vector.load %arg8[%c0_7, %c0_8] : memref<72x512xf32, #tpu.memory_space<vmem>>, vector<72x512xf32>
    tpu.vector_store %arg8[%c0_7, %c0_8], %6 {strides = array<i32>} : memref<72x512xf32, #tpu.memory_space<vmem>>, vector<72x512xf32>,
    %cst_9 = arith.constant 0.000000e+00 : f32
    %8 = vector.broadcast %cst_9 : f32 to vector<8x128xf32>
    %c0_10 = arith.constant 0 : index
    %c0_11 = arith.constant 0 : index
    %9 = vector.load %arg9[%c0_10, %c0_11] : memref<8x128xf32, #tpu.memory_space<vmem>>, vector<8x128xf32>
    tpu.vector_store %arg9[%c0_10, %c0_11], %8 {strides = array<i32>} : memref<8x128xf32, #tpu.memory_space<vmem>>, vector<8x128xf32>,
    %cst_12 = arith.constant 0.000000e+00 : f32
    %10 = vector.broadcast %cst_12 : f32 to vector<8x128xf32>
    %c0_13 = arith.constant 0 : index
    %c0_14 = arith.constant 0 : index
    %11 = vector.load %arg10[%c0_13, %c0_14] : memref<8x128xf32, #tpu.memory_space<vmem>>, vector<8x128xf32>
    tpu.vector_store %arg10[%c0_13, %c0_14], %10 {strides = array<i32>} : memref<8x128xf32, #tpu.memory_space<vmem>>, vector<8x128xf32>,
    %c0_i32 = arith.constant 0 : i32
    %c8_i32 = arith.constant 8 : i32
    %12 = arith.muli %c0_i32, %c8_i32 : i32
    %13 = tpu.assume_multiple %12, 8 : i32
    %14 = arith.index_cast %13 : i32 to index
    %c0_15 = arith.constant 0 : index
    %15 = vector.load %arg8[%14, %c0_15] : memref<72x512xf32, #tpu.memory_space<vmem>>, vector<8x512xf32>
    %c0_16 = arith.constant 0 : index
    %c0_17 = arith.constant 0 : index
    %16 = vector.load %arg9[%c0_16, %c0_17] : memref<8x128xf32, #tpu.memory_space<vmem>>, vector<8x128xf32>
    %17 = arith.truncf %16 : vector<8x128xf32> to vector<8x128xbf16>
    %cst_18 = arith.constant dense<0.000000e+00> : vector<8x512xf32>
    %18 = tpu.matmul %17, %1, %cst_18 {dimension_numbers = #tpu.dot_dimension_numbers<[1], [0], [0], [1], [0, 0, 1, 1], [], []>} : vector<8x128xbf16>, vector<128x512xbf16>, vector<8x512xf32> -> vector<8x512xf32>
    %19 = arith.addf %15, %18 : vector<8x512xf32>
    %20 = vector.extract_strided_slice %19 {offsets = [0, 0], sizes = [8, 128], strides = [1, 1]} : vector<8x512xf32> to vector<8x128xf32>
    %21 = arith.negf %20 : vector<8x128xf32>
    %22 = math.exp %21 : vector<8x128xf32>
    %cst_19 = arith.constant 1.000000e+00 : f32
    %23 = vector.broadcast %cst_19 : f32 to vector<8x128xf32>
    %24 = arith.addf %23, %22 : vector<8x128xf32>
    %25 = arith.divf %23, %24 : vector<8x128xf32>
    %26 = vector.extract_strided_slice %19 {offsets = [0, 128], sizes = [8, 128], strides = [1, 1]} : vector<8x512xf32> to vector<8x128xf32>
    %27 = arith.negf %26 : vector<8x128xf32>
    %28 = math.exp %27 : vector<8x128xf32>
    %cst_20 = arith.constant 1.000000e+00 : f32
    %29 = vector.broadcast %cst_20 : f32 to vector<8x128xf32>
    %30 = arith.addf %29, %28 : vector<8x128xf32>
    %31 = arith.divf %29, %30 : vector<8x128xf32>
    %32 = vector.extract_strided_slice %19 {offsets = [0, 256], sizes = [8, 128], strides = [1, 1]} : vector<8x512xf32> to vector<8x128xf32>
    %33 = math.tanh %32 : vector<8x128xf32>
    %34 = vector.extract_strided_slice %19 {offsets = [0, 384], sizes = [8, 128], strides = [1, 1]} : vector<8x512xf32> to vector<8x128xf32>
    %35 = arith.negf %34 : vector<8x128xf32>
    %36 = math.exp %35 : vector<8x128xf32>
    %cst_21 = arith.constant 1.000000e+00 : f32
    %37 = vector.broadcast %cst_21 : f32 to vector<8x128xf32>
    %38 = arith.addf %37, %36 : vector<8x128xf32>
    %39 = arith.divf %37, %38 : vector<8x128xf32>
    %c0_22 = arith.constant 0 : index
    %c0_23 = arith.constant 0 : index
    %40 = vector.load %arg10[%c0_22, %c0_23] : memref<8x128xf32, #tpu.memory_space<vmem>>, vector<8x128xf32>
    %41 = arith.mulf %31, %40 : vector<8x128xf32>
    %42 = arith.mulf %25, %33 : vector<8x128xf32>
    %43 = arith.addf %41, %42 : vector<8x128xf32>
    %44 = math.tanh %43 : vector<8x128xf32>
    %45 = arith.mulf %39, %44 : vector<8x128xf32>
    %c0_24 = arith.constant 0 : index
    %c0_25 = arith.constant 0 : index
    %46 = vector.load %arg10[%c0_24, %c0_25] : memref<8x128xf32, #tpu.memory_space<vmem>>, vector<8x128xf32>
    tpu.vector_store %arg10[%c0_24, %c0_25], %43 {strides = array<i32>} : memref<8x128xf32, #tpu.memory_space<vmem>>, vector<8x128xf32>,
    %c0_26 = arith.constant 0 : index
    %c0_27 = arith.constant 0 : index
    %47 = vector.load %arg9[%c0_26, %c0_27] : memref<8x128xf32, #tpu.memory_space<vmem>>, vector<8x128xf32>
    tpu.vector_store %arg9[%c0_26, %c0_27], %45 {strides = array<i32>} : memref<8x128xf32, #tpu.memory_space<vmem>>, vector<8x128xf32>,
    %48 = arith.index_cast %13 : i32 to index
    %c0_28 = arith.constant 0 : index
    %49 = vector.load %arg7[%48, %c0_28] : memref<72x128xf32, #tpu.memory_space<vmem>>, vector<8x128xf32>
    tpu.vector_store %arg7[%48, %c0_28], %45 {strides = array<i32>} : memref<72x128xf32, #tpu.memory_space<vmem>>, vector<8x128xf32>,
    %c1_i32 = arith.constant 1 : i32
    %c8_i32_29 = arith.constant 8 : i32
    %50 = arith.muli %c1_i32, %c8_i32_29 : i32
    %51 = tpu.assume_multiple %50, 8 : i32
    %52 = arith.index_cast %51 : i32 to index
    %c0_30 = arith.constant 0 : index
    %53 = vector.load %arg8[%52, %c0_30] : memref<72x512xf32, #tpu.memory_space<vmem>>, vector<8x512xf32>
    %c0_31 = arith.constant 0 : index
    %c0_32 = arith.constant 0 : index
    %54 = vector.load %arg9[%c0_31, %c0_32] : memref<8x128xf32, #tpu.memory_space<vmem>>, vector<8x128xf32>
    %55 = arith.truncf %54 : vector<8x128xf32> to vector<8x128xbf16>
    %cst_33 = arith.constant dense<0.000000e+00> : vector<8x512xf32>
    %56 = tpu.matmul %55, %1, %cst_33 {dimension_numbers = #tpu.dot_dimension_numbers<[1], [0], [0], [1], [0, 0, 1, 1], [], []>} : vector<8x128xbf16>, vector<128x512xbf16>, vector<8x512xf32> -> vector<8x512xf32>
    %57 = arith.addf %53, %56 : vector<8x512xf32>
    %58 = vector.extract_strided_slice %57 {offsets = [0, 0], sizes = [8, 128], strides = [1, 1]} : vector<8x512xf32> to vector<8x128xf32>
    %59 = arith.negf %58 : vector<8x128xf32>
    %60 = math.exp %59 : vector<8x128xf32>
    %cst_34 = arith.constant 1.000000e+00 : f32
    %61 = vector.broadcast %cst_34 : f32 to vector<8x128xf32>
    %62 = arith.addf %61, %60 : vector<8x128xf32>
    %63 = arith.divf %61, %62 : vector<8x128xf32>
    %64 = vector.extract_strided_slice %57 {offsets = [0, 128], sizes = [8, 128], strides = [1, 1]} : vector<8x512xf32> to vector<8x128xf32>
    %65 = arith.negf %64 : vector<8x128xf32>
    %66 = math.exp %65 : vector<8x128xf32>
    %cst_35 = arith.constant 1.000000e+00 : f32
    %67 = vector.broadcast %cst_35 : f32 to vector<8x128xf32>
    %68 = arith.addf %67, %66 : vector<8x128xf32>
    %69 = arith.divf %67, %68 : vector<8x128xf32>
    %70 = vector.extract_strided_slice %57 {offsets = [0, 256], sizes = [8, 128], strides = [1, 1]} : vector<8x512xf32> to vector<8x128xf32>
    %71 = math.tanh %70 : vector<8x128xf32>
    %72 = vector.extract_strided_slice %57 {offsets = [0, 384], sizes = [8, 128], strides = [1, 1]} : vector<8x512xf32> to vector<8x128xf32>
    %73 = arith.negf %72 : vector<8x128xf32>
    %74 = math.exp %73 : vector<8x128xf32>
    %cst_36 = arith.constant 1.000000e+00 : f32
    %75 = vector.broadcast %cst_36 : f32 to vector<8x128xf32>
    %76 = arith.addf %75, %74 : vector<8x128xf32>
    %77 = arith.divf %75, %76 : vector<8x128xf32>
    %c0_37 = arith.constant 0 : index
    %c0_38 = arith.constant 0 : index
    %78 = vector.load %arg10[%c0_37, %c0_38] : memref<8x128xf32, #tpu.memory_space<vmem>>, vector<8x128xf32>
    %79 = arith.mulf %69, %78 : vector<8x128xf32>
    %80 = arith.mulf %63, %71 : vector<8x128xf32>
    %81 = arith.addf %79, %80 : vector<8x128xf32>
    %82 = math.tanh %81 : vector<8x128xf32>
    %83 = arith.mulf %77, %82 : vector<8x128xf32>
    %c0_39 = arith.constant 0 : index
    %c0_40 = arith.constant 0 : index
    %84 = vector.load %arg10[%c0_39, %c0_40] : memref<8x128xf32, #tpu.memory_space<vmem>>, vector<8x128xf32>
    tpu.vector_store %arg10[%c0_39, %c0_40], %81 {strides = array<i32>} : memref<8x128xf32, #tpu.memory_space<vmem>>, vector<8x128xf32>,
    %c0_41 = arith.constant 0 : index
    %c0_42 = arith.constant 0 : index
    %85 = vector.load %arg9[%c0_41, %c0_42] : memref<8x128xf32, #tpu.memory_space<vmem>>, vector<8x128xf32>
    tpu.vector_store %arg9[%c0_41, %c0_42], %83 {strides = array<i32>} : memref<8x128xf32, #tpu.memory_space<vmem>>, vector<8x128xf32>,
    %86 = arith.index_cast %51 : i32 to index
    %c0_43 = arith.constant 0 : index
    %87 = vector.load %arg7[%86, %c0_43] : memref<72x128xf32, #tpu.memory_space<vmem>>, vector<8x128xf32>
    tpu.vector_store %arg7[%86, %c0_43], %83 {strides = array<i32>} : memref<72x128xf32, #tpu.memory_space<vmem>>, vector<8x128xf32>,
    %c2_i32 = arith.constant 2 : i32
    %c8_i32_44 = arith.constant 8 : i32
    %88 = arith.muli %c2_i32, %c8_i32_44 : i32
    %89 = tpu.assume_multiple %88, 8 : i32
    %90 = arith.index_cast %89 : i32 to index
    %c0_45 = arith.constant 0 : index
    %91 = vector.load %arg8[%90, %c0_45] : memref<72x512xf32, #tpu.memory_space<vmem>>, vector<8x512xf32>
    %c0_46 = arith.constant 0 : index
    %c0_47 = arith.constant 0 : index
    %92 = vector.load %arg9[%c0_46, %c0_47] : memref<8x128xf32, #tpu.memory_space<vmem>>, vector<8x128xf32>
    %93 = arith.truncf %92 : vector<8x128xf32> to vector<8x128xbf16>
    %cst_48 = arith.constant dense<0.000000e+00> : vector<8x512xf32>
    %94 = tpu.matmul %93, %1, %cst_48 {dimension_numbers = #tpu.dot_dimension_numbers<[1], [0], [0], [1], [0, 0, 1, 1], [], []>} : vector<8x128xbf16>, vector<128x512xbf16>, vector<8x512xf32> -> vector<8x512xf32>
    %95 = arith.addf %91, %94 : vector<8x512xf32>
    %96 = vector.extract_strided_slice %95 {offsets = [0, 0], sizes = [8, 128], strides = [1, 1]} : vector<8x512xf32> to vector<8x128xf32>
    %97 = arith.negf %96 : vector<8x128xf32>
    %98 = math.exp %97 : vector<8x128xf32>
    %cst_49 = arith.constant 1.000000e+00 : f32
    %99 = vector.broadcast %cst_49 : f32 to vector<8x128xf32>
    %100 = arith.addf %99, %98 : vector<8x128xf32>
    %101 = arith.divf %99, %100 : vector<8x128xf32>
    %102 = vector.extract_strided_slice %95 {offsets = [0, 128], sizes = [8, 128], strides = [1, 1]} : vector<8x512xf32> to vector<8x128xf32>
    %103 = arith.negf %102 : vector<8x128xf32>
    %104 = math.exp %103 : vector<8x128xf32>
    %cst_50 = arith.constant 1.000000e+00 : f32
    %105 = vector.broadcast %cst_50 : f32 to vector<8x128xf32>
    %106 = arith.addf %105, %104 : vector<8x128xf32>
    %107 = arith.divf %105, %106 : vector<8x128xf32>
    %108 = vector.extract_strided_slice %95 {offsets = [0, 256], sizes = [8, 128], strides = [1, 1]} : vector<8x512xf32> to vector<8x128xf32>
    %109 = math.tanh %108 : vector<8x128xf32>
    %110 = vector.extract_strided_slice %95 {offsets = [0, 384], sizes = [8, 128], strides = [1, 1]} : vector<8x512xf32> to vector<8x128xf32>
    %111 = arith.negf %110 : vector<8x128xf32>
    %112 = math.exp %111 : vector<8x128xf32>
    %cst_51 = arith.constant 1.000000e+00 : f32
    %113 = vector.broadcast %cst_51 : f32 to vector<8x128xf32>
    %114 = arith.addf %113, %112 : vector<8x128xf32>
    %115 = arith.divf %113, %114 : vector<8x128xf32>
    %c0_52 = arith.constant 0 : index
    %c0_53 = arith.constant 0 : index
    %116 = vector.load %arg10[%c0_52, %c0_53] : memref<8x128xf32, #tpu.memory_space<vmem>>, vector<8x128xf32>
    %117 = arith.mulf %107, %116 : vector<8x128xf32>
    %118 = arith.mulf %101, %109 : vector<8x128xf32>
    %119 = arith.addf %117, %118 : vector<8x128xf32>
    %120 = math.tanh %119 : vector<8x128xf32>
    %121 = arith.mulf %115, %120 : vector<8x128xf32>
    %c0_54 = arith.constant 0 : index
    %c0_55 = arith.constant 0 : index
    %122 = vector.load %arg10[%c0_54, %c0_55] : memref<8x128xf32, #tpu.memory_space<vmem>>, vector<8x128xf32>
    tpu.vector_store %arg10[%c0_54, %c0_55], %119 {strides = array<i32>} : memref<8x128xf32, #tpu.memory_space<vmem>>, vector<8x128xf32>,
    %c0_56 = arith.constant 0 : index
    %c0_57 = arith.constant 0 : index
    %123 = vector.load %arg9[%c0_56, %c0_57] : memref<8x128xf32, #tpu.memory_space<vmem>>, vector<8x128xf32>
    tpu.vector_store %arg9[%c0_56, %c0_57], %121 {strides = array<i32>} : memref<8x128xf32, #tpu.memory_space<vmem>>, vector<8x128xf32>,
    %124 = arith.index_cast %89 : i32 to index
    %c0_58 = arith.constant 0 : index
    %125 = vector.load %arg7[%124, %c0_58] : memref<72x128xf32, #tpu.memory_space<vmem>>, vector<8x128xf32>
    tpu.vector_store %arg7[%124, %c0_58], %121 {strides = array<i32>} : memref<72x128xf32, #tpu.memory_space<vmem>>, vector<8x128xf32>,
    %c3_i32 = arith.constant 3 : i32
    %c8_i32_59 = arith.constant 8 : i32
    %126 = arith.muli %c3_i32, %c8_i32_59 : i32
    %127 = tpu.assume_multiple %126, 8 : i32
    %128 = arith.index_cast %127 : i32 to index
    %c0_60 = arith.constant 0 : index
    %129 = vector.load %arg8[%128, %c0_60] : memref<72x512xf32, #tpu.memory_space<vmem>>, vector<8x512xf32>
    %c0_61 = arith.constant 0 : index
    %c0_62 = arith.constant 0 : index
    %130 = vector.load %arg9[%c0_61, %c0_62] : memref<8x128xf32, #tpu.memory_space<vmem>>, vector<8x128xf32>
    %131 = arith.truncf %130 : vector<8x128xf32> to vector<8x128xbf16>
    %cst_63 = arith.constant dense<0.000000e+00> : vector<8x512xf32>
    %132 = tpu.matmul %131, %1, %cst_63 {dimension_numbers = #tpu.dot_dimension_numbers<[1], [0], [0], [1], [0, 0, 1, 1], [], []>} : vector<8x128xbf16>, vector<128x512xbf16>, vector<8x512xf32> -> vector<8x512xf32>
    %133 = arith.addf %129, %132 : vector<8x512xf32>
    %134 = vector.extract_strided_slice %133 {offsets = [0, 0], sizes = [8, 128], strides = [1, 1]} : vector<8x512xf32> to vector<8x128xf32>
    %135 = arith.negf %134 : vector<8x128xf32>
    %136 = math.exp %135 : vector<8x128xf32>
    %cst_64 = arith.constant 1.000000e+00 : f32
    %137 = vector.broadcast %cst_64 : f32 to vector<8x128xf32>
    %138 = arith.addf %137, %136 : vector<8x128xf32>
    %139 = arith.divf %137, %138 : vector<8x128xf32>
    %140 = vector.extract_strided_slice %133 {offsets = [0, 128], sizes = [8, 128], strides = [1, 1]} : vector<8x512xf32> to vector<8x128xf32>
    %141 = arith.negf %140 : vector<8x128xf32>
    %142 = math.exp %141 : vector<8x128xf32>
    %cst_65 = arith.constant 1.000000e+00 : f32
    %143 = vector.broadcast %cst_65 : f32 to vector<8x128xf32>
    %144 = arith.addf %143, %142 : vector<8x128xf32>
    %145 = arith.divf %143, %144 : vector<8x128xf32>
    %146 = vector.extract_strided_slice %133 {offsets = [0, 256], sizes = [8, 128], strides = [1, 1]} : vector<8x512xf32> to vector<8x128xf32>
    %147 = math.tanh %146 : vector<8x128xf32>
    %148 = vector.extract_strided_slice %133 {offsets = [0, 384], sizes = [8, 128], strides = [1, 1]} : vector<8x512xf32> to vector<8x128xf32>
    %149 = arith.negf %148 : vector<8x128xf32>
    %150 = math.exp %149 : vector<8x128xf32>
    %cst_66 = arith.constant 1.000000e+00 : f32
    %151 = vector.broadcast %cst_66 : f32 to vector<8x128xf32>
    %152 = arith.addf %151, %150 : vector<8x128xf32>
    %153 = arith.divf %151, %152 : vector<8x128xf32>
    %c0_67 = arith.constant 0 : index
    %c0_68 = arith.constant 0 : index
    %154 = vector.load %arg10[%c0_67, %c0_68] : memref<8x128xf32, #tpu.memory_space<vmem>>, vector<8x128xf32>
    %155 = arith.mulf %145, %154 : vector<8x128xf32>
    %156 = arith.mulf %139, %147 : vector<8x128xf32>
    %157 = arith.addf %155, %156 : vector<8x128xf32>
    %158 = math.tanh %157 : vector<8x128xf32>
    %159 = arith.mulf %153, %158 : vector<8x128xf32>
    %c0_69 = arith.constant 0 : index
    %c0_70 = arith.constant 0 : index
    %160 = vector.load %arg10[%c0_69, %c0_70] : memref<8x128xf32, #tpu.memory_space<vmem>>, vector<8x128xf32>
    tpu.vector_store %arg10[%c0_69, %c0_70], %157 {strides = array<i32>} : memref<8x128xf32, #tpu.memory_space<vmem>>, vector<8x128xf32>,
    %c0_71 = arith.constant 0 : index
    %c0_72 = arith.constant 0 : index
    %161 = vector.load %arg9[%c0_71, %c0_72] : memref<8x128xf32, #tpu.memory_space<vmem>>, vector<8x128xf32>
    tpu.vector_store %arg9[%c0_71, %c0_72], %159 {strides = array<i32>} : memref<8x128xf32, #tpu.memory_space<vmem>>, vector<8x128xf32>,
    %162 = arith.index_cast %127 : i32 to index
    %c0_73 = arith.constant 0 : index
    %163 = vector.load %arg7[%162, %c0_73] : memref<72x128xf32, #tpu.memory_space<vmem>>, vector<8x128xf32>
    tpu.vector_store %arg7[%162, %c0_73], %159 {strides = array<i32>} : memref<72x128xf32, #tpu.memory_space<vmem>>, vector<8x128xf32>,
    %c4_i32 = arith.constant 4 : i32
    %c8_i32_74 = arith.constant 8 : i32
    %164 = arith.muli %c4_i32, %c8_i32_74 : i32
    %165 = tpu.assume_multiple %164, 8 : i32
    %166 = arith.index_cast %165 : i32 to index
    %c0_75 = arith.constant 0 : index
    %167 = vector.load %arg8[%166, %c0_75] : memref<72x512xf32, #tpu.memory_space<vmem>>, vector<8x512xf32>
    %c0_76 = arith.constant 0 : index
    %c0_77 = arith.constant 0 : index
    %168 = vector.load %arg9[%c0_76, %c0_77] : memref<8x128xf32, #tpu.memory_space<vmem>>, vector<8x128xf32>
    %169 = arith.truncf %168 : vector<8x128xf32> to vector<8x128xbf16>
    %cst_78 = arith.constant dense<0.000000e+00> : vector<8x512xf32>
    %170 = tpu.matmul %169, %1, %cst_78 {dimension_numbers = #tpu.dot_dimension_numbers<[1], [0], [0], [1], [0, 0, 1, 1], [], []>} : vector<8x128xbf16>, vector<128x512xbf16>, vector<8x512xf32> -> vector<8x512xf32>
    %171 = arith.addf %167, %170 : vector<8x512xf32>
    %172 = vector.extract_strided_slice %171 {offsets = [0, 0], sizes = [8, 128], strides = [1, 1]} : vector<8x512xf32> to vector<8x128xf32>
    %173 = arith.negf %172 : vector<8x128xf32>
    %174 = math.exp %173 : vector<8x128xf32>
    %cst_79 = arith.constant 1.000000e+00 : f32
    %175 = vector.broadcast %cst_79 : f32 to vector<8x128xf32>
    %176 = arith.addf %175, %174 : vector<8x128xf32>
    %177 = arith.divf %175, %176 : vector<8x128xf32>
    %178 = vector.extract_strided_slice %171 {offsets = [0, 128], sizes = [8, 128], strides = [1, 1]} : vector<8x512xf32> to vector<8x128xf32>
    %179 = arith.negf %178 : vector<8x128xf32>
    %180 = math.exp %179 : vector<8x128xf32>
    %cst_80 = arith.constant 1.000000e+00 : f32
    %181 = vector.broadcast %cst_80 : f32 to vector<8x128xf32>
    %182 = arith.addf %181, %180 : vector<8x128xf32>
    %183 = arith.divf %181, %182 : vector<8x128xf32>
    %184 = vector.extract_strided_slice %171 {offsets = [0, 256], sizes = [8, 128], strides = [1, 1]} : vector<8x512xf32> to vector<8x128xf32>
    %185 = math.tanh %184 : vector<8x128xf32>
    %186 = vector.extract_strided_slice %171 {offsets = [0, 384], sizes = [8, 128], strides = [1, 1]} : vector<8x512xf32> to vector<8x128xf32>
    %187 = arith.negf %186 : vector<8x128xf32>
    %188 = math.exp %187 : vector<8x128xf32>
    %cst_81 = arith.constant 1.000000e+00 : f32
    %189 = vector.broadcast %cst_81 : f32 to vector<8x128xf32>
    %190 = arith.addf %189, %188 : vector<8x128xf32>
    %191 = arith.divf %189, %190 : vector<8x128xf32>
    %c0_82 = arith.constant 0 : index
    %c0_83 = arith.constant 0 : index
    %192 = vector.load %arg10[%c0_82, %c0_83] : memref<8x128xf32, #tpu.memory_space<vmem>>, vector<8x128xf32>
    %193 = arith.mulf %183, %192 : vector<8x128xf32>
    %194 = arith.mulf %177, %185 : vector<8x128xf32>
    %195 = arith.addf %193, %194 : vector<8x128xf32>
    %196 = math.tanh %195 : vector<8x128xf32>
    %197 = arith.mulf %191, %196 : vector<8x128xf32>
    %c0_84 = arith.constant 0 : index
    %c0_85 = arith.constant 0 : index
    %198 = vector.load %arg10[%c0_84, %c0_85] : memref<8x128xf32, #tpu.memory_space<vmem>>, vector<8x128xf32>
    tpu.vector_store %arg10[%c0_84, %c0_85], %195 {strides = array<i32>} : memref<8x128xf32, #tpu.memory_space<vmem>>, vector<8x128xf32>,
    %c0_86 = arith.constant 0 : index
    %c0_87 = arith.constant 0 : index
    %199 = vector.load %arg9[%c0_86, %c0_87] : memref<8x128xf32, #tpu.memory_space<vmem>>, vector<8x128xf32>
    tpu.vector_store %arg9[%c0_86, %c0_87], %197 {strides = array<i32>} : memref<8x128xf32, #tpu.memory_space<vmem>>, vector<8x128xf32>,
    %200 = arith.index_cast %165 : i32 to index
    %c0_88 = arith.constant 0 : index
    %201 = vector.load %arg7[%200, %c0_88] : memref<72x128xf32, #tpu.memory_space<vmem>>, vector<8x128xf32>
    tpu.vector_store %arg7[%200, %c0_88], %197 {strides = array<i32>} : memref<72x128xf32, #tpu.memory_space<vmem>>, vector<8x128xf32>,
    %c5_i32 = arith.constant 5 : i32
    %c8_i32_89 = arith.constant 8 : i32
    %202 = arith.muli %c5_i32, %c8_i32_89 : i32
    %203 = tpu.assume_multiple %202, 8 : i32
    %204 = arith.index_cast %203 : i32 to index
    %c0_90 = arith.constant 0 : index
    %205 = vector.load %arg8[%204, %c0_90] : memref<72x512xf32, #tpu.memory_space<vmem>>, vector<8x512xf32>
    %c0_91 = arith.constant 0 : index
    %c0_92 = arith.constant 0 : index
    %206 = vector.load %arg9[%c0_91, %c0_92] : memref<8x128xf32, #tpu.memory_space<vmem>>, vector<8x128xf32>
    %207 = arith.truncf %206 : vector<8x128xf32> to vector<8x128xbf16>
    %cst_93 = arith.constant dense<0.000000e+00> : vector<8x512xf32>
    %208 = tpu.matmul %207, %1, %cst_93 {dimension_numbers = #tpu.dot_dimension_numbers<[1], [0], [0], [1], [0, 0, 1, 1], [], []>} : vector<8x128xbf16>, vector<128x512xbf16>, vector<8x512xf32> -> vector<8x512xf32>
    %209 = arith.addf %205, %208 : vector<8x512xf32>
    %210 = vector.extract_strided_slice %209 {offsets = [0, 0], sizes = [8, 128], strides = [1, 1]} : vector<8x512xf32> to vector<8x128xf32>
    %211 = arith.negf %210 : vector<8x128xf32>
    %212 = math.exp %211 : vector<8x128xf32>
    %cst_94 = arith.constant 1.000000e+00 : f32
    %213 = vector.broadcast %cst_94 : f32 to vector<8x128xf32>
    %214 = arith.addf %213, %212 : vector<8x128xf32>
    %215 = arith.divf %213, %214 : vector<8x128xf32>
    %216 = vector.extract_strided_slice %209 {offsets = [0, 128], sizes = [8, 128], strides = [1, 1]} : vector<8x512xf32> to vector<8x128xf32>
    %217 = arith.negf %216 : vector<8x128xf32>
    %218 = math.exp %217 : vector<8x128xf32>
    %cst_95 = arith.constant 1.000000e+00 : f32
    %219 = vector.broadcast %cst_95 : f32 to vector<8x128xf32>
    %220 = arith.addf %219, %218 : vector<8x128xf32>
    %221 = arith.divf %219, %220 : vector<8x128xf32>
    %222 = vector.extract_strided_slice %209 {offsets = [0, 256], sizes = [8, 128], strides = [1, 1]} : vector<8x512xf32> to vector<8x128xf32>
    %223 = math.tanh %222 : vector<8x128xf32>
    %224 = vector.extract_strided_slice %209 {offsets = [0, 384], sizes = [8, 128], strides = [1, 1]} : vector<8x512xf32> to vector<8x128xf32>
    %225 = arith.negf %224 : vector<8x128xf32>
    %226 = math.exp %225 : vector<8x128xf32>
    %cst_96 = arith.constant 1.000000e+00 : f32
    %227 = vector.broadcast %cst_96 : f32 to vector<8x128xf32>
    %228 = arith.addf %227, %226 : vector<8x128xf32>
    %229 = arith.divf %227, %228 : vector<8x128xf32>
    %c0_97 = arith.constant 0 : index
    %c0_98 = arith.constant 0 : index
    %230 = vector.load %arg10[%c0_97, %c0_98] : memref<8x128xf32, #tpu.memory_space<vmem>>, vector<8x128xf32>
    %231 = arith.mulf %221, %230 : vector<8x128xf32>
    %232 = arith.mulf %215, %223 : vector<8x128xf32>
    %233 = arith.addf %231, %232 : vector<8x128xf32>
    %234 = math.tanh %233 : vector<8x128xf32>
    %235 = arith.mulf %229, %234 : vector<8x128xf32>
    %c0_99 = arith.constant 0 : index
    %c0_100 = arith.constant 0 : index
    %236 = vector.load %arg10[%c0_99, %c0_100] : memref<8x128xf32, #tpu.memory_space<vmem>>, vector<8x128xf32>
    tpu.vector_store %arg10[%c0_99, %c0_100], %233 {strides = array<i32>} : memref<8x128xf32, #tpu.memory_space<vmem>>, vector<8x128xf32>,
    %c0_101 = arith.constant 0 : index
    %c0_102 = arith.constant 0 : index
    %237 = vector.load %arg9[%c0_101, %c0_102] : memref<8x128xf32, #tpu.memory_space<vmem>>, vector<8x128xf32>
    tpu.vector_store %arg9[%c0_101, %c0_102], %235 {strides = array<i32>} : memref<8x128xf32, #tpu.memory_space<vmem>>, vector<8x128xf32>,
    %238 = arith.index_cast %203 : i32 to index
    %c0_103 = arith.constant 0 : index
    %239 = vector.load %arg7[%238, %c0_103] : memref<72x128xf32, #tpu.memory_space<vmem>>, vector<8x128xf32>
    tpu.vector_store %arg7[%238, %c0_103], %235 {strides = array<i32>} : memref<72x128xf32, #tpu.memory_space<vmem>>, vector<8x128xf32>,
    %c6_i32 = arith.constant 6 : i32
    %c8_i32_104 = arith.constant 8 : i32
    %240 = arith.muli %c6_i32, %c8_i32_104 : i32
    %241 = tpu.assume_multiple %240, 8 : i32
    %242 = arith.index_cast %241 : i32 to index
    %c0_105 = arith.constant 0 : index
    %243 = vector.load %arg8[%242, %c0_105] : memref<72x512xf32, #tpu.memory_space<vmem>>, vector<8x512xf32>
    %c0_106 = arith.constant 0 : index
    %c0_107 = arith.constant 0 : index
    %244 = vector.load %arg9[%c0_106, %c0_107] : memref<8x128xf32, #tpu.memory_space<vmem>>, vector<8x128xf32>
    %245 = arith.truncf %244 : vector<8x128xf32> to vector<8x128xbf16>
    %cst_108 = arith.constant dense<0.000000e+00> : vector<8x512xf32>
    %246 = tpu.matmul %245, %1, %cst_108 {dimension_numbers = #tpu.dot_dimension_numbers<[1], [0], [0], [1], [0, 0, 1, 1], [], []>} : vector<8x128xbf16>, vector<128x512xbf16>, vector<8x512xf32> -> vector<8x512xf32>
    %247 = arith.addf %243, %246 : vector<8x512xf32>
    %248 = vector.extract_strided_slice %247 {offsets = [0, 0], sizes = [8, 128], strides = [1, 1]} : vector<8x512xf32> to vector<8x128xf32>
    %249 = arith.negf %248 : vector<8x128xf32>
    %250 = math.exp %249 : vector<8x128xf32>
    %cst_109 = arith.constant 1.000000e+00 : f32
    %251 = vector.broadcast %cst_109 : f32 to vector<8x128xf32>
    %252 = arith.addf %251, %250 : vector<8x128xf32>
    %253 = arith.divf %251, %252 : vector<8x128xf32>
    %254 = vector.extract_strided_slice %247 {offsets = [0, 128], sizes = [8, 128], strides = [1, 1]} : vector<8x512xf32> to vector<8x128xf32>
    %255 = arith.negf %254 : vector<8x128xf32>
    %256 = math.exp %255 : vector<8x128xf32>
    %cst_110 = arith.constant 1.000000e+00 : f32
    %257 = vector.broadcast %cst_110 : f32 to vector<8x128xf32>
    %258 = arith.addf %257, %256 : vector<8x128xf32>
    %259 = arith.divf %257, %258 : vector<8x128xf32>
    %260 = vector.extract_strided_slice %247 {offsets = [0, 256], sizes = [8, 128], strides = [1, 1]} : vector<8x512xf32> to vector<8x128xf32>
    %261 = math.tanh %260 : vector<8x128xf32>
    %262 = vector.extract_strided_slice %247 {offsets = [0, 384], sizes = [8, 128], strides = [1, 1]} : vector<8x512xf32> to vector<8x128xf32>
    %263 = arith.negf %262 : vector<8x128xf32>
    %264 = math.exp %263 : vector<8x128xf32>
    %cst_111 = arith.constant 1.000000e+00 : f32
    %265 = vector.broadcast %cst_111 : f32 to vector<8x128xf32>
    %266 = arith.addf %265, %264 : vector<8x128xf32>
    %267 = arith.divf %265, %266 : vector<8x128xf32>
    %c0_112 = arith.constant 0 : index
    %c0_113 = arith.constant 0 : index
    %268 = vector.load %arg10[%c0_112, %c0_113] : memref<8x128xf32, #tpu.memory_space<vmem>>, vector<8x128xf32>
    %269 = arith.mulf %259, %268 : vector<8x128xf32>
    %270 = arith.mulf %253, %261 : vector<8x128xf32>
    %271 = arith.addf %269, %270 : vector<8x128xf32>
    %272 = math.tanh %271 : vector<8x128xf32>
    %273 = arith.mulf %267, %272 : vector<8x128xf32>
    %c0_114 = arith.constant 0 : index
    %c0_115 = arith.constant 0 : index
    %274 = vector.load %arg10[%c0_114, %c0_115] : memref<8x128xf32, #tpu.memory_space<vmem>>, vector<8x128xf32>
    tpu.vector_store %arg10[%c0_114, %c0_115], %271 {strides = array<i32>} : memref<8x128xf32, #tpu.memory_space<vmem>>, vector<8x128xf32>,
    %c0_116 = arith.constant 0 : index
    %c0_117 = arith.constant 0 : index
    %275 = vector.load %arg9[%c0_116, %c0_117] : memref<8x128xf32, #tpu.memory_space<vmem>>, vector<8x128xf32>
    tpu.vector_store %arg9[%c0_116, %c0_117], %273 {strides = array<i32>} : memref<8x128xf32, #tpu.memory_space<vmem>>, vector<8x128xf32>,
    %276 = arith.index_cast %241 : i32 to index
    %c0_118 = arith.constant 0 : index
    %277 = vector.load %arg7[%276, %c0_118] : memref<72x128xf32, #tpu.memory_space<vmem>>, vector<8x128xf32>
    tpu.vector_store %arg7[%276, %c0_118], %273 {strides = array<i32>} : memref<72x128xf32, #tpu.memory_space<vmem>>, vector<8x128xf32>,
    %c7_i32 = arith.constant 7 : i32
    %c8_i32_119 = arith.constant 8 : i32
    %278 = arith.muli %c7_i32, %c8_i32_119 : i32
    %279 = tpu.assume_multiple %278, 8 : i32
    %280 = arith.index_cast %279 : i32 to index
    %c0_120 = arith.constant 0 : index
    %281 = vector.load %arg8[%280, %c0_120] : memref<72x512xf32, #tpu.memory_space<vmem>>, vector<8x512xf32>
    %c0_121 = arith.constant 0 : index
    %c0_122 = arith.constant 0 : index
    %282 = vector.load %arg9[%c0_121, %c0_122] : memref<8x128xf32, #tpu.memory_space<vmem>>, vector<8x128xf32>
    %283 = arith.truncf %282 : vector<8x128xf32> to vector<8x128xbf16>
    %cst_123 = arith.constant dense<0.000000e+00> : vector<8x512xf32>
    %284 = tpu.matmul %283, %1, %cst_123 {dimension_numbers = #tpu.dot_dimension_numbers<[1], [0], [0], [1], [0, 0, 1, 1], [], []>} : vector<8x128xbf16>, vector<128x512xbf16>, vector<8x512xf32> -> vector<8x512xf32>
    %285 = arith.addf %281, %284 : vector<8x512xf32>
    %286 = vector.extract_strided_slice %285 {offsets = [0, 0], sizes = [8, 128], strides = [1, 1]} : vector<8x512xf32> to vector<8x128xf32>
    %287 = arith.negf %286 : vector<8x128xf32>
    %288 = math.exp %287 : vector<8x128xf32>
    %cst_124 = arith.constant 1.000000e+00 : f32
    %289 = vector.broadcast %cst_124 : f32 to vector<8x128xf32>
    %290 = arith.addf %289, %288 : vector<8x128xf32>
    %291 = arith.divf %289, %290 : vector<8x128xf32>
    %292 = vector.extract_strided_slice %285 {offsets = [0, 128], sizes = [8, 128], strides = [1, 1]} : vector<8x512xf32> to vector<8x128xf32>
    %293 = arith.negf %292 : vector<8x128xf32>
    %294 = math.exp %293 : vector<8x128xf32>
    %cst_125 = arith.constant 1.000000e+00 : f32
    %295 = vector.broadcast %cst_125 : f32 to vector<8x128xf32>
    %296 = arith.addf %295, %294 : vector<8x128xf32>
    %297 = arith.divf %295, %296 : vector<8x128xf32>
    %298 = vector.extract_strided_slice %285 {offsets = [0, 256], sizes = [8, 128], strides = [1, 1]} : vector<8x512xf32> to vector<8x128xf32>
    %299 = math.tanh %298 : vector<8x128xf32>
    %300 = vector.extract_strided_slice %285 {offsets = [0, 384], sizes = [8, 128], strides = [1, 1]} : vector<8x512xf32> to vector<8x128xf32>
    %301 = arith.negf %300 : vector<8x128xf32>
    %302 = math.exp %301 : vector<8x128xf32>
    %cst_126 = arith.constant 1.000000e+00 : f32
    %303 = vector.broadcast %cst_126 : f32 to vector<8x128xf32>
    %304 = arith.addf %303, %302 : vector<8x128xf32>
    %305 = arith.divf %303, %304 : vector<8x128xf32>
    %c0_127 = arith.constant 0 : index
    %c0_128 = arith.constant 0 : index
    %306 = vector.load %arg10[%c0_127, %c0_128] : memref<8x128xf32, #tpu.memory_space<vmem>>, vector<8x128xf32>
    %307 = arith.mulf %297, %306 : vector<8x128xf32>
    %308 = arith.mulf %291, %299 : vector<8x128xf32>
    %309 = arith.addf %307, %308 : vector<8x128xf32>
    %310 = math.tanh %309 : vector<8x128xf32>
    %311 = arith.mulf %305, %310 : vector<8x128xf32>
    %c0_129 = arith.constant 0 : index
    %c0_130 = arith.constant 0 : index
    %312 = vector.load %arg10[%c0_129, %c0_130] : memref<8x128xf32, #tpu.memory_space<vmem>>, vector<8x128xf32>
    tpu.vector_store %arg10[%c0_129, %c0_130], %309 {strides = array<i32>} : memref<8x128xf32, #tpu.memory_space<vmem>>, vector<8x128xf32>,
    %c0_131 = arith.constant 0 : index
    %c0_132 = arith.constant 0 : index
    %313 = vector.load %arg9[%c0_131, %c0_132] : memref<8x128xf32, #tpu.memory_space<vmem>>, vector<8x128xf32>
    tpu.vector_store %arg9[%c0_131, %c0_132], %311 {strides = array<i32>} : memref<8x128xf32, #tpu.memory_space<vmem>>, vector<8x128xf32>,
    %314 = arith.index_cast %279 : i32 to index
    %c0_133 = arith.constant 0 : index
    %315 = vector.load %arg7[%314, %c0_133] : memref<72x128xf32, #tpu.memory_space<vmem>>, vector<8x128xf32>
    tpu.vector_store %arg7[%314, %c0_133], %311 {strides = array<i32>} : memref<72x128xf32, #tpu.memory_space<vmem>>, vector<8x128xf32>,
    %c8_i32_134 = arith.constant 8 : i32
    %c8_i32_135 = arith.constant 8 : i32
    %316 = arith.muli %c8_i32_134, %c8_i32_135 : i32
    %317 = tpu.assume_multiple %316, 8 : i32
    %318 = arith.index_cast %317 : i32 to index
    %c0_136 = arith.constant 0 : index
    %319 = vector.load %arg8[%318, %c0_136] : memref<72x512xf32, #tpu.memory_space<vmem>>, vector<8x512xf32>
    %c0_137 = arith.constant 0 : index
    %c0_138 = arith.constant 0 : index
    %320 = vector.load %arg9[%c0_137, %c0_138] : memref<8x128xf32, #tpu.memory_space<vmem>>, vector<8x128xf32>
    %321 = arith.truncf %320 : vector<8x128xf32> to vector<8x128xbf16>
    %cst_139 = arith.constant dense<0.000000e+00> : vector<8x512xf32>
    %322 = tpu.matmul %321, %1, %cst_139 {dimension_numbers = #tpu.dot_dimension_numbers<[1], [0], [0], [1], [0, 0, 1, 1], [], []>} : vector<8x128xbf16>, vector<128x512xbf16>, vector<8x512xf32> -> vector<8x512xf32>
    %323 = arith.addf %319, %322 : vector<8x512xf32>
    %324 = vector.extract_strided_slice %323 {offsets = [0, 0], sizes = [8, 128], strides = [1, 1]} : vector<8x512xf32> to vector<8x128xf32>
    %325 = arith.negf %324 : vector<8x128xf32>
    %326 = math.exp %325 : vector<8x128xf32>
    %cst_140 = arith.constant 1.000000e+00 : f32
    %327 = vector.broadcast %cst_140 : f32 to vector<8x128xf32>
    %328 = arith.addf %327, %326 : vector<8x128xf32>
    %329 = arith.divf %327, %328 : vector<8x128xf32>
    %330 = vector.extract_strided_slice %323 {offsets = [0, 128], sizes = [8, 128], strides = [1, 1]} : vector<8x512xf32> to vector<8x128xf32>
    %331 = arith.negf %330 : vector<8x128xf32>
    %332 = math.exp %331 : vector<8x128xf32>
    %cst_141 = arith.constant 1.000000e+00 : f32
    %333 = vector.broadcast %cst_141 : f32 to vector<8x128xf32>
    %334 = arith.addf %333, %332 : vector<8x128xf32>
    %335 = arith.divf %333, %334 : vector<8x128xf32>
    %336 = vector.extract_strided_slice %323 {offsets = [0, 256], sizes = [8, 128], strides = [1, 1]} : vector<8x512xf32> to vector<8x128xf32>
    %337 = math.tanh %336 : vector<8x128xf32>
    %338 = vector.extract_strided_slice %323 {offsets = [0, 384], sizes = [8, 128], strides = [1, 1]} : vector<8x512xf32> to vector<8x128xf32>
    %339 = arith.negf %338 : vector<8x128xf32>
    %340 = math.exp %339 : vector<8x128xf32>
    %cst_142 = arith.constant 1.000000e+00 : f32
    %341 = vector.broadcast %cst_142 : f32 to vector<8x128xf32>
    %342 = arith.addf %341, %340 : vector<8x128xf32>
    %343 = arith.divf %341, %342 : vector<8x128xf32>
    %c0_143 = arith.constant 0 : index
    %c0_144 = arith.constant 0 : index
    %344 = vector.load %arg10[%c0_143, %c0_144] : memref<8x128xf32, #tpu.memory_space<vmem>>, vector<8x128xf32>
    %345 = arith.mulf %335, %344 : vector<8x128xf32>
    %346 = arith.mulf %329, %337 : vector<8x128xf32>
    %347 = arith.addf %345, %346 : vector<8x128xf32>
    %348 = math.tanh %347 : vector<8x128xf32>
    %349 = arith.mulf %343, %348 : vector<8x128xf32>
    %c0_145 = arith.constant 0 : index
    %c0_146 = arith.constant 0 : index
    %350 = vector.load %arg10[%c0_145, %c0_146] : memref<8x128xf32, #tpu.memory_space<vmem>>, vector<8x128xf32>
    tpu.vector_store %arg10[%c0_145, %c0_146], %347 {strides = array<i32>} : memref<8x128xf32, #tpu.memory_space<vmem>>, vector<8x128xf32>,
    %c0_147 = arith.constant 0 : index
    %c0_148 = arith.constant 0 : index
    %351 = vector.load %arg9[%c0_147, %c0_148] : memref<8x128xf32, #tpu.memory_space<vmem>>, vector<8x128xf32>
    tpu.vector_store %arg9[%c0_147, %c0_148], %349 {strides = array<i32>} : memref<8x128xf32, #tpu.memory_space<vmem>>, vector<8x128xf32>,
    %352 = arith.index_cast %317 : i32 to index
    %c0_149 = arith.constant 0 : index
    %353 = vector.load %arg7[%352, %c0_149] : memref<72x128xf32, #tpu.memory_space<vmem>>, vector<8x128xf32>
    tpu.vector_store %arg7[%352, %c0_149], %349 {strides = array<i32>} : memref<72x128xf32, #tpu.memory_space<vmem>>, vector<8x128xf32>,
    %c9_i32 = arith.constant 9 : i32
    %c0_150 = arith.constant 0 : index
    %c0_151 = arith.constant 0 : index
    %354 = vector.load %arg4[%c0_150, %c0_151] : memref<128x512xbf16, #tpu.memory_space<vmem>>, vector<128x512xbf16>
    %c0_152 = arith.constant 0 : index
    %c0_153 = arith.constant 0 : index
    %355 = vector.load %arg5[%c0_152, %c0_153] : memref<128x512xbf16, #tpu.memory_space<vmem>>, vector<128x512xbf16>
    %c0_154 = arith.constant 0 : index
    %c0_155 = arith.constant 0 : index
    %356 = vector.load %arg6[%c0_154, %c0_155] : memref<1x512xf32, #tpu.memory_space<vmem>>, vector<1x512xf32>
    %c0_156 = arith.constant 0 : index
    %c0_157 = arith.constant 0 : index
    %357 = vector.load %arg7[%c0_156, %c0_157] : memref<72x128xf32, #tpu.memory_space<vmem>>, vector<72x128xf32>
    %358 = arith.truncf %357 : vector<72x128xf32> to vector<72x128xbf16>
    %cst_158 = arith.constant dense<0.000000e+00> : vector<72x512xf32>
    %359 = tpu.matmul %358, %354, %cst_158 {dimension_numbers = #tpu.dot_dimension_numbers<[1], [0], [0], [1], [0, 0, 1, 1], [], []>} : vector<72x128xbf16>, vector<128x512xbf16>, vector<72x512xf32> -> vector<72x512xf32>
    %360 = vector.broadcast %356 : vector<1x512xf32> to vector<72x512xf32>
    %361 = arith.addf %359, %360 : vector<72x512xf32>
    %c0_159 = arith.constant 0 : index
    %c0_160 = arith.constant 0 : index
    %362 = vector.load %arg8[%c0_159, %c0_160] : memref<72x512xf32, #tpu.memory_space<vmem>>, vector<72x512xf32>
    tpu.vector_store %arg8[%c0_159, %c0_160], %361 {strides = array<i32>} : memref<72x512xf32, #tpu.memory_space<vmem>>, vector<72x512xf32>,
    %cst_161 = arith.constant 0.000000e+00 : f32
    %363 = vector.broadcast %cst_161 : f32 to vector<8x128xf32>
    %c0_162 = arith.constant 0 : index
    %c0_163 = arith.constant 0 : index
    %364 = vector.load %arg9[%c0_162, %c0_163] : memref<8x128xf32, #tpu.memory_space<vmem>>, vector<8x128xf32>
    tpu.vector_store %arg9[%c0_162, %c0_163], %363 {strides = array<i32>} : memref<8x128xf32, #tpu.memory_space<vmem>>, vector<8x128xf32>,
    %cst_164 = arith.constant 0.000000e+00 : f32
    %365 = vector.broadcast %cst_164 : f32 to vector<8x128xf32>
    %c0_165 = arith.constant 0 : index
    %c0_166 = arith.constant 0 : index
    %366 = vector.load %arg10[%c0_165, %c0_166] : memref<8x128xf32, #tpu.memory_space<vmem>>, vector<8x128xf32>
    tpu.vector_store %arg10[%c0_165, %c0_166], %365 {strides = array<i32>} : memref<8x128xf32, #tpu.memory_space<vmem>>, vector<8x128xf32>,
    %c0_i32_167 = arith.constant 0 : i32
    %c8_i32_168 = arith.constant 8 : i32
    %367 = arith.muli %c0_i32_167, %c8_i32_168 : i32
    %368 = tpu.assume_multiple %367, 8 : i32
    %369 = arith.index_cast %368 : i32 to index
    %c0_169 = arith.constant 0 : index
    %370 = vector.load %arg8[%369, %c0_169] : memref<72x512xf32, #tpu.memory_space<vmem>>, vector<8x512xf32>
    %c0_170 = arith.constant 0 : index
    %c0_171 = arith.constant 0 : index
    %371 = vector.load %arg9[%c0_170, %c0_171] : memref<8x128xf32, #tpu.memory_space<vmem>>, vector<8x128xf32>
    %372 = arith.truncf %371 : vector<8x128xf32> to vector<8x128xbf16>
    %cst_172 = arith.constant dense<0.000000e+00> : vector<8x512xf32>
    %373 = tpu.matmul %372, %355, %cst_172 {dimension_numbers = #tpu.dot_dimension_numbers<[1], [0], [0], [1], [0, 0, 1, 1], [], []>} : vector<8x128xbf16>, vector<128x512xbf16>, vector<8x512xf32> -> vector<8x512xf32>
    %374 = arith.addf %370, %373 : vector<8x512xf32>
    %375 = vector.extract_strided_slice %374 {offsets = [0, 0], sizes = [8, 128], strides = [1, 1]} : vector<8x512xf32> to vector<8x128xf32>
    %376 = arith.negf %375 : vector<8x128xf32>
    %377 = math.exp %376 : vector<8x128xf32>
    %cst_173 = arith.constant 1.000000e+00 : f32
    %378 = vector.broadcast %cst_173 : f32 to vector<8x128xf32>
    %379 = arith.addf %378, %377 : vector<8x128xf32>
    %380 = arith.divf %378, %379 : vector<8x128xf32>
    %381 = vector.extract_strided_slice %374 {offsets = [0, 128], sizes = [8, 128], strides = [1, 1]} : vector<8x512xf32> to vector<8x128xf32>
    %382 = arith.negf %381 : vector<8x128xf32>
    %383 = math.exp %382 : vector<8x128xf32>
    %cst_174 = arith.constant 1.000000e+00 : f32
    %384 = vector.broadcast %cst_174 : f32 to vector<8x128xf32>
    %385 = arith.addf %384, %383 : vector<8x128xf32>
    %386 = arith.divf %384, %385 : vector<8x128xf32>
    %387 = vector.extract_strided_slice %374 {offsets = [0, 256], sizes = [8, 128], strides = [1, 1]} : vector<8x512xf32> to vector<8x128xf32>
    %388 = math.tanh %387 : vector<8x128xf32>
    %389 = vector.extract_strided_slice %374 {offsets = [0, 384], sizes = [8, 128], strides = [1, 1]} : vector<8x512xf32> to vector<8x128xf32>
    %390 = arith.negf %389 : vector<8x128xf32>
    %391 = math.exp %390 : vector<8x128xf32>
    %cst_175 = arith.constant 1.000000e+00 : f32
    %392 = vector.broadcast %cst_175 : f32 to vector<8x128xf32>
    %393 = arith.addf %392, %391 : vector<8x128xf32>
    %394 = arith.divf %392, %393 : vector<8x128xf32>
    %c0_176 = arith.constant 0 : index
    %c0_177 = arith.constant 0 : index
    %395 = vector.load %arg10[%c0_176, %c0_177] : memref<8x128xf32, #tpu.memory_space<vmem>>, vector<8x128xf32>
    %396 = arith.mulf %386, %395 : vector<8x128xf32>
    %397 = arith.mulf %380, %388 : vector<8x128xf32>
    %398 = arith.addf %396, %397 : vector<8x128xf32>
    %399 = math.tanh %398 : vector<8x128xf32>
    %400 = arith.mulf %394, %399 : vector<8x128xf32>
    %c0_178 = arith.constant 0 : index
    %c0_179 = arith.constant 0 : index
    %401 = vector.load %arg10[%c0_178, %c0_179] : memref<8x128xf32, #tpu.memory_space<vmem>>, vector<8x128xf32>
    tpu.vector_store %arg10[%c0_178, %c0_179], %398 {strides = array<i32>} : memref<8x128xf32, #tpu.memory_space<vmem>>, vector<8x128xf32>,
    %c0_180 = arith.constant 0 : index
    %c0_181 = arith.constant 0 : index
    %402 = vector.load %arg9[%c0_180, %c0_181] : memref<8x128xf32, #tpu.memory_space<vmem>>, vector<8x128xf32>
    tpu.vector_store %arg9[%c0_180, %c0_181], %400 {strides = array<i32>} : memref<8x128xf32, #tpu.memory_space<vmem>>, vector<8x128xf32>,
    %403 = arith.index_cast %368 : i32 to index
    %c0_182 = arith.constant 0 : index
    %404 = vector.load %arg7[%403, %c0_182] : memref<72x128xf32, #tpu.memory_space<vmem>>, vector<8x128xf32>
    tpu.vector_store %arg7[%403, %c0_182], %400 {strides = array<i32>} : memref<72x128xf32, #tpu.memory_space<vmem>>, vector<8x128xf32>,
    %c1_i32_183 = arith.constant 1 : i32
    %c8_i32_184 = arith.constant 8 : i32
    %405 = arith.muli %c1_i32_183, %c8_i32_184 : i32
    %406 = tpu.assume_multiple %405, 8 : i32
    %407 = arith.index_cast %406 : i32 to index
    %c0_185 = arith.constant 0 : index
    %408 = vector.load %arg8[%407, %c0_185] : memref<72x512xf32, #tpu.memory_space<vmem>>, vector<8x512xf32>
    %c0_186 = arith.constant 0 : index
    %c0_187 = arith.constant 0 : index
    %409 = vector.load %arg9[%c0_186, %c0_187] : memref<8x128xf32, #tpu.memory_space<vmem>>, vector<8x128xf32>
    %410 = arith.truncf %409 : vector<8x128xf32> to vector<8x128xbf16>
    %cst_188 = arith.constant dense<0.000000e+00> : vector<8x512xf32>
    %411 = tpu.matmul %410, %355, %cst_188 {dimension_numbers = #tpu.dot_dimension_numbers<[1], [0], [0], [1], [0, 0, 1, 1], [], []>} : vector<8x128xbf16>, vector<128x512xbf16>, vector<8x512xf32> -> vector<8x512xf32>
    %412 = arith.addf %408, %411 : vector<8x512xf32>
    %413 = vector.extract_strided_slice %412 {offsets = [0, 0], sizes = [8, 128], strides = [1, 1]} : vector<8x512xf32> to vector<8x128xf32>
    %414 = arith.negf %413 : vector<8x128xf32>
    %415 = math.exp %414 : vector<8x128xf32>
    %cst_189 = arith.constant 1.000000e+00 : f32
    %416 = vector.broadcast %cst_189 : f32 to vector<8x128xf32>
    %417 = arith.addf %416, %415 : vector<8x128xf32>
    %418 = arith.divf %416, %417 : vector<8x128xf32>
    %419 = vector.extract_strided_slice %412 {offsets = [0, 128], sizes = [8, 128], strides = [1, 1]} : vector<8x512xf32> to vector<8x128xf32>
    %420 = arith.negf %419 : vector<8x128xf32>
    %421 = math.exp %420 : vector<8x128xf32>
    %cst_190 = arith.constant 1.000000e+00 : f32
    %422 = vector.broadcast %cst_190 : f32 to vector<8x128xf32>
    %423 = arith.addf %422, %421 : vector<8x128xf32>
    %424 = arith.divf %422, %423 : vector<8x128xf32>
    %425 = vector.extract_strided_slice %412 {offsets = [0, 256], sizes = [8, 128], strides = [1, 1]} : vector<8x512xf32> to vector<8x128xf32>
    %426 = math.tanh %425 : vector<8x128xf32>
    %427 = vector.extract_strided_slice %412 {offsets = [0, 384], sizes = [8, 128], strides = [1, 1]} : vector<8x512xf32> to vector<8x128xf32>
    %428 = arith.negf %427 : vector<8x128xf32>
    %429 = math.exp %428 : vector<8x128xf32>
    %cst_191 = arith.constant 1.000000e+00 : f32
    %430 = vector.broadcast %cst_191 : f32 to vector<8x128xf32>
    %431 = arith.addf %430, %429 : vector<8x128xf32>
    %432 = arith.divf %430, %431 : vector<8x128xf32>
    %c0_192 = arith.constant 0 : index
    %c0_193 = arith.constant 0 : index
    %433 = vector.load %arg10[%c0_192, %c0_193] : memref<8x128xf32, #tpu.memory_space<vmem>>, vector<8x128xf32>
    %434 = arith.mulf %424, %433 : vector<8x128xf32>
    %435 = arith.mulf %418, %426 : vector<8x128xf32>
    %436 = arith.addf %434, %435 : vector<8x128xf32>
    %437 = math.tanh %436 : vector<8x128xf32>
    %438 = arith.mulf %432, %437 : vector<8x128xf32>
    %c0_194 = arith.constant 0 : index
    %c0_195 = arith.constant 0 : index
    %439 = vector.load %arg10[%c0_194, %c0_195] : memref<8x128xf32, #tpu.memory_space<vmem>>, vector<8x128xf32>
    tpu.vector_store %arg10[%c0_194, %c0_195], %436 {strides = array<i32>} : memref<8x128xf32, #tpu.memory_space<vmem>>, vector<8x128xf32>,
    %c0_196 = arith.constant 0 : index
    %c0_197 = arith.constant 0 : index
    %440 = vector.load %arg9[%c0_196, %c0_197] : memref<8x128xf32, #tpu.memory_space<vmem>>, vector<8x128xf32>
    tpu.vector_store %arg9[%c0_196, %c0_197], %438 {strides = array<i32>} : memref<8x128xf32, #tpu.memory_space<vmem>>, vector<8x128xf32>,
    %441 = arith.index_cast %406 : i32 to index
    %c0_198 = arith.constant 0 : index
    %442 = vector.load %arg7[%441, %c0_198] : memref<72x128xf32, #tpu.memory_space<vmem>>, vector<8x128xf32>
    tpu.vector_store %arg7[%441, %c0_198], %438 {strides = array<i32>} : memref<72x128xf32, #tpu.memory_space<vmem>>, vector<8x128xf32>,
    %c2_i32_199 = arith.constant 2 : i32
    %c8_i32_200 = arith.constant 8 : i32
    %443 = arith.muli %c2_i32_199, %c8_i32_200 : i32
    %444 = tpu.assume_multiple %443, 8 : i32
    %445 = arith.index_cast %444 : i32 to index
    %c0_201 = arith.constant 0 : index
    %446 = vector.load %arg8[%445, %c0_201] : memref<72x512xf32, #tpu.memory_space<vmem>>, vector<8x512xf32>
    %c0_202 = arith.constant 0 : index
    %c0_203 = arith.constant 0 : index
    %447 = vector.load %arg9[%c0_202, %c0_203] : memref<8x128xf32, #tpu.memory_space<vmem>>, vector<8x128xf32>
    %448 = arith.truncf %447 : vector<8x128xf32> to vector<8x128xbf16>
    %cst_204 = arith.constant dense<0.000000e+00> : vector<8x512xf32>
    %449 = tpu.matmul %448, %355, %cst_204 {dimension_numbers = #tpu.dot_dimension_numbers<[1], [0], [0], [1], [0, 0, 1, 1], [], []>} : vector<8x128xbf16>, vector<128x512xbf16>, vector<8x512xf32> -> vector<8x512xf32>
    %450 = arith.addf %446, %449 : vector<8x512xf32>
    %451 = vector.extract_strided_slice %450 {offsets = [0, 0], sizes = [8, 128], strides = [1, 1]} : vector<8x512xf32> to vector<8x128xf32>
    %452 = arith.negf %451 : vector<8x128xf32>
    %453 = math.exp %452 : vector<8x128xf32>
    %cst_205 = arith.constant 1.000000e+00 : f32
    %454 = vector.broadcast %cst_205 : f32 to vector<8x128xf32>
    %455 = arith.addf %454, %453 : vector<8x128xf32>
    %456 = arith.divf %454, %455 : vector<8x128xf32>
    %457 = vector.extract_strided_slice %450 {offsets = [0, 128], sizes = [8, 128], strides = [1, 1]} : vector<8x512xf32> to vector<8x128xf32>
    %458 = arith.negf %457 : vector<8x128xf32>
    %459 = math.exp %458 : vector<8x128xf32>
    %cst_206 = arith.constant 1.000000e+00 : f32
    %460 = vector.broadcast %cst_206 : f32 to vector<8x128xf32>
    %461 = arith.addf %460, %459 : vector<8x128xf32>
    %462 = arith.divf %460, %461 : vector<8x128xf32>
    %463 = vector.extract_strided_slice %450 {offsets = [0, 256], sizes = [8, 128], strides = [1, 1]} : vector<8x512xf32> to vector<8x128xf32>
    %464 = math.tanh %463 : vector<8x128xf32>
    %465 = vector.extract_strided_slice %450 {offsets = [0, 384], sizes = [8, 128], strides = [1, 1]} : vector<8x512xf32> to vector<8x128xf32>
    %466 = arith.negf %465 : vector<8x128xf32>
    %467 = math.exp %466 : vector<8x128xf32>
    %cst_207 = arith.constant 1.000000e+00 : f32
    %468 = vector.broadcast %cst_207 : f32 to vector<8x128xf32>
    %469 = arith.addf %468, %467 : vector<8x128xf32>
    %470 = arith.divf %468, %469 : vector<8x128xf32>
    %c0_208 = arith.constant 0 : index
    %c0_209 = arith.constant 0 : index
    %471 = vector.load %arg10[%c0_208, %c0_209] : memref<8x128xf32, #tpu.memory_space<vmem>>, vector<8x128xf32>
    %472 = arith.mulf %462, %471 : vector<8x128xf32>
    %473 = arith.mulf %456, %464 : vector<8x128xf32>
    %474 = arith.addf %472, %473 : vector<8x128xf32>
    %475 = math.tanh %474 : vector<8x128xf32>
    %476 = arith.mulf %470, %475 : vector<8x128xf32>
    %c0_210 = arith.constant 0 : index
    %c0_211 = arith.constant 0 : index
    %477 = vector.load %arg10[%c0_210, %c0_211] : memref<8x128xf32, #tpu.memory_space<vmem>>, vector<8x128xf32>
    tpu.vector_store %arg10[%c0_210, %c0_211], %474 {strides = array<i32>} : memref<8x128xf32, #tpu.memory_space<vmem>>, vector<8x128xf32>,
    %c0_212 = arith.constant 0 : index
    %c0_213 = arith.constant 0 : index
    %478 = vector.load %arg9[%c0_212, %c0_213] : memref<8x128xf32, #tpu.memory_space<vmem>>, vector<8x128xf32>
    tpu.vector_store %arg9[%c0_212, %c0_213], %476 {strides = array<i32>} : memref<8x128xf32, #tpu.memory_space<vmem>>, vector<8x128xf32>,
    %479 = arith.index_cast %444 : i32 to index
    %c0_214 = arith.constant 0 : index
    %480 = vector.load %arg7[%479, %c0_214] : memref<72x128xf32, #tpu.memory_space<vmem>>, vector<8x128xf32>
    tpu.vector_store %arg7[%479, %c0_214], %476 {strides = array<i32>} : memref<72x128xf32, #tpu.memory_space<vmem>>, vector<8x128xf32>,
    %c3_i32_215 = arith.constant 3 : i32
    %c8_i32_216 = arith.constant 8 : i32
    %481 = arith.muli %c3_i32_215, %c8_i32_216 : i32
    %482 = tpu.assume_multiple %481, 8 : i32
    %483 = arith.index_cast %482 : i32 to index
    %c0_217 = arith.constant 0 : index
    %484 = vector.load %arg8[%483, %c0_217] : memref<72x512xf32, #tpu.memory_space<vmem>>, vector<8x512xf32>
    %c0_218 = arith.constant 0 : index
    %c0_219 = arith.constant 0 : index
    %485 = vector.load %arg9[%c0_218, %c0_219] : memref<8x128xf32, #tpu.memory_space<vmem>>, vector<8x128xf32>
    %486 = arith.truncf %485 : vector<8x128xf32> to vector<8x128xbf16>
    %cst_220 = arith.constant dense<0.000000e+00> : vector<8x512xf32>
    %487 = tpu.matmul %486, %355, %cst_220 {dimension_numbers = #tpu.dot_dimension_numbers<[1], [0], [0], [1], [0, 0, 1, 1], [], []>} : vector<8x128xbf16>, vector<128x512xbf16>, vector<8x512xf32> -> vector<8x512xf32>
    %488 = arith.addf %484, %487 : vector<8x512xf32>
    %489 = vector.extract_strided_slice %488 {offsets = [0, 0], sizes = [8, 128], strides = [1, 1]} : vector<8x512xf32> to vector<8x128xf32>
    %490 = arith.negf %489 : vector<8x128xf32>
    %491 = math.exp %490 : vector<8x128xf32>
    %cst_221 = arith.constant 1.000000e+00 : f32
    %492 = vector.broadcast %cst_221 : f32 to vector<8x128xf32>
    %493 = arith.addf %492, %491 : vector<8x128xf32>
    %494 = arith.divf %492, %493 : vector<8x128xf32>
    %495 = vector.extract_strided_slice %488 {offsets = [0, 128], sizes = [8, 128], strides = [1, 1]} : vector<8x512xf32> to vector<8x128xf32>
    %496 = arith.negf %495 : vector<8x128xf32>
    %497 = math.exp %496 : vector<8x128xf32>
    %cst_222 = arith.constant 1.000000e+00 : f32
    %498 = vector.broadcast %cst_222 : f32 to vector<8x128xf32>
    %499 = arith.addf %498, %497 : vector<8x128xf32>
    %500 = arith.divf %498, %499 : vector<8x128xf32>
    %501 = vector.extract_strided_slice %488 {offsets = [0, 256], sizes = [8, 128], strides = [1, 1]} : vector<8x512xf32> to vector<8x128xf32>
    %502 = math.tanh %501 : vector<8x128xf32>
    %503 = vector.extract_strided_slice %488 {offsets = [0, 384], sizes = [8, 128], strides = [1, 1]} : vector<8x512xf32> to vector<8x128xf32>
    %504 = arith.negf %503 : vector<8x128xf32>
    %505 = math.exp %504 : vector<8x128xf32>
    %cst_223 = arith.constant 1.000000e+00 : f32
    %506 = vector.broadcast %cst_223 : f32 to vector<8x128xf32>
    %507 = arith.addf %506, %505 : vector<8x128xf32>
    %508 = arith.divf %506, %507 : vector<8x128xf32>
    %c0_224 = arith.constant 0 : index
    %c0_225 = arith.constant 0 : index
    %509 = vector.load %arg10[%c0_224, %c0_225] : memref<8x128xf32, #tpu.memory_space<vmem>>, vector<8x128xf32>
    %510 = arith.mulf %500, %509 : vector<8x128xf32>
    %511 = arith.mulf %494, %502 : vector<8x128xf32>
    %512 = arith.addf %510, %511 : vector<8x128xf32>
    %513 = math.tanh %512 : vector<8x128xf32>
    %514 = arith.mulf %508, %513 : vector<8x128xf32>
    %c0_226 = arith.constant 0 : index
    %c0_227 = arith.constant 0 : index
    %515 = vector.load %arg10[%c0_226, %c0_227] : memref<8x128xf32, #tpu.memory_space<vmem>>, vector<8x128xf32>
    tpu.vector_store %arg10[%c0_226, %c0_227], %512 {strides = array<i32>} : memref<8x128xf32, #tpu.memory_space<vmem>>, vector<8x128xf32>,
    %c0_228 = arith.constant 0 : index
    %c0_229 = arith.constant 0 : index
    %516 = vector.load %arg9[%c0_228, %c0_229] : memref<8x128xf32, #tpu.memory_space<vmem>>, vector<8x128xf32>
    tpu.vector_store %arg9[%c0_228, %c0_229], %514 {strides = array<i32>} : memref<8x128xf32, #tpu.memory_space<vmem>>, vector<8x128xf32>,
    %517 = arith.index_cast %482 : i32 to index
    %c0_230 = arith.constant 0 : index
    %518 = vector.load %arg7[%517, %c0_230] : memref<72x128xf32, #tpu.memory_space<vmem>>, vector<8x128xf32>
    tpu.vector_store %arg7[%517, %c0_230], %514 {strides = array<i32>} : memref<72x128xf32, #tpu.memory_space<vmem>>, vector<8x128xf32>,
    %c4_i32_231 = arith.constant 4 : i32
    %c8_i32_232 = arith.constant 8 : i32
    %519 = arith.muli %c4_i32_231, %c8_i32_232 : i32
    %520 = tpu.assume_multiple %519, 8 : i32
    %521 = arith.index_cast %520 : i32 to index
    %c0_233 = arith.constant 0 : index
    %522 = vector.load %arg8[%521, %c0_233] : memref<72x512xf32, #tpu.memory_space<vmem>>, vector<8x512xf32>
    %c0_234 = arith.constant 0 : index
    %c0_235 = arith.constant 0 : index
    %523 = vector.load %arg9[%c0_234, %c0_235] : memref<8x128xf32, #tpu.memory_space<vmem>>, vector<8x128xf32>
    %524 = arith.truncf %523 : vector<8x128xf32> to vector<8x128xbf16>
    %cst_236 = arith.constant dense<0.000000e+00> : vector<8x512xf32>
    %525 = tpu.matmul %524, %355, %cst_236 {dimension_numbers = #tpu.dot_dimension_numbers<[1], [0], [0], [1], [0, 0, 1, 1], [], []>} : vector<8x128xbf16>, vector<128x512xbf16>, vector<8x512xf32> -> vector<8x512xf32>
    %526 = arith.addf %522, %525 : vector<8x512xf32>
    %527 = vector.extract_strided_slice %526 {offsets = [0, 0], sizes = [8, 128], strides = [1, 1]} : vector<8x512xf32> to vector<8x128xf32>
    %528 = arith.negf %527 : vector<8x128xf32>
    %529 = math.exp %528 : vector<8x128xf32>
    %cst_237 = arith.constant 1.000000e+00 : f32
    %530 = vector.broadcast %cst_237 : f32 to vector<8x128xf32>
    %531 = arith.addf %530, %529 : vector<8x128xf32>
    %532 = arith.divf %530, %531 : vector<8x128xf32>
    %533 = vector.extract_strided_slice %526 {offsets = [0, 128], sizes = [8, 128], strides = [1, 1]} : vector<8x512xf32> to vector<8x128xf32>
    %534 = arith.negf %533 : vector<8x128xf32>
    %535 = math.exp %534 : vector<8x128xf32>
    %cst_238 = arith.constant 1.000000e+00 : f32
    %536 = vector.broadcast %cst_238 : f32 to vector<8x128xf32>
    %537 = arith.addf %536, %535 : vector<8x128xf32>
    %538 = arith.divf %536, %537 : vector<8x128xf32>
    %539 = vector.extract_strided_slice %526 {offsets = [0, 256], sizes = [8, 128], strides = [1, 1]} : vector<8x512xf32> to vector<8x128xf32>
    %540 = math.tanh %539 : vector<8x128xf32>
    %541 = vector.extract_strided_slice %526 {offsets = [0, 384], sizes = [8, 128], strides = [1, 1]} : vector<8x512xf32> to vector<8x128xf32>
    %542 = arith.negf %541 : vector<8x128xf32>
    %543 = math.exp %542 : vector<8x128xf32>
    %cst_239 = arith.constant 1.000000e+00 : f32
    %544 = vector.broadcast %cst_239 : f32 to vector<8x128xf32>
    %545 = arith.addf %544, %543 : vector<8x128xf32>
    %546 = arith.divf %544, %545 : vector<8x128xf32>
    %c0_240 = arith.constant 0 : index
    %c0_241 = arith.constant 0 : index
    %547 = vector.load %arg10[%c0_240, %c0_241] : memref<8x128xf32, #tpu.memory_space<vmem>>, vector<8x128xf32>
    %548 = arith.mulf %538, %547 : vector<8x128xf32>
    %549 = arith.mulf %532, %540 : vector<8x128xf32>
    %550 = arith.addf %548, %549 : vector<8x128xf32>
    %551 = math.tanh %550 : vector<8x128xf32>
    %552 = arith.mulf %546, %551 : vector<8x128xf32>
    %c0_242 = arith.constant 0 : index
    %c0_243 = arith.constant 0 : index
    %553 = vector.load %arg10[%c0_242, %c0_243] : memref<8x128xf32, #tpu.memory_space<vmem>>, vector<8x128xf32>
    tpu.vector_store %arg10[%c0_242, %c0_243], %550 {strides = array<i32>} : memref<8x128xf32, #tpu.memory_space<vmem>>, vector<8x128xf32>,
    %c0_244 = arith.constant 0 : index
    %c0_245 = arith.constant 0 : index
    %554 = vector.load %arg9[%c0_244, %c0_245] : memref<8x128xf32, #tpu.memory_space<vmem>>, vector<8x128xf32>
    tpu.vector_store %arg9[%c0_244, %c0_245], %552 {strides = array<i32>} : memref<8x128xf32, #tpu.memory_space<vmem>>, vector<8x128xf32>,
    %555 = arith.index_cast %520 : i32 to index
    %c0_246 = arith.constant 0 : index
    %556 = vector.load %arg7[%555, %c0_246] : memref<72x128xf32, #tpu.memory_space<vmem>>, vector<8x128xf32>
    tpu.vector_store %arg7[%555, %c0_246], %552 {strides = array<i32>} : memref<72x128xf32, #tpu.memory_space<vmem>>, vector<8x128xf32>,
    %c5_i32_247 = arith.constant 5 : i32
    %c8_i32_248 = arith.constant 8 : i32
    %557 = arith.muli %c5_i32_247, %c8_i32_248 : i32
    %558 = tpu.assume_multiple %557, 8 : i32
    %559 = arith.index_cast %558 : i32 to index
    %c0_249 = arith.constant 0 : index
    %560 = vector.load %arg8[%559, %c0_249] : memref<72x512xf32, #tpu.memory_space<vmem>>, vector<8x512xf32>
    %c0_250 = arith.constant 0 : index
    %c0_251 = arith.constant 0 : index
    %561 = vector.load %arg9[%c0_250, %c0_251] : memref<8x128xf32, #tpu.memory_space<vmem>>, vector<8x128xf32>
    %562 = arith.truncf %561 : vector<8x128xf32> to vector<8x128xbf16>
    %cst_252 = arith.constant dense<0.000000e+00> : vector<8x512xf32>
    %563 = tpu.matmul %562, %355, %cst_252 {dimension_numbers = #tpu.dot_dimension_numbers<[1], [0], [0], [1], [0, 0, 1, 1], [], []>} : vector<8x128xbf16>, vector<128x512xbf16>, vector<8x512xf32> -> vector<8x512xf32>
    %564 = arith.addf %560, %563 : vector<8x512xf32>
    %565 = vector.extract_strided_slice %564 {offsets = [0, 0], sizes = [8, 128], strides = [1, 1]} : vector<8x512xf32> to vector<8x128xf32>
    %566 = arith.negf %565 : vector<8x128xf32>
    %567 = math.exp %566 : vector<8x128xf32>
    %cst_253 = arith.constant 1.000000e+00 : f32
    %568 = vector.broadcast %cst_253 : f32 to vector<8x128xf32>
    %569 = arith.addf %568, %567 : vector<8x128xf32>
    %570 = arith.divf %568, %569 : vector<8x128xf32>
    %571 = vector.extract_strided_slice %564 {offsets = [0, 128], sizes = [8, 128], strides = [1, 1]} : vector<8x512xf32> to vector<8x128xf32>
    %572 = arith.negf %571 : vector<8x128xf32>
    %573 = math.exp %572 : vector<8x128xf32>
    %cst_254 = arith.constant 1.000000e+00 : f32
    %574 = vector.broadcast %cst_254 : f32 to vector<8x128xf32>
    %575 = arith.addf %574, %573 : vector<8x128xf32>
    %576 = arith.divf %574, %575 : vector<8x128xf32>
    %577 = vector.extract_strided_slice %564 {offsets = [0, 256], sizes = [8, 128], strides = [1, 1]} : vector<8x512xf32> to vector<8x128xf32>
    %578 = math.tanh %577 : vector<8x128xf32>
    %579 = vector.extract_strided_slice %564 {offsets = [0, 384], sizes = [8, 128], strides = [1, 1]} : vector<8x512xf32> to vector<8x128xf32>
    %580 = arith.negf %579 : vector<8x128xf32>
    %581 = math.exp %580 : vector<8x128xf32>
    %cst_255 = arith.constant 1.000000e+00 : f32
    %582 = vector.broadcast %cst_255 : f32 to vector<8x128xf32>
    %583 = arith.addf %582, %581 : vector<8x128xf32>
    %584 = arith.divf %582, %583 : vector<8x128xf32>
    %c0_256 = arith.constant 0 : index
    %c0_257 = arith.constant 0 : index
    %585 = vector.load %arg10[%c0_256, %c0_257] : memref<8x128xf32, #tpu.memory_space<vmem>>, vector<8x128xf32>
    %586 = arith.mulf %576, %585 : vector<8x128xf32>
    %587 = arith.mulf %570, %578 : vector<8x128xf32>
    %588 = arith.addf %586, %587 : vector<8x128xf32>
    %589 = math.tanh %588 : vector<8x128xf32>
    %590 = arith.mulf %584, %589 : vector<8x128xf32>
    %c0_258 = arith.constant 0 : index
    %c0_259 = arith.constant 0 : index
    %591 = vector.load %arg10[%c0_258, %c0_259] : memref<8x128xf32, #tpu.memory_space<vmem>>, vector<8x128xf32>
    tpu.vector_store %arg10[%c0_258, %c0_259], %588 {strides = array<i32>} : memref<8x128xf32, #tpu.memory_space<vmem>>, vector<8x128xf32>,
    %c0_260 = arith.constant 0 : index
    %c0_261 = arith.constant 0 : index
    %592 = vector.load %arg9[%c0_260, %c0_261] : memref<8x128xf32, #tpu.memory_space<vmem>>, vector<8x128xf32>
    tpu.vector_store %arg9[%c0_260, %c0_261], %590 {strides = array<i32>} : memref<8x128xf32, #tpu.memory_space<vmem>>, vector<8x128xf32>,
    %593 = arith.index_cast %558 : i32 to index
    %c0_262 = arith.constant 0 : index
    %594 = vector.load %arg7[%593, %c0_262] : memref<72x128xf32, #tpu.memory_space<vmem>>, vector<8x128xf32>
    tpu.vector_store %arg7[%593, %c0_262], %590 {strides = array<i32>} : memref<72x128xf32, #tpu.memory_space<vmem>>, vector<8x128xf32>,
    %c6_i32_263 = arith.constant 6 : i32
    %c8_i32_264 = arith.constant 8 : i32
    %595 = arith.muli %c6_i32_263, %c8_i32_264 : i32
    %596 = tpu.assume_multiple %595, 8 : i32
    %597 = arith.index_cast %596 : i32 to index
    %c0_265 = arith.constant 0 : index
    %598 = vector.load %arg8[%597, %c0_265] : memref<72x512xf32, #tpu.memory_space<vmem>>, vector<8x512xf32>
    %c0_266 = arith.constant 0 : index
    %c0_267 = arith.constant 0 : index
    %599 = vector.load %arg9[%c0_266, %c0_267] : memref<8x128xf32, #tpu.memory_space<vmem>>, vector<8x128xf32>
    %600 = arith.truncf %599 : vector<8x128xf32> to vector<8x128xbf16>
    %cst_268 = arith.constant dense<0.000000e+00> : vector<8x512xf32>
    %601 = tpu.matmul %600, %355, %cst_268 {dimension_numbers = #tpu.dot_dimension_numbers<[1], [0], [0], [1], [0, 0, 1, 1], [], []>} : vector<8x128xbf16>, vector<128x512xbf16>, vector<8x512xf32> -> vector<8x512xf32>
    %602 = arith.addf %598, %601 : vector<8x512xf32>
    %603 = vector.extract_strided_slice %602 {offsets = [0, 0], sizes = [8, 128], strides = [1, 1]} : vector<8x512xf32> to vector<8x128xf32>
    %604 = arith.negf %603 : vector<8x128xf32>
    %605 = math.exp %604 : vector<8x128xf32>
    %cst_269 = arith.constant 1.000000e+00 : f32
    %606 = vector.broadcast %cst_269 : f32 to vector<8x128xf32>
    %607 = arith.addf %606, %605 : vector<8x128xf32>
    %608 = arith.divf %606, %607 : vector<8x128xf32>
    %609 = vector.extract_strided_slice %602 {offsets = [0, 128], sizes = [8, 128], strides = [1, 1]} : vector<8x512xf32> to vector<8x128xf32>
    %610 = arith.negf %609 : vector<8x128xf32>
    %611 = math.exp %610 : vector<8x128xf32>
    %cst_270 = arith.constant 1.000000e+00 : f32
    %612 = vector.broadcast %cst_270 : f32 to vector<8x128xf32>
    %613 = arith.addf %612, %611 : vector<8x128xf32>
    %614 = arith.divf %612, %613 : vector<8x128xf32>
    %615 = vector.extract_strided_slice %602 {offsets = [0, 256], sizes = [8, 128], strides = [1, 1]} : vector<8x512xf32> to vector<8x128xf32>
    %616 = math.tanh %615 : vector<8x128xf32>
    %617 = vector.extract_strided_slice %602 {offsets = [0, 384], sizes = [8, 128], strides = [1, 1]} : vector<8x512xf32> to vector<8x128xf32>
    %618 = arith.negf %617 : vector<8x128xf32>
    %619 = math.exp %618 : vector<8x128xf32>
    %cst_271 = arith.constant 1.000000e+00 : f32
    %620 = vector.broadcast %cst_271 : f32 to vector<8x128xf32>
    %621 = arith.addf %620, %619 : vector<8x128xf32>
    %622 = arith.divf %620, %621 : vector<8x128xf32>
    %c0_272 = arith.constant 0 : index
    %c0_273 = arith.constant 0 : index
    %623 = vector.load %arg10[%c0_272, %c0_273] : memref<8x128xf32, #tpu.memory_space<vmem>>, vector<8x128xf32>
    %624 = arith.mulf %614, %623 : vector<8x128xf32>
    %625 = arith.mulf %608, %616 : vector<8x128xf32>
    %626 = arith.addf %624, %625 : vector<8x128xf32>
    %627 = math.tanh %626 : vector<8x128xf32>
    %628 = arith.mulf %622, %627 : vector<8x128xf32>
    %c0_274 = arith.constant 0 : index
    %c0_275 = arith.constant 0 : index
    %629 = vector.load %arg10[%c0_274, %c0_275] : memref<8x128xf32, #tpu.memory_space<vmem>>, vector<8x128xf32>
    tpu.vector_store %arg10[%c0_274, %c0_275], %626 {strides = array<i32>} : memref<8x128xf32, #tpu.memory_space<vmem>>, vector<8x128xf32>,
    %c0_276 = arith.constant 0 : index
    %c0_277 = arith.constant 0 : index
    %630 = vector.load %arg9[%c0_276, %c0_277] : memref<8x128xf32, #tpu.memory_space<vmem>>, vector<8x128xf32>
    tpu.vector_store %arg9[%c0_276, %c0_277], %628 {strides = array<i32>} : memref<8x128xf32, #tpu.memory_space<vmem>>, vector<8x128xf32>,
    %631 = arith.index_cast %596 : i32 to index
    %c0_278 = arith.constant 0 : index
    %632 = vector.load %arg7[%631, %c0_278] : memref<72x128xf32, #tpu.memory_space<vmem>>, vector<8x128xf32>
    tpu.vector_store %arg7[%631, %c0_278], %628 {strides = array<i32>} : memref<72x128xf32, #tpu.memory_space<vmem>>, vector<8x128xf32>,
    %c7_i32_279 = arith.constant 7 : i32
    %c8_i32_280 = arith.constant 8 : i32
    %633 = arith.muli %c7_i32_279, %c8_i32_280 : i32
    %634 = tpu.assume_multiple %633, 8 : i32
    %635 = arith.index_cast %634 : i32 to index
    %c0_281 = arith.constant 0 : index
    %636 = vector.load %arg8[%635, %c0_281] : memref<72x512xf32, #tpu.memory_space<vmem>>, vector<8x512xf32>
    %c0_282 = arith.constant 0 : index
    %c0_283 = arith.constant 0 : index
    %637 = vector.load %arg9[%c0_282, %c0_283] : memref<8x128xf32, #tpu.memory_space<vmem>>, vector<8x128xf32>
    %638 = arith.truncf %637 : vector<8x128xf32> to vector<8x128xbf16>
    %cst_284 = arith.constant dense<0.000000e+00> : vector<8x512xf32>
    %639 = tpu.matmul %638, %355, %cst_284 {dimension_numbers = #tpu.dot_dimension_numbers<[1], [0], [0], [1], [0, 0, 1, 1], [], []>} : vector<8x128xbf16>, vector<128x512xbf16>, vector<8x512xf32> -> vector<8x512xf32>
    %640 = arith.addf %636, %639 : vector<8x512xf32>
    %641 = vector.extract_strided_slice %640 {offsets = [0, 0], sizes = [8, 128], strides = [1, 1]} : vector<8x512xf32> to vector<8x128xf32>
    %642 = arith.negf %641 : vector<8x128xf32>
    %643 = math.exp %642 : vector<8x128xf32>
    %cst_285 = arith.constant 1.000000e+00 : f32
    %644 = vector.broadcast %cst_285 : f32 to vector<8x128xf32>
    %645 = arith.addf %644, %643 : vector<8x128xf32>
    %646 = arith.divf %644, %645 : vector<8x128xf32>
    %647 = vector.extract_strided_slice %640 {offsets = [0, 128], sizes = [8, 128], strides = [1, 1]} : vector<8x512xf32> to vector<8x128xf32>
    %648 = arith.negf %647 : vector<8x128xf32>
    %649 = math.exp %648 : vector<8x128xf32>
    %cst_286 = arith.constant 1.000000e+00 : f32
    %650 = vector.broadcast %cst_286 : f32 to vector<8x128xf32>
    %651 = arith.addf %650, %649 : vector<8x128xf32>
    %652 = arith.divf %650, %651 : vector<8x128xf32>
    %653 = vector.extract_strided_slice %640 {offsets = [0, 256], sizes = [8, 128], strides = [1, 1]} : vector<8x512xf32> to vector<8x128xf32>
    %654 = math.tanh %653 : vector<8x128xf32>
    %655 = vector.extract_strided_slice %640 {offsets = [0, 384], sizes = [8, 128], strides = [1, 1]} : vector<8x512xf32> to vector<8x128xf32>
    %656 = arith.negf %655 : vector<8x128xf32>
    %657 = math.exp %656 : vector<8x128xf32>
    %cst_287 = arith.constant 1.000000e+00 : f32
    %658 = vector.broadcast %cst_287 : f32 to vector<8x128xf32>
    %659 = arith.addf %658, %657 : vector<8x128xf32>
    %660 = arith.divf %658, %659 : vector<8x128xf32>
    %c0_288 = arith.constant 0 : index
    %c0_289 = arith.constant 0 : index
    %661 = vector.load %arg10[%c0_288, %c0_289] : memref<8x128xf32, #tpu.memory_space<vmem>>, vector<8x128xf32>
    %662 = arith.mulf %652, %661 : vector<8x128xf32>
    %663 = arith.mulf %646, %654 : vector<8x128xf32>
    %664 = arith.addf %662, %663 : vector<8x128xf32>
    %665 = math.tanh %664 : vector<8x128xf32>
    %666 = arith.mulf %660, %665 : vector<8x128xf32>
    %c0_290 = arith.constant 0 : index
    %c0_291 = arith.constant 0 : index
    %667 = vector.load %arg10[%c0_290, %c0_291] : memref<8x128xf32, #tpu.memory_space<vmem>>, vector<8x128xf32>
    tpu.vector_store %arg10[%c0_290, %c0_291], %664 {strides = array<i32>} : memref<8x128xf32, #tpu.memory_space<vmem>>, vector<8x128xf32>,
    %c0_292 = arith.constant 0 : index
    %c0_293 = arith.constant 0 : index
    %668 = vector.load %arg9[%c0_292, %c0_293] : memref<8x128xf32, #tpu.memory_space<vmem>>, vector<8x128xf32>
    tpu.vector_store %arg9[%c0_292, %c0_293], %666 {strides = array<i32>} : memref<8x128xf32, #tpu.memory_space<vmem>>, vector<8x128xf32>,
    %669 = arith.index_cast %634 : i32 to index
    %c0_294 = arith.constant 0 : index
    %670 = vector.load %arg7[%669, %c0_294] : memref<72x128xf32, #tpu.memory_space<vmem>>, vector<8x128xf32>
    tpu.vector_store %arg7[%669, %c0_294], %666 {strides = array<i32>} : memref<72x128xf32, #tpu.memory_space<vmem>>, vector<8x128xf32>,
    %c8_i32_295 = arith.constant 8 : i32
    %c8_i32_296 = arith.constant 8 : i32
    %671 = arith.muli %c8_i32_295, %c8_i32_296 : i32
    %672 = tpu.assume_multiple %671, 8 : i32
    %673 = arith.index_cast %672 : i32 to index
    %c0_297 = arith.constant 0 : index
    %674 = vector.load %arg8[%673, %c0_297] : memref<72x512xf32, #tpu.memory_space<vmem>>, vector<8x512xf32>
    %c0_298 = arith.constant 0 : index
    %c0_299 = arith.constant 0 : index
    %675 = vector.load %arg9[%c0_298, %c0_299] : memref<8x128xf32, #tpu.memory_space<vmem>>, vector<8x128xf32>
    %676 = arith.truncf %675 : vector<8x128xf32> to vector<8x128xbf16>
    %cst_300 = arith.constant dense<0.000000e+00> : vector<8x512xf32>
    %677 = tpu.matmul %676, %355, %cst_300 {dimension_numbers = #tpu.dot_dimension_numbers<[1], [0], [0], [1], [0, 0, 1, 1], [], []>} : vector<8x128xbf16>, vector<128x512xbf16>, vector<8x512xf32> -> vector<8x512xf32>
    %678 = arith.addf %674, %677 : vector<8x512xf32>
    %679 = vector.extract_strided_slice %678 {offsets = [0, 0], sizes = [8, 128], strides = [1, 1]} : vector<8x512xf32> to vector<8x128xf32>
    %680 = arith.negf %679 : vector<8x128xf32>
    %681 = math.exp %680 : vector<8x128xf32>
    %cst_301 = arith.constant 1.000000e+00 : f32
    %682 = vector.broadcast %cst_301 : f32 to vector<8x128xf32>
    %683 = arith.addf %682, %681 : vector<8x128xf32>
    %684 = arith.divf %682, %683 : vector<8x128xf32>
    %685 = vector.extract_strided_slice %678 {offsets = [0, 128], sizes = [8, 128], strides = [1, 1]} : vector<8x512xf32> to vector<8x128xf32>
    %686 = arith.negf %685 : vector<8x128xf32>
    %687 = math.exp %686 : vector<8x128xf32>
    %cst_302 = arith.constant 1.000000e+00 : f32
    %688 = vector.broadcast %cst_302 : f32 to vector<8x128xf32>
    %689 = arith.addf %688, %687 : vector<8x128xf32>
    %690 = arith.divf %688, %689 : vector<8x128xf32>
    %691 = vector.extract_strided_slice %678 {offsets = [0, 256], sizes = [8, 128], strides = [1, 1]} : vector<8x512xf32> to vector<8x128xf32>
    %692 = math.tanh %691 : vector<8x128xf32>
    %693 = vector.extract_strided_slice %678 {offsets = [0, 384], sizes = [8, 128], strides = [1, 1]} : vector<8x512xf32> to vector<8x128xf32>
    %694 = arith.negf %693 : vector<8x128xf32>
    %695 = math.exp %694 : vector<8x128xf32>
    %cst_303 = arith.constant 1.000000e+00 : f32
    %696 = vector.broadcast %cst_303 : f32 to vector<8x128xf32>
    %697 = arith.addf %696, %695 : vector<8x128xf32>
    %698 = arith.divf %696, %697 : vector<8x128xf32>
    %c0_304 = arith.constant 0 : index
    %c0_305 = arith.constant 0 : index
    %699 = vector.load %arg10[%c0_304, %c0_305] : memref<8x128xf32, #tpu.memory_space<vmem>>, vector<8x128xf32>
    %700 = arith.mulf %690, %699 : vector<8x128xf32>
    %701 = arith.mulf %684, %692 : vector<8x128xf32>
    %702 = arith.addf %700, %701 : vector<8x128xf32>
    %703 = math.tanh %702 : vector<8x128xf32>
    %704 = arith.mulf %698, %703 : vector<8x128xf32>
    %c0_306 = arith.constant 0 : index
    %c0_307 = arith.constant 0 : index
    %705 = vector.load %arg10[%c0_306, %c0_307] : memref<8x128xf32, #tpu.memory_space<vmem>>, vector<8x128xf32>
    tpu.vector_store %arg10[%c0_306, %c0_307], %702 {strides = array<i32>} : memref<8x128xf32, #tpu.memory_space<vmem>>, vector<8x128xf32>,
    %c0_308 = arith.constant 0 : index
    %c0_309 = arith.constant 0 : index
    %706 = vector.load %arg9[%c0_308, %c0_309] : memref<8x128xf32, #tpu.memory_space<vmem>>, vector<8x128xf32>
    tpu.vector_store %arg9[%c0_308, %c0_309], %704 {strides = array<i32>} : memref<8x128xf32, #tpu.memory_space<vmem>>, vector<8x128xf32>,
    %707 = arith.index_cast %672 : i32 to index
    %c0_310 = arith.constant 0 : index
    %708 = vector.load %arg7[%707, %c0_310] : memref<72x128xf32, #tpu.memory_space<vmem>>, vector<8x128xf32>
    tpu.vector_store %arg7[%707, %c0_310], %704 {strides = array<i32>} : memref<72x128xf32, #tpu.memory_space<vmem>>, vector<8x128xf32>,
    %c9_i32_311 = arith.constant 9 : i32
    return
  }
}

</mosaic_0001>

<llo_original>
// kernel: tpu_custom_call.1
$region0: #{tpu_custom_call.1}
  #allocation0 [shape = 'u32[]', space=smem, size = 0x4, offset = 0x4, fixed_abs, tag = 'smem constant byte address 0x4 - core index']
  #allocation1 [shape = 'u32[144,128]{1,0:T(1,128)}', space=vmem, size = 0x12000, scoped, tag = 'internal scratch']
  #allocation2 [shape = 'f32[72,512]{1,0:T(8,128)}', space=vmem, size = 0x24000, scoped, tag = 'scratch operand']
  #allocation3 [shape = 'f32[8,128]{1,0:T(8,128)}', space=vmem, size = 0x1000, scoped, tag = 'scratch operand']
  #allocation4 [shape = 'f32[8,128]{1,0:T(8,128)}', space=vmem, size = 0x1000, scoped, tag = 'scratch operand']
  %s0 = inlined_call_operand.hbm [shape: bf16[72,128], index: 0, kind: input, shape index: {}]
  %s1 = inlined_call_operand.hbm [shape: bf16[128,512], index: 1, kind: input, shape index: {}]
  %s2 = inlined_call_operand.hbm [shape: bf16[128,512], index: 2, kind: input, shape index: {}]
  %s3 = inlined_call_operand.vmem [shape: f32[1,512], index: 3, kind: input, shape index: {}]
  %s4 = inlined_call_operand.hbm [shape: bf16[128,512], index: 4, kind: input, shape index: {}]
  %s5 = inlined_call_operand.hbm [shape: bf16[128,512], index: 5, kind: input, shape index: {}]
  %s6 = inlined_call_operand.vmem [shape: f32[1,512], index: 6, kind: input, shape index: {}]
  %s7 = inlined_call_operand.hbm [shape: f32[72,128], index: 7, kind: output, shape index: {}]
  %s8 = sld [smem:[#allocation0]]
  $region58: #{tpu_custom_call.1} parent=0
    _
  %s10 = ssub.s32 1, %s8
  %s11 = scalar_select 0, %s10, %s8
  $region1: #{tpu_custom_call.1} parent=0
    #allocation5 [shape = 'u8[18432]{0}', space=vmem, size = 0x4800, scoped, tag = 'input window, operand 0, single buffered']
    #allocation6 [shape = 's32[1]{0}', space=sflag, size = 0x4, scoped, tag = 'scoped memory for tpu_custom_call.1']
    #allocation7 [shape = 's32[1]{0}', space=sflag, size = 0x4, scoped, tag = 'scoped memory for tpu_custom_call.1']
    #allocation8 [shape = 'u8[131072]{0}', space=vmem, size = 0x20000, scoped, tag = 'input window, operand 1, single buffered']
    #allocation9 [shape = 's32[1]{0}', space=sflag, size = 0x4, scoped, tag = 'scoped memory for tpu_custom_call.1']
    #allocation10 [shape = 'u8[131072]{0}', space=vmem, size = 0x20000, scoped, tag = 'input window, operand 2, single buffered']
    #allocation11 [shape = 'u8[131072]{0}', space=vmem, size = 0x20000, scoped, tag = 'input window, operand 4, single buffered']
    #allocation12 [shape = 's32[1]{0}', space=sflag, size = 0x4, scoped, tag = 'scoped memory for tpu_custom_call.1']
    #allocation13 [shape = 'u8[131072]{0}', space=vmem, size = 0x20000, scoped, tag = 'input window, operand 5, single buffered']
    #allocation14 [shape = 'u8[36864]{0}', space=vmem, size = 0x9000, scoped, tag = 'output window, operand 0, single buffered']
    %12 = vsyncpa [#allocation6], 0
    %13 = vsyncpa [#allocation9], 0
    %14 = vsyncpa [#allocation12], 0
    %15 = vsyncpa [#allocation7], 0
    // Predicated region
    $region2: #{tpu_custom_call.1} parent=1 // pred_check
      _
    $region3: #{tpu_custom_call.1} parent=1 // pred_check_branch
      %17 = sbr.rel (0) target = $region5
    $region4: #{tpu_custom_call.1} parent=1 // pred_region
      %s19 = ssub.s32 576, 576
      %20 = vsyncadd [#allocation6], %s19
      %s21 = sshll.u32 [#allocation5], 4
      %s22 = int_to_ptr.vmem [resolvable:$true] %s21
      %27 = dma.hbm_to_vmem [thread:$0]  %s0, 576, %s22, [#allocation6], 64, 64, 4
    $region5: #{tpu_custom_call.1} parent=1 // pred_fallthru
      _
    // Predicated region
    $region6: #{tpu_custom_call.1} parent=1 // pred_check
      _
    $region7: #{tpu_custom_call.1} parent=1 // pred_check_branch
      %29 = sbr.rel (0) target = $region9
    $region8: #{tpu_custom_call.1} parent=1 // pred_region
      %s31 = ssub.s32 4096, 4096
      %32 = vsyncadd [#allocation9], %s31
      %s33 = sshll.u32 [#allocation8], 4
      %s34 = int_to_ptr.vmem [resolvable:$true] %s33
      %39 = dma.hbm_to_vmem [thread:$0]  %s1, 4096, %s34, [#allocation9], 256, 256, 16
    $region9: #{tpu_custom_call.1} parent=1 // pred_fallthru
      _
    // Predicated region
    $region10: #{tpu_custom_call.1} parent=1 // pred_check
      _
    $region11: #{tpu_custom_call.1} parent=1 // pred_check_branch
      %41 = sbr.rel (0) target = $region13
    $region12: #{tpu_custom_call.1} parent=1 // pred_region
      %s43 = ssub.s32 4096, 4096
      %44 = vsyncadd [#allocation9], %s43
      %s45 = sshll.u32 [#allocation10], 4
      %s46 = int_to_ptr.vmem [resolvable:$true] %s45
      %51 = dma.hbm_to_vmem [thread:$0]  %s2, 4096, %s46, [#allocation9], 256, 256, 16
    $region13: #{tpu_custom_call.1} parent=1 // pred_fallthru
      _
    // Predicated region
    $region14: #{tpu_custom_call.1} parent=1 // pred_check
      _
    $region15: #{tpu_custom_call.1} parent=1 // pred_check_branch
      %53 = sbr.rel (0) target = $region17
    $region16: #{tpu_custom_call.1} parent=1 // pred_region
      _
    $region17: #{tpu_custom_call.1} parent=1 // pred_fallthru
      _
    // Predicated region
    $region18: #{tpu_custom_call.1} parent=1 // pred_check
      _
    $region19: #{tpu_custom_call.1} parent=1 // pred_check_branch
      %55 = sbr.rel (0) target = $region21
    $region20: #{tpu_custom_call.1} parent=1 // pred_region
      %s57 = ssub.s32 4096, 4096
      %58 = vsyncadd [#allocation12], %s57
      %s59 = sshll.u32 [#allocation11], 4
      %s60 = int_to_ptr.vmem [resolvable:$true] %s59
      %65 = dma.hbm_to_vmem [thread:$0]  %s4, 4096, %s60, [#allocation12], 256, 256, 16
    $region21: #{tpu_custom_call.1} parent=1 // pred_fallthru
      _
    // Predicated region
    $region22: #{tpu_custom_call.1} parent=1 // pred_check
      _
    $region23: #{tpu_custom_call.1} parent=1 // pred_check_branch
      %67 = sbr.rel (0) target = $region25
    $region24: #{tpu_custom_call.1} parent=1 // pred_region
      %s69 = ssub.s32 4096, 4096
      %70 = vsyncadd [#allocation12], %s69
      %s71 = sshll.u32 [#allocation13], 4
      %s72 = int_to_ptr.vmem [resolvable:$true] %s71
      %77 = dma.hbm_to_vmem [thread:$0]  %s5, 4096, %s72, [#allocation12], 256, 256, 16
    $region25: #{tpu_custom_call.1} parent=1 // pred_fallthru
      _
    // Predicated region
    $region26: #{tpu_custom_call.1} parent=1 // pred_check
      _
    $region27: #{tpu_custom_call.1} parent=1 // pred_check_branch
      %79 = sbr.rel (0) target = $region29
    $region28: #{tpu_custom_call.1} parent=1 // pred_region
      _
    $region29: #{tpu_custom_call.1} parent=1 // pred_fallthru
      _
    // Predicated region
    $region30: #{tpu_custom_call.1} parent=1 // pred_check
      _
    $region31: #{tpu_custom_call.1} parent=1 // pred_check_branch
      %81 = sbr.rel (0) target = $region33
    $region32: #{tpu_custom_call.1} parent=1 // pred_region
      %82 = dma.done [#allocation6], 576
    $region33: #{tpu_custom_call.1} parent=1 // pred_fallthru
      _
    // Predicated region
    $region34: #{tpu_custom_call.1} parent=1 // pred_check
      _
    $region35: #{tpu_custom_call.1} parent=1 // pred_check_branch
      %84 = sbr.rel (0) target = $region37
    $region36: #{tpu_custom_call.1} parent=1 // pred_region
      %85 = dma.done [#allocation9], 4096
    $region37: #{tpu_custom_call.1} parent=1 // pred_fallthru
      _
    // Predicated region
    $region38: #{tpu_custom_call.1} parent=1 // pred_check
      _
    $region39: #{tpu_custom_call.1} parent=1 // pred_check_branch
      %87 = sbr.rel (0) target = $region41
    $region40: #{tpu_custom_call.1} parent=1 // pred_region
      %88 = dma.done [#allocation9], 4096
    $region41: #{tpu_custom_call.1} parent=1 // pred_fallthru
      _
    // Predicated region
    $region42: #{tpu_custom_call.1} parent=1 // pred_check
      _
    $region43: #{tpu_custom_call.1} parent=1 // pred_check_branch
      %90 = sbr.rel (0) target = $region45
    $region44: #{tpu_custom_call.1} parent=1 // pred_region
      %91 = dma.done [#allocation12], 4096
    $region45: #{tpu_custom_call.1} parent=1 // pred_fallthru
      _
    // Predicated region
    $region46: #{tpu_custom_call.1} parent=1 // pred_check
      _
    $region47: #{tpu_custom_call.1} parent=1 // pred_check_branch
      %93 = sbr.rel (0) target = $region49
    $region48: #{tpu_custom_call.1} parent=1 // pred_region
      %94 = dma.done [#allocation12], 4096
    $region49: #{tpu_custom_call.1} parent=1 // pred_fallthru
      _
    %v96 = vld [vmem:[#allocation8] sm:$0xff]
    %v97 = vld [vmem:[#allocation8 + $0x8] sm:$0xff]
    %v98 = vld [vmem:[#allocation8 + $0x10] sm:$0xff]
    %v99 = vld [vmem:[#allocation8 + $0x18] sm:$0xff]
    %v100 = vld [vmem:[#allocation8 + $0x20] sm:$0xff]
    %v101 = vld [vmem:[#allocation8 + $0x28] sm:$0xff]
    %v102 = vld [vmem:[#allocation8 + $0x30] sm:$0xff]
    %v103 = vld [vmem:[#allocation8 + $0x38] sm:$0xff]
    %v104 = vld [vmem:[#allocation8 + $0x40] sm:$0xff]
    %v105 = vld [vmem:[#allocation8 + $0x48] sm:$0xff]
    %v106 = vld [vmem:[#allocation8 + $0x50] sm:$0xff]
    %v107 = vld [vmem:[#allocation8 + $0x58] sm:$0xff]
    %v108 = vld [vmem:[#allocation8 + $0x60] sm:$0xff]
    %v109 = vld [vmem:[#allocation8 + $0x68] sm:$0xff]
    %v110 = vld [vmem:[#allocation8 + $0x70] sm:$0xff]
    %v111 = vld [vmem:[#allocation8 + $0x78] sm:$0xff]
    %v112 = vld [vmem:[#allocation8 + $0x80] sm:$0xff]
    %v113 = vld [vmem:[#allocation8 + $0x88] sm:$0xff]
    %v114 = vld [vmem:[#allocation8 + $0x90] sm:$0xff]
    %v115 = vld [vmem:[#allocation8 + $0x98] sm:$0xff]
    %v116 = vld [vmem:[#allocation8 + $0xa0] sm:$0xff]
    %v117 = vld [vmem:[#allocation8 + $0xa8] sm:$0xff]
    %v118 = vld [vmem:[#allocation8 + $0xb0] sm:$0xff]
    %v119 = vld [vmem:[#allocation8 + $0xb8] sm:$0xff]
    %v120 = vld [vmem:[#allocation8 + $0xc0] sm:$0xff]
    %v121 = vld [vmem:[#allocation8 + $0xc8] sm:$0xff]
    %v122 = vld [vmem:[#allocation8 + $0xd0] sm:$0xff]
    %v123 = vld [vmem:[#allocation8 + $0xd8] sm:$0xff]
    %v124 = vld [vmem:[#allocation8 + $0xe0] sm:$0xff]
    %v125 = vld [vmem:[#allocation8 + $0xe8] sm:$0xff]
    %v126 = vld [vmem:[#allocation8 + $0xf0] sm:$0xff]
    %v127 = vld [vmem:[#allocation8 + $0xf8] sm:$0xff]
    %v128 = vld [vmem:[#allocation10] sm:$0xff]
    %v129 = vld [vmem:[#allocation10 + $0x8] sm:$0xff]
    %v130 = vld [vmem:[#allocation10 + $0x10] sm:$0xff]
    %v131 = vld [vmem:[#allocation10 + $0x18] sm:$0xff]
    %v132 = vld [vmem:[#allocation10 + $0x20] sm:$0xff]
    %v133 = vld [vmem:[#allocation10 + $0x28] sm:$0xff]
    %v134 = vld [vmem:[#allocation10 + $0x30] sm:$0xff]
    %v135 = vld [vmem:[#allocation10 + $0x38] sm:$0xff]
    %v136 = vld [vmem:[#allocation10 + $0x40] sm:$0xff]
    %v137 = vld [vmem:[#allocation10 + $0x48] sm:$0xff]
    %v138 = vld [vmem:[#allocation10 + $0x50] sm:$0xff]
    %v139 = vld [vmem:[#allocation10 + $0x58] sm:$0xff]
    %v140 = vld [vmem:[#allocation10 + $0x60] sm:$0xff]
    %v141 = vld [vmem:[#allocation10 + $0x68] sm:$0xff]
    %v142 = vld [vmem:[#allocation10 + $0x70] sm:$0xff]
    %v143 = vld [vmem:[#allocation10 + $0x78] sm:$0xff]
    %v144 = vld [vmem:[#allocation10 + $0x80] sm:$0xff]
    %v145 = vld [vmem:[#allocation10 + $0x88] sm:$0xff]
    %v146 = vld [vmem:[#allocation10 + $0x90] sm:$0xff]
    %v147 = vld [vmem:[#allocation10 + $0x98] sm:$0xff]
    %v148 = vld [vmem:[#allocation10 + $0xa0] sm:$0xff]
    %v149 = vld [vmem:[#allocation10 + $0xa8] sm:$0xff]
    %v150 = vld [vmem:[#allocation10 + $0xb0] sm:$0xff]
    %v151 = vld [vmem:[#allocation10 + $0xb8] sm:$0xff]
    %v152 = vld [vmem:[#allocation10 + $0xc0] sm:$0xff]
    %v153 = vld [vmem:[#allocation10 + $0xc8] sm:$0xff]
    %v154 = vld [vmem:[#allocation10 + $0xd0] sm:$0xff]
    %v155 = vld [vmem:[#allocation10 + $0xd8] sm:$0xff]
    %v156 = vld [vmem:[#allocation10 + $0xe0] sm:$0xff]
    %v157 = vld [vmem:[#allocation10 + $0xe8] sm:$0xff]
    %v158 = vld [vmem:[#allocation10 + $0xf0] sm:$0xff]
    %v159 = vld [vmem:[#allocation10 + $0xf8] sm:$0xff]
    %v160 = vld [vmem:[%s3] sm:$0xf]
    %v161 = vld [vmem:[#allocation5] sm:$0xf]
    %v162 = vld [vmem:[#allocation5 + $0x4] sm:$0xf]
    %v163 = vld [vmem:[#allocation5 + $0x8] sm:$0xf]
    %v164 = vld [vmem:[#allocation5 + $0xc] sm:$0xf]
    %v165 = vld [vmem:[#allocation5 + $0x10] sm:$0xf]
    %v166 = vld [vmem:[#allocation5 + $0x14] sm:$0xf]
    %v167 = vld [vmem:[#allocation5 + $0x18] sm:$0xf]
    %v168 = vld [vmem:[#allocation5 + $0x1c] sm:$0xf]
    %v169 = vld [vmem:[#allocation5 + $0x20] sm:$0xf]
    %v171 = vlaneseq
    %v172 = vshrl.u32 %v171, 7
    %v173 = vsub.s32 0, %v172
    %v174 = vrot.slane %v160, %v173
    %v175 = vlaneseq
    %v176 = vshrl.u32 %v175, 7
    %v177 = vsub.s32 1, %v176
    %v178 = vrot.slane %v160, %v177
    %v179 = vlaneseq
    %v180 = vshrl.u32 %v179, 7
    %v181 = vsub.s32 2, %v180
    %v182 = vrot.slane %v160, %v181
    %v183 = vlaneseq
    %v184 = vshrl.u32 %v183, 7
    %v185 = vsub.s32 3, %v184
    %v186 = vrot.slane %v160, %v185
    %v200 = vunpack.c.l.b16 %v161
    %v201 = vunpack.c.l.b16 %v162
    %v202 = vunpack.c.l.b16 %v163
    %v203 = vunpack.c.l.b16 %v164
    %v204 = vunpack.c.l.b16 %v165
    %v205 = vunpack.c.l.b16 %v166
    %v206 = vunpack.c.l.b16 %v167
    %v207 = vunpack.c.l.b16 %v168
    %v208 = vunpack.c.l.b16 %v169
    %v209 = vpack.c.b16 %v201, %v200
    %v210 = vpack.c.b16 %v203, %v202
    %v211 = vpack.c.b16 %v205, %v204
    %v212 = vpack.c.b16 %v207, %v206
    %v213 = vpack.c.b16 %v208, %v208
    %v251 = vunpack.c.l.b16 %v96
    %v252 = vunpack.c.h.b16 %v96
    %v253 = vunpack.c.l.b16 %v97
    %v254 = vunpack.c.h.b16 %v97
    %v255 = vunpack.c.l.b16 %v98
    %v256 = vunpack.c.h.b16 %v98
    %v257 = vunpack.c.l.b16 %v99
    %v258 = vunpack.c.h.b16 %v99
    %v259 = vunpack.c.l.b16 %v100
    %v260 = vunpack.c.h.b16 %v100
    %v261 = vunpack.c.l.b16 %v101
    %v262 = vunpack.c.h.b16 %v101
    %v263 = vunpack.c.l.b16 %v102
    %v264 = vunpack.c.h.b16 %v102
    %v265 = vunpack.c.l.b16 %v103
    %v266 = vunpack.c.h.b16 %v103
    %v267 = vunpack.c.l.b16 %v104
    %v268 = vunpack.c.h.b16 %v104
    %v269 = vunpack.c.l.b16 %v105
    %v270 = vunpack.c.h.b16 %v105
    %v271 = vunpack.c.l.b16 %v106
    %v272 = vunpack.c.h.b16 %v106
    %v273 = vunpack.c.l.b16 %v107
    %v274 = vunpack.c.h.b16 %v107
    %v275 = vunpack.c.l.b16 %v108
    %v276 = vunpack.c.h.b16 %v108
    %v277 = vunpack.c.l.b16 %v109
    %v278 = vunpack.c.h.b16 %v109
    %v279 = vunpack.c.l.b16 %v110
    %v280 = vunpack.c.h.b16 %v110
    %v281 = vunpack.c.l.b16 %v111
    %v282 = vunpack.c.h.b16 %v111
    %v283 = vunpack.c.l.b16 %v112
    %v284 = vunpack.c.h.b16 %v112
    %v285 = vunpack.c.l.b16 %v113
    %v286 = vunpack.c.h.b16 %v113
    %v287 = vunpack.c.l.b16 %v114
    %v288 = vunpack.c.h.b16 %v114
    %v289 = vunpack.c.l.b16 %v115
    %v290 = vunpack.c.h.b16 %v115
    %v291 = vunpack.c.l.b16 %v116
    %v292 = vunpack.c.h.b16 %v116
    %v293 = vunpack.c.l.b16 %v117
    %v294 = vunpack.c.h.b16 %v117
    %v295 = vunpack.c.l.b16 %v118
    %v296 = vunpack.c.h.b16 %v118
    %v297 = vunpack.c.l.b16 %v119
    %v298 = vunpack.c.h.b16 %v119
    %v299 = vunpack.c.l.b16 %v120
    %v300 = vunpack.c.h.b16 %v120
    %v301 = vunpack.c.l.b16 %v121
    %v302 = vunpack.c.h.b16 %v121
    %v303 = vunpack.c.l.b16 %v122
    %v304 = vunpack.c.h.b16 %v122
    %v305 = vunpack.c.l.b16 %v123
    %v306 = vunpack.c.h.b16 %v123
    %v307 = vunpack.c.l.b16 %v124
    %v308 = vunpack.c.h.b16 %v124
    %v309 = vunpack.c.l.b16 %v125
    %v310 = vunpack.c.h.b16 %v125
    %v311 = vunpack.c.l.b16 %v126
    %v312 = vunpack.c.h.b16 %v126
    %v313 = vunpack.c.l.b16 %v127
    %v314 = vunpack.c.h.b16 %v127
    %v315 = vpack.c.b16 %v255, %v251
    %v316 = vpack.c.b16 %v256, %v252
    %v317 = vpack.c.b16 %v257, %v253
    %v318 = vpack.c.b16 %v258, %v254
    %v319 = vpack.c.b16 %v263, %v259
    %v320 = vpack.c.b16 %v264, %v260
    %v321 = vpack.c.b16 %v265, %v261
    %v322 = vpack.c.b16 %v266, %v262
    %v323 = vpack.c.b16 %v271, %v267
    %v324 = vpack.c.b16 %v272, %v268
    %v325 = vpack.c.b16 %v273, %v269
    %v326 = vpack.c.b16 %v274, %v270
    %v327 = vpack.c.b16 %v279, %v275
    %v328 = vpack.c.b16 %v280, %v276
    %v329 = vpack.c.b16 %v281, %v277
    %v330 = vpack.c.b16 %v282, %v278
    %v331 = vpack.c.b16 %v287, %v283
    %v332 = vpack.c.b16 %v288, %v284
    %v333 = vpack.c.b16 %v289, %v285
    %v334 = vpack.c.b16 %v290, %v286
    %v335 = vpack.c.b16 %v295, %v291
    %v336 = vpack.c.b16 %v296, %v292
    %v337 = vpack.c.b16 %v297, %v293
    %v338 = vpack.c.b16 %v298, %v294
    %v339 = vpack.c.b16 %v303, %v299
    %v340 = vpack.c.b16 %v304, %v300
    %v341 = vpack.c.b16 %v305, %v301
    %v342 = vpack.c.b16 %v306, %v302
    %v343 = vpack.c.b16 %v311, %v307
    %v344 = vpack.c.b16 %v312, %v308
    %v345 = vpack.c.b16 %v313, %v309
    %v346 = vpack.c.b16 %v314, %v310
    %379 = vmatprep.subr.bf16.mxu0 %v316
    %380 = vmatpush1.bf16.msra.mxu0 %v315
    %381 = vmatprep.subr.bf16.mxu0 %v320
    %382 = vmatpush1.bf16.msra.mxu0 %v319
    %383 = vmatprep.subr.bf16.mxu0 %v324
    %384 = vmatpush1.bf16.msra.mxu0 %v323
    %385 = vmatprep.subr.bf16.mxu0 %v328
    %386 = vmatpush1.bf16.msra.mxu0 %v327
    %387 = vmatprep.subr.bf16.mxu0 %v332
    %388 = vmatpush1.bf16.msra.mxu0 %v331
    %389 = vmatprep.subr.bf16.mxu0 %v336
    %390 = vmatpush1.bf16.msra.mxu0 %v335
    %391 = vmatprep.subr.bf16.mxu0 %v340
    %392 = vmatpush1.bf16.msra.mxu0 %v339
    %393 = vmatprep.subr.bf16.mxu0 %v344
    %394 = vmatpush1.bf16.msra.mxu0 %v343
    %395 = vmatprep.subr.bf16.mxu0 0
    %396 = vmatpush1.bf16.msra.mxu0 0
    %397 = vmatprep.subr.bf16.mxu0 0
    %398 = vmatpush1.bf16.msra.mxu0 0
    %399 = vmatprep.subr.bf16.mxu0 0
    %400 = vmatpush1.bf16.msra.mxu0 0
    %401 = vmatprep.subr.bf16.mxu0 0
    %402 = vmatpush1.bf16.msra.mxu0 0
    %403 = vmatprep.subr.bf16.mxu0 0
    %404 = vmatpush1.bf16.msra.mxu0 0
    %405 = vmatprep.subr.bf16.mxu0 0
    %406 = vmatpush1.bf16.msra.mxu0 0
    %407 = vmatprep.subr.bf16.mxu0 0
    %408 = vmatpush1.bf16.msra.mxu0 0
    %409 = vmatprep.subr.bf16.mxu0 0
    %410 = vmatpush1.bf16.msra.mxu0 0
    %411 = vmatprep.mubr.bf16.mxu0 0
    %412 = vmatmul.mubr.bf16.gmra.mrb[0].mxu0 %v209
    %v413 = vpop.f32.mrb[0].mxu0
    %v414 = vadd.f32 %v174, %v413
    %v415 = vpop.f32.mrb[0].mxu0
    %v416 = vadd.f32 %v178, %v415
    %v417 = vpop.f32.mrb[0].mxu0
    %v418 = vadd.f32 %v174, %v417
    %v419 = vpop.f32.mrb[0].mxu0
    %v420 = vadd.f32 %v178, %v419
    %421 = vmatprep.mubr.bf16.mxu0 0
    %422 = vmatmul.mubr.bf16.gmra.mrb[0].mxu0 %v210
    %v423 = vpop.f32.mrb[0].mxu0
    %v424 = vadd.f32 %v174, %v423
    %v425 = vpop.f32.mrb[0].mxu0
    %v426 = vadd.f32 %v178, %v425
    %v427 = vpop.f32.mrb[0].mxu0
    %v428 = vadd.f32 %v174, %v427
    %v429 = vpop.f32.mrb[0].mxu0
    %v430 = vadd.f32 %v178, %v429
    %431 = vmatprep.mubr.bf16.mxu0 0
    %432 = vmatmul.mubr.bf16.gmra.mrb[0].mxu0 %v211
    %v433 = vpop.f32.mrb[0].mxu0
    %v434 = vadd.f32 %v174, %v433
    %v435 = vpop.f32.mrb[0].mxu0
    %v436 = vadd.f32 %v178, %v435
    %v437 = vpop.f32.mrb[0].mxu0
    %v438 = vadd.f32 %v174, %v437
    %v439 = vpop.f32.mrb[0].mxu0
    %v440 = vadd.f32 %v178, %v439
    %441 = vmatprep.mubr.bf16.mxu0 0
    %442 = vmatmul.mubr.bf16.gmra.mrb[0].mxu0 %v212
    %v443 = vpop.f32.mrb[0].mxu0
    %v444 = vadd.f32 %v174, %v443
    %v445 = vpop.f32.mrb[0].mxu0
    %v446 = vadd.f32 %v178, %v445
    %v447 = vpop.f32.mrb[0].mxu0
    %v448 = vadd.f32 %v174, %v447
    %v449 = vpop.f32.mrb[0].mxu0
    %v450 = vadd.f32 %v178, %v449
    %451 = vmatprep.mubr.bf16.mxu0 0
    %452 = vmatmul.mubr.bf16.gmra.mrb[0].mxu0 %v213
    %v453 = vpop.f32.mrb[0].mxu0
    %v454 = vadd.f32 %v174, %v453
    %v455 = vpop.f32.mrb[0].mxu0
    %v456 = vadd.f32 %v178, %v455
    %v457 = vpop.f32.mrb[0].mxu0
    %v458 = vpop.f32.mrb[0].mxu0
    %459 = vdwg.mxu0
    %460 = vmatprep.subr.bf16.mxu0 %v318
    %461 = vmatpush1.bf16.msra.mxu0 %v317
    %462 = vmatprep.subr.bf16.mxu0 %v322
    %463 = vmatpush1.bf16.msra.mxu0 %v321
    %464 = vmatprep.subr.bf16.mxu0 %v326
    %465 = vmatpush1.bf16.msra.mxu0 %v325
    %466 = vmatprep.subr.bf16.mxu0 %v330
    %467 = vmatpush1.bf16.msra.mxu0 %v329
    %468 = vmatprep.subr.bf16.mxu0 %v334
    %469 = vmatpush1.bf16.msra.mxu0 %v333
    %470 = vmatprep.subr.bf16.mxu0 %v338
    %471 = vmatpush1.bf16.msra.mxu0 %v337
    %472 = vmatprep.subr.bf16.mxu0 %v342
    %473 = vmatpush1.bf16.msra.mxu0 %v341
    %474 = vmatprep.subr.bf16.mxu0 %v346
    %475 = vmatpush1.bf16.msra.mxu0 %v345
    %476 = vmatprep.subr.bf16.mxu0 0
    %477 = vmatpush1.bf16.msra.mxu0 0
    %478 = vmatprep.subr.bf16.mxu0 0
    %479 = vmatpush1.bf16.msra.mxu0 0
    %480 = vmatprep.subr.bf16.mxu0 0
    %481 = vmatpush1.bf16.msra.mxu0 0
    %482 = vmatprep.subr.bf16.mxu0 0
    %483 = vmatpush1.bf16.msra.mxu0 0
    %484 = vmatprep.subr.bf16.mxu0 0
    %485 = vmatpush1.bf16.msra.mxu0 0
    %486 = vmatprep.subr.bf16.mxu0 0
    %487 = vmatpush1.bf16.msra.mxu0 0
    %488 = vmatprep.subr.bf16.mxu0 0
    %489 = vmatpush1.bf16.msra.mxu0 0
    %490 = vmatprep.subr.bf16.mxu0 0
    %491 = vmatpush1.bf16.msra.mxu0 0
    %492 = vmatprep.mubr.bf16.mxu0 0
    %493 = vmatmul.mubr.bf16.gmra.mrb[0].mxu0 %v209
    %v494 = vpop.f32.mrb[0].mxu0
    %v495 = vadd.f32 %v182, %v494
    %v496 = vpop.f32.mrb[0].mxu0
    %v497 = vadd.f32 %v186, %v496
    %v498 = vpop.f32.mrb[0].mxu0
    %v499 = vadd.f32 %v182, %v498
    %v500 = vpop.f32.mrb[0].mxu0
    %v501 = vadd.f32 %v186, %v500
    %502 = vmatprep.mubr.bf16.mxu0 0
    %503 = vmatmul.mubr.bf16.gmra.mrb[0].mxu0 %v210
    %v504 = vpop.f32.mrb[0].mxu0
    %v505 = vadd.f32 %v182, %v504
    %v506 = vpop.f32.mrb[0].mxu0
    %v507 = vadd.f32 %v186, %v506
    %v508 = vpop.f32.mrb[0].mxu0
    %v509 = vadd.f32 %v182, %v508
    %v510 = vpop.f32.mrb[0].mxu0
    %v511 = vadd.f32 %v186, %v510
    %512 = vmatprep.mubr.bf16.mxu0 0
    %513 = vmatmul.mubr.bf16.gmra.mrb[0].mxu0 %v211
    %v514 = vpop.f32.mrb[0].mxu0
    %v515 = vadd.f32 %v182, %v514
    %v516 = vpop.f32.mrb[0].mxu0
    %v517 = vadd.f32 %v186, %v516
    %v518 = vpop.f32.mrb[0].mxu0
    %v519 = vadd.f32 %v182, %v518
    %v520 = vpop.f32.mrb[0].mxu0
    %v521 = vadd.f32 %v186, %v520
    %522 = vmatprep.mubr.bf16.mxu0 0
    %523 = vmatmul.mubr.bf16.gmra.mrb[0].mxu0 %v212
    %v524 = vpop.f32.mrb[0].mxu0
    %v525 = vadd.f32 %v182, %v524
    %v526 = vpop.f32.mrb[0].mxu0
    %v527 = vadd.f32 %v186, %v526
    %v528 = vpop.f32.mrb[0].mxu0
    %v529 = vadd.f32 %v182, %v528
    %v530 = vpop.f32.mrb[0].mxu0
    %v531 = vadd.f32 %v186, %v530
    %532 = vmatprep.mubr.bf16.mxu0 0
    %533 = vmatmul.mubr.bf16.gmra.mrb[0].mxu0 %v213
    %v534 = vpop.f32.mrb[0].mxu0
    %v535 = vadd.f32 %v182, %v534
    %v536 = vpop.f32.mrb[0].mxu0
    %v537 = vadd.f32 %v186, %v536
    %v538 = vpop.f32.mrb[0].mxu0
    %v539 = vpop.f32.mrb[0].mxu0
    %540 = vdwg.mxu0
    %541 = vst [vmem:[#allocation2] sm:$0xff] %v414
    %542 = vst [vmem:[#allocation2 + $0x8] sm:$0xff] %v416
    %543 = vst [vmem:[#allocation2 + $0x10] sm:$0xff] %v495
    %544 = vst [vmem:[#allocation2 + $0x18] sm:$0xff] %v497
    %545 = vst [vmem:[#allocation2 + $0x20] sm:$0xff] %v418
    %546 = vst [vmem:[#allocation2 + $0x28] sm:$0xff] %v420
    %547 = vst [vmem:[#allocation2 + $0x30] sm:$0xff] %v499
    %548 = vst [vmem:[#allocation2 + $0x38] sm:$0xff] %v501
    %549 = vst [vmem:[#allocation2 + $0x40] sm:$0xff] %v424
    %550 = vst [vmem:[#allocation2 + $0x48] sm:$0xff] %v426
    %551 = vst [vmem:[#allocation2 + $0x50] sm:$0xff] %v505
    %552 = vst [vmem:[#allocation2 + $0x58] sm:$0xff] %v507
    %553 = vst [vmem:[#allocation2 + $0x60] sm:$0xff] %v428
    %554 = vst [vmem:[#allocation2 + $0x68] sm:$0xff] %v430
    %555 = vst [vmem:[#allocation2 + $0x70] sm:$0xff] %v509
    %556 = vst [vmem:[#allocation2 + $0x78] sm:$0xff] %v511
    %557 = vst [vmem:[#allocation2 + $0x80] sm:$0xff] %v434
    %558 = vst [vmem:[#allocation2 + $0x88] sm:$0xff] %v436
    %559 = vst [vmem:[#allocation2 + $0x90] sm:$0xff] %v515
    %560 = vst [vmem:[#allocation2 + $0x98] sm:$0xff] %v517
    %561 = vst [vmem:[#allocation2 + $0xa0] sm:$0xff] %v438
    %562 = vst [vmem:[#allocation2 + $0xa8] sm:$0xff] %v440
    %563 = vst [vmem:[#allocation2 + $0xb0] sm:$0xff] %v519
    %564 = vst [vmem:[#allocation2 + $0xb8] sm:$0xff] %v521
    %565 = vst [vmem:[#allocation2 + $0xc0] sm:$0xff] %v444
    %566 = vst [vmem:[#allocation2 + $0xc8] sm:$0xff] %v446
    %567 = vst [vmem:[#allocation2 + $0xd0] sm:$0xff] %v525
    %568 = vst [vmem:[#allocation2 + $0xd8] sm:$0xff] %v527
    %569 = vst [vmem:[#allocation2 + $0xe0] sm:$0xff] %v448
    %570 = vst [vmem:[#allocation2 + $0xe8] sm:$0xff] %v450
    %571 = vst [vmem:[#allocation2 + $0xf0] sm:$0xff] %v529
    %572 = vst [vmem:[#allocation2 + $0xf8] sm:$0xff] %v531
    %573 = vst [vmem:[#allocation2 + $0x100] sm:$0xff] %v454
    %574 = vst [vmem:[#allocation2 + $0x108] sm:$0xff] %v456
    %575 = vst [vmem:[#allocation2 + $0x110] sm:$0xff] %v535
    %576 = vst [vmem:[#allocation2 + $0x118] sm:$0xff] %v537
    %577 = vst [vmem:[#allocation3] sm:$0xff] 0.0
    %578 = vst [vmem:[#allocation4] sm:$0xff] 0.0
    %s579 = smul.u32 0, 4
    %s580 = smul.addr %s579, 8
    %s581 = scalar_lea.vmem [#allocation2], %s580
    %v582 = vld [vmem:[%s581] sm:$0xff]
    %v583 = vld [vmem:[%s581 + $0x8] sm:$0xff]
    %v584 = vld [vmem:[%s581 + $0x10] sm:$0xff]
    %v585 = vld [vmem:[%s581 + $0x18] sm:$0xff]
    %v586 = vld [vmem:[#allocation3] sm:$0xff]
    %v587 = vpack.c.bf16 %v586, %v586
    %v620 = vunpack.c.l.b16 %v128
    %v621 = vunpack.c.h.b16 %v128
    %v622 = vunpack.c.l.b16 %v129
    %v623 = vunpack.c.h.b16 %v129
    %v624 = vunpack.c.l.b16 %v130
    %v625 = vunpack.c.h.b16 %v130
    %v626 = vunpack.c.l.b16 %v131
    %v627 = vunpack.c.h.b16 %v131
    %v628 = vunpack.c.l.b16 %v132
    %v629 = vunpack.c.h.b16 %v132
    %v630 = vunpack.c.l.b16 %v133
    %v631 = vunpack.c.h.b16 %v133
    %v632 = vunpack.c.l.b16 %v134
    %v633 = vunpack.c.h.b16 %v134
    %v634 = vunpack.c.l.b16 %v135
    %v635 = vunpack.c.h.b16 %v135
    %v636 = vunpack.c.l.b16 %v136
    %v637 = vunpack.c.h.b16 %v136
    %v638 = vunpack.c.l.b16 %v137
    %v639 = vunpack.c.h.b16 %v137
    %v640 = vunpack.c.l.b16 %v138
    %v641 = vunpack.c.h.b16 %v138
    %v642 = vunpack.c.l.b16 %v139
    %v643 = vunpack.c.h.b16 %v139
    %v644 = vunpack.c.l.b16 %v140
    %v645 = vunpack.c.h.b16 %v140
    %v646 = vunpack.c.l.b16 %v141
    %v647 = vunpack.c.h.b16 %v141
    %v648 = vunpack.c.l.b16 %v142
    %v649 = vunpack.c.h.b16 %v142
    %v650 = vunpack.c.l.b16 %v143
    %v651 = vunpack.c.h.b16 %v143
    %v652 = vunpack.c.l.b16 %v144
    %v653 = vunpack.c.h.b16 %v144
    %v654 = vunpack.c.l.b16 %v145
    %v655 = vunpack.c.h.b16 %v145
    %v656 = vunpack.c.l.b16 %v146
    %v657 = vunpack.c.h.b16 %v146
    %v658 = vunpack.c.l.b16 %v147
    %v659 = vunpack.c.h.b16 %v147
    %v660 = vunpack.c.l.b16 %v148
    %v661 = vunpack.c.h.b16 %v148
    %v662 = vunpack.c.l.b16 %v149
    %v663 = vunpack.c.h.b16 %v149
    %v664 = vunpack.c.l.b16 %v150
    %v665 = vunpack.c.h.b16 %v150
    %v666 = vunpack.c.l.b16 %v151
    %v667 = vunpack.c.h.b16 %v151
    %v668 = vunpack.c.l.b16 %v152
    %v669 = vunpack.c.h.b16 %v152
    %v670 = vunpack.c.l.b16 %v153
    %v671 = vunpack.c.h.b16 %v153
    %v672 = vunpack.c.l.b16 %v154
    %v673 = vunpack.c.h.b16 %v154
    %v674 = vunpack.c.l.b16 %v155
    %v675 = vunpack.c.h.b16 %v155
    %v676 = vunpack.c.l.b16 %v156
    %v677 = vunpack.c.h.b16 %v156
    %v678 = vunpack.c.l.b16 %v157
    %v679 = vunpack.c.h.b16 %v157
    %v680 = vunpack.c.l.b16 %v158
    %v681 = vunpack.c.h.b16 %v158
    %v682 = vunpack.c.l.b16 %v159
    %v683 = vunpack.c.h.b16 %v159
    %v684 = vpack.c.b16 %v624, %v620
    %v685 = vpack.c.b16 %v625, %v621
    %v686 = vpack.c.b16 %v626, %v622
    %v687 = vpack.c.b16 %v627, %v623
    %v688 = vpack.c.b16 %v632, %v628
    %v689 = vpack.c.b16 %v633, %v629
    %v690 = vpack.c.b16 %v634, %v630
    %v691 = vpack.c.b16 %v635, %v631
    %v692 = vpack.c.b16 %v640, %v636
    %v693 = vpack.c.b16 %v641, %v637
    %v694 = vpack.c.b16 %v642, %v638
    %v695 = vpack.c.b16 %v643, %v639
    %v696 = vpack.c.b16 %v648, %v644
    %v697 = vpack.c.b16 %v649, %v645
    %v698 = vpack.c.b16 %v650, %v646
    %v699 = vpack.c.b16 %v651, %v647
    %v700 = vpack.c.b16 %v656, %v652
    %v701 = vpack.c.b16 %v657, %v653
    %v702 = vpack.c.b16 %v658, %v654
    %v703 = vpack.c.b16 %v659, %v655
    %v704 = vpack.c.b16 %v664, %v660
    %v705 = vpack.c.b16 %v665, %v661
    %v706 = vpack.c.b16 %v666, %v662
    %v707 = vpack.c.b16 %v667, %v663
    %v708 = vpack.c.b16 %v672, %v668
    %v709 = vpack.c.b16 %v673, %v669
    %v710 = vpack.c.b16 %v674, %v670
    %v711 = vpack.c.b16 %v675, %v671
    %v712 = vpack.c.b16 %v680, %v676
    %v713 = vpack.c.b16 %v681, %v677
    %v714 = vpack.c.b16 %v682, %v678
    %v715 = vpack.c.b16 %v683, %v679
    %748 = vmatprep.subr.bf16.mxu0 %v685
    %749 = vmatpush1.bf16.msra.mxu0 %v684
    %750 = vmatprep.subr.bf16.mxu0 %v689
    %751 = vmatpush1.bf16.msra.mxu0 %v688
    %752 = vmatprep.subr.bf16.mxu0 %v693
    %753 = vmatpush1.bf16.msra.mxu0 %v692
    %754 = vmatprep.subr.bf16.mxu0 %v697
    %755 = vmatpush1.bf16.msra.mxu0 %v696
    %756 = vmatprep.subr.bf16.mxu0 %v701
    %757 = vmatpush1.bf16.msra.mxu0 %v700
    %758 = vmatprep.subr.bf16.mxu0 %v705
    %759 = vmatpush1.bf16.msra.mxu0 %v704
    %760 = vmatprep.subr.bf16.mxu0 %v709
    %761 = vmatpush1.bf16.msra.mxu0 %v708
    %762 = vmatprep.subr.bf16.mxu0 %v713
    %763 = vmatpush1.bf16.msra.mxu0 %v712
    %764 = vmatprep.subr.bf16.mxu0 0
    %765 = vmatpush1.bf16.msra.mxu0 0
    %766 = vmatprep.subr.bf16.mxu0 0
    %767 = vmatpush1.bf16.msra.mxu0 0
    %768 = vmatprep.subr.bf16.mxu0 0
    %769 = vmatpush1.bf16.msra.mxu0 0
    %770 = vmatprep.subr.bf16.mxu0 0
    %771 = vmatpush1.bf16.msra.mxu0 0
    %772 = vmatprep.subr.bf16.mxu0 0
    %773 = vmatpush1.bf16.msra.mxu0 0
    %774 = vmatprep.subr.bf16.mxu0 0
    %775 = vmatpush1.bf16.msra.mxu0 0
    %776 = vmatprep.subr.bf16.mxu0 0
    %777 = vmatpush1.bf16.msra.mxu0 0
    %778 = vmatprep.subr.bf16.mxu0 0
    %779 = vmatpush1.bf16.msra.mxu0 0
    %780 = vmatprep.mubr.bf16.mxu0 0
    %781 = vmatmul.mubr.bf16.gmra.mrb[0].mxu0 %v587
    %v782 = vpop.f32.mrb[0].mxu0
    %v783 = vadd.f32 0.0, %v782
    %v784 = vpop.f32.mrb[0].mxu0
    %v785 = vadd.f32 0.0, %v784
    %v786 = vpop.f32.mrb[0].mxu0
    %v787 = vpop.f32.mrb[0].mxu0
    %788 = vdwg.mxu0
    %789 = vmatprep.subr.bf16.mxu0 %v687
    %790 = vmatpush1.bf16.msra.mxu0 %v686
    %791 = vmatprep.subr.bf16.mxu0 %v691
    %792 = vmatpush1.bf16.msra.mxu0 %v690
    %793 = vmatprep.subr.bf16.mxu0 %v695
    %794 = vmatpush1.bf16.msra.mxu0 %v694
    %795 = vmatprep.subr.bf16.mxu0 %v699
    %796 = vmatpush1.bf16.msra.mxu0 %v698
    %797 = vmatprep.subr.bf16.mxu0 %v703
    %798 = vmatpush1.bf16.msra.mxu0 %v702
    %799 = vmatprep.subr.bf16.mxu0 %v707
    %800 = vmatpush1.bf16.msra.mxu0 %v706
    %801 = vmatprep.subr.bf16.mxu0 %v711
    %802 = vmatpush1.bf16.msra.mxu0 %v710
    %803 = vmatprep.subr.bf16.mxu0 %v715
    %804 = vmatpush1.bf16.msra.mxu0 %v714
    %805 = vmatprep.subr.bf16.mxu0 0
    %806 = vmatpush1.bf16.msra.mxu0 0
    %807 = vmatprep.subr.bf16.mxu0 0
    %808 = vmatpush1.bf16.msra.mxu0 0
    %809 = vmatprep.subr.bf16.mxu0 0
    %810 = vmatpush1.bf16.msra.mxu0 0
    %811 = vmatprep.subr.bf16.mxu0 0
    %812 = vmatpush1.bf16.msra.mxu0 0
    %813 = vmatprep.subr.bf16.mxu0 0
    %814 = vmatpush1.bf16.msra.mxu0 0
    %815 = vmatprep.subr.bf16.mxu0 0
    %816 = vmatpush1.bf16.msra.mxu0 0
    %817 = vmatprep.subr.bf16.mxu0 0
    %818 = vmatpush1.bf16.msra.mxu0 0
    %819 = vmatprep.subr.bf16.mxu0 0
    %820 = vmatpush1.bf16.msra.mxu0 0
    %821 = vmatprep.mubr.bf16.mxu0 0
    %822 = vmatmul.mubr.bf16.gmra.mrb[0].mxu0 %v587
    %v823 = vpop.f32.mrb[0].mxu0
    %v824 = vadd.f32 0.0, %v823
    %v825 = vpop.f32.mrb[0].mxu0
    %v826 = vadd.f32 0.0, %v825
    %v827 = vpop.f32.mrb[0].mxu0
    %v828 = vpop.f32.mrb[0].mxu0
    %829 = vdwg.mxu0
    %v830 = vadd.f32 %v582, %v783
    %v831 = vadd.f32 %v583, %v785
    %v832 = vadd.f32 %v584, %v824
    %v833 = vadd.f32 %v585, %v826
    %v834 = vxor.u32 %v830, 2147483648
    %v835 = vmul.f32 %v834, 1.442695
    %v836 = vpow.pop %v835
    %v837 = vadd.f32 %v836, 1.0
    %v838 = vrcp.pop %v837
    %v839 = vmul.f32 1.0, %v838
    %v840 = vxor.u32 %v831, 2147483648
    %v841 = vmul.f32 %v840, 1.442695
    %v842 = vpow.pop %v841
    %v843 = vadd.f32 %v842, 1.0
    %v844 = vrcp.pop %v843
    %v845 = vmul.f32 1.0, %v844
    %v846 = vtanh.pop %v832
    %v847 = vxor.u32 %v833, 2147483648
    %v848 = vmul.f32 %v847, 1.442695
    %v849 = vpow.pop %v848
    %v850 = vadd.f32 %v849, 1.0
    %v851 = vrcp.pop %v850
    %v852 = vmul.f32 1.0, %v851
    %v853 = vld [vmem:[#allocation4] sm:$0xff]
    %v854 = vmul.f32 %v845, %v853
    %v855 = vmul.f32 %v839, %v846
    %v856 = vadd.f32 %v854, %v855
    %v857 = vtanh.pop %v856
    %v858 = vmul.f32 %v852, %v857
    %859 = vst [vmem:[#allocation4] sm:$0xff] %v856
    %860 = vst [vmem:[#allocation3] sm:$0xff] %v858
    %861 = vst [vmem:[#allocation14] sm:$0xff] %v858
    %s862 = smul.u32 1, 4
    %s863 = smul.addr %s862, 8
    %s864 = scalar_lea.vmem [#allocation2], %s863
    %v865 = vld [vmem:[%s864] sm:$0xff]
    %v866 = vld [vmem:[%s864 + $0x8] sm:$0xff]
    %v867 = vld [vmem:[%s864 + $0x10] sm:$0xff]
    %v868 = vld [vmem:[%s864 + $0x18] sm:$0xff]
    %v869 = vld [vmem:[#allocation3] sm:$0xff]
    %v870 = vpack.c.bf16 %v869, %v869
    %871 = vmatprep.subr.bf16.mxu0 %v685
    %872 = vmatpush1.bf16.msra.mxu0 %v684
    %873 = vmatprep.subr.bf16.mxu0 %v689
    %874 = vmatpush1.bf16.msra.mxu0 %v688
    %875 = vmatprep.subr.bf16.mxu0 %v693
    %876 = vmatpush1.bf16.msra.mxu0 %v692
    %877 = vmatprep.subr.bf16.mxu0 %v697
    %878 = vmatpush1.bf16.msra.mxu0 %v696
    %879 = vmatprep.subr.bf16.mxu0 %v701
    %880 = vmatpush1.bf16.msra.mxu0 %v700
    %881 = vmatprep.subr.bf16.mxu0 %v705
    %882 = vmatpush1.bf16.msra.mxu0 %v704
    %883 = vmatprep.subr.bf16.mxu0 %v709
    %884 = vmatpush1.bf16.msra.mxu0 %v708
    %885 = vmatprep.subr.bf16.mxu0 %v713
    %886 = vmatpush1.bf16.msra.mxu0 %v712
    %887 = vmatprep.subr.bf16.mxu0 0
    %888 = vmatpush1.bf16.msra.mxu0 0
    %889 = vmatprep.subr.bf16.mxu0 0
    %890 = vmatpush1.bf16.msra.mxu0 0
    %891 = vmatprep.subr.bf16.mxu0 0
    %892 = vmatpush1.bf16.msra.mxu0 0
    %893 = vmatprep.subr.bf16.mxu0 0
    %894 = vmatpush1.bf16.msra.mxu0 0
    %895 = vmatprep.subr.bf16.mxu0 0
    %896 = vmatpush1.bf16.msra.mxu0 0
    %897 = vmatprep.subr.bf16.mxu0 0
    %898 = vmatpush1.bf16.msra.mxu0 0
    %899 = vmatprep.subr.bf16.mxu0 0
    %900 = vmatpush1.bf16.msra.mxu0 0
    %901 = vmatprep.subr.bf16.mxu0 0
    %902 = vmatpush1.bf16.msra.mxu0 0
    %903 = vmatprep.mubr.bf16.mxu0 0
    %904 = vmatmul.mubr.bf16.gmra.mrb[0].mxu0 %v870
    %v905 = vpop.f32.mrb[0].mxu0
    %v906 = vadd.f32 0.0, %v905
    %v907 = vpop.f32.mrb[0].mxu0
    %v908 = vadd.f32 0.0, %v907
    %v909 = vpop.f32.mrb[0].mxu0
    %v910 = vpop.f32.mrb[0].mxu0
    %911 = vdwg.mxu0
    %912 = vmatprep.subr.bf16.mxu0 %v687
    %913 = vmatpush1.bf16.msra.mxu0 %v686
    %914 = vmatprep.subr.bf16.mxu0 %v691
    %915 = vmatpush1.bf16.msra.mxu0 %v690
    %916 = vmatprep.subr.bf16.mxu0 %v695
    %917 = vmatpush1.bf16.msra.mxu0 %v694
    %918 = vmatprep.subr.bf16.mxu0 %v699
    %919 = vmatpush1.bf16.msra.mxu0 %v698
    %920 = vmatprep.subr.bf16.mxu0 %v703
    %921 = vmatpush1.bf16.msra.mxu0 %v702
    %922 = vmatprep.subr.bf16.mxu0 %v707
    %923 = vmatpush1.bf16.msra.mxu0 %v706
    %924 = vmatprep.subr.bf16.mxu0 %v711
    %925 = vmatpush1.bf16.msra.mxu0 %v710
    %926 = vmatprep.subr.bf16.mxu0 %v715
    %927 = vmatpush1.bf16.msra.mxu0 %v714
    %928 = vmatprep.subr.bf16.mxu0 0
    %929 = vmatpush1.bf16.msra.mxu0 0
    %930 = vmatprep.subr.bf16.mxu0 0
    %931 = vmatpush1.bf16.msra.mxu0 0
    %932 = vmatprep.subr.bf16.mxu0 0
    %933 = vmatpush1.bf16.msra.mxu0 0
    %934 = vmatprep.subr.bf16.mxu0 0
    %935 = vmatpush1.bf16.msra.mxu0 0
    %936 = vmatprep.subr.bf16.mxu0 0
    %937 = vmatpush1.bf16.msra.mxu0 0
    %938 = vmatprep.subr.bf16.mxu0 0
    %939 = vmatpush1.bf16.msra.mxu0 0
    %940 = vmatprep.subr.bf16.mxu0 0
    %941 = vmatpush1.bf16.msra.mxu0 0
    %942 = vmatprep.subr.bf16.mxu0 0
    %943 = vmatpush1.bf16.msra.mxu0 0
    %944 = vmatprep.mubr.bf16.mxu0 0
    %945 = vmatmul.mubr.bf16.gmra.mrb[0].mxu0 %v870
    %v946 = vpop.f32.mrb[0].mxu0
    %v947 = vadd.f32 0.0, %v946
    %v948 = vpop.f32.mrb[0].mxu0
    %v949 = vadd.f32 0.0, %v948
    %v950 = vpop.f32.mrb[0].mxu0
    %v951 = vpop.f32.mrb[0].mxu0
    %952 = vdwg.mxu0
    %v953 = vadd.f32 %v865, %v906
    %v954 = vadd.f32 %v866, %v908
    %v955 = vadd.f32 %v867, %v947
    %v956 = vadd.f32 %v868, %v949
    %v957 = vxor.u32 %v953, 2147483648
    %v958 = vmul.f32 %v957, 1.442695
    %v959 = vpow.pop %v958
    %v960 = vadd.f32 %v959, 1.0
    %v961 = vrcp.pop %v960
    %v962 = vmul.f32 1.0, %v961
    %v963 = vxor.u32 %v954, 2147483648
    %v964 = vmul.f32 %v963, 1.442695
    %v965 = vpow.pop %v964
    %v966 = vadd.f32 %v965, 1.0
    %v967 = vrcp.pop %v966
    %v968 = vmul.f32 1.0, %v967
    %v969 = vtanh.pop %v955
    %v970 = vxor.u32 %v956, 2147483648
    %v971 = vmul.f32 %v970, 1.442695
    %v972 = vpow.pop %v971
    %v973 = vadd.f32 %v972, 1.0
    %v974 = vrcp.pop %v973
    %v975 = vmul.f32 1.0, %v974
    %v976 = vld [vmem:[#allocation4] sm:$0xff]
    %v977 = vmul.f32 %v968, %v976
    %v978 = vmul.f32 %v962, %v969
    %v979 = vadd.f32 %v977, %v978
    %v980 = vtanh.pop %v979
    %v981 = vmul.f32 %v975, %v980
    %982 = vst [vmem:[#allocation4] sm:$0xff] %v979
    %983 = vst [vmem:[#allocation3] sm:$0xff] %v981
    %s984 = scalar_lea.vmem [#allocation14], 8
    %985 = vst [vmem:[%s984] sm:$0xff] %v981
    %s986 = smul.u32 2, 4
    %s987 = smul.addr %s986, 8
    %s988 = scalar_lea.vmem [#allocation2], %s987
    %v989 = vld [vmem:[%s988] sm:$0xff]
    %v990 = vld [vmem:[%s988 + $0x8] sm:$0xff]
    %v991 = vld [vmem:[%s988 + $0x10] sm:$0xff]
    %v992 = vld [vmem:[%s988 + $0x18] sm:$0xff]
    %v993 = vld [vmem:[#allocation3] sm:$0xff]
    %v994 = vpack.c.bf16 %v993, %v993
    %995 = vmatprep.subr.bf16.mxu0 %v685
    %996 = vmatpush1.bf16.msra.mxu0 %v684
    %997 = vmatprep.subr.bf16.mxu0 %v689
    %998 = vmatpush1.bf16.msra.mxu0 %v688
    %999 = vmatprep.subr.bf16.mxu0 %v693
    %1000 = vmatpush1.bf16.msra.mxu0 %v692
    %1001 = vmatprep.subr.bf16.mxu0 %v697
    %1002 = vmatpush1.bf16.msra.mxu0 %v696
    %1003 = vmatprep.subr.bf16.mxu0 %v701
    %1004 = vmatpush1.bf16.msra.mxu0 %v700
    %1005 = vmatprep.subr.bf16.mxu0 %v705
    %1006 = vmatpush1.bf16.msra.mxu0 %v704
    %1007 = vmatprep.subr.bf16.mxu0 %v709
    %1008 = vmatpush1.bf16.msra.mxu0 %v708
    %1009 = vmatprep.subr.bf16.mxu0 %v713
    %1010 = vmatpush1.bf16.msra.mxu0 %v712
    %1011 = vmatprep.subr.bf16.mxu0 0
    %1012 = vmatpush1.bf16.msra.mxu0 0
    %1013 = vmatprep.subr.bf16.mxu0 0
    %1014 = vmatpush1.bf16.msra.mxu0 0
    %1015 = vmatprep.subr.bf16.mxu0 0
    %1016 = vmatpush1.bf16.msra.mxu0 0
    %1017 = vmatprep.subr.bf16.mxu0 0
    %1018 = vmatpush1.bf16.msra.mxu0 0
    %1019 = vmatprep.subr.bf16.mxu0 0
    %1020 = vmatpush1.bf16.msra.mxu0 0
    %1021 = vmatprep.subr.bf16.mxu0 0
    %1022 = vmatpush1.bf16.msra.mxu0 0
    %1023 = vmatprep.subr.bf16.mxu0 0
    %1024 = vmatpush1.bf16.msra.mxu0 0
    %1025 = vmatprep.subr.bf16.mxu0 0
    %1026 = vmatpush1.bf16.msra.mxu0 0
    %1027 = vmatprep.mubr.bf16.mxu0 0
    %1028 = vmatmul.mubr.bf16.gmra.mrb[0].mxu0 %v994
    %v1029 = vpop.f32.mrb[0].mxu0
    %v1030 = vadd.f32 0.0, %v1029
    %v1031 = vpop.f32.mrb[0].mxu0
    %v1032 = vadd.f32 0.0, %v1031
    %v1033 = vpop.f32.mrb[0].mxu0
    %v1034 = vpop.f32.mrb[0].mxu0
    %1035 = vdwg.mxu0
    %1036 = vmatprep.subr.bf16.mxu0 %v687
    %1037 = vmatpush1.bf16.msra.mxu0 %v686
    %1038 = vmatprep.subr.bf16.mxu0 %v691
    %1039 = vmatpush1.bf16.msra.mxu0 %v690
    %1040 = vmatprep.subr.bf16.mxu0 %v695
    %1041 = vmatpush1.bf16.msra.mxu0 %v694
    %1042 = vmatprep.subr.bf16.mxu0 %v699
    %1043 = vmatpush1.bf16.msra.mxu0 %v698
    %1044 = vmatprep.subr.bf16.mxu0 %v703
    %1045 = vmatpush1.bf16.msra.mxu0 %v702
    %1046 = vmatprep.subr.bf16.mxu0 %v707
    %1047 = vmatpush1.bf16.msra.mxu0 %v706
    %1048 = vmatprep.subr.bf16.mxu0 %v711
    %1049 = vmatpush1.bf16.msra.mxu0 %v710
    %1050 = vmatprep.subr.bf16.mxu0 %v715
    %1051 = vmatpush1.bf16.msra.mxu0 %v714
    %1052 = vmatprep.subr.bf16.mxu0 0
    %1053 = vmatpush1.bf16.msra.mxu0 0
    %1054 = vmatprep.subr.bf16.mxu0 0
    %1055 = vmatpush1.bf16.msra.mxu0 0
    %1056 = vmatprep.subr.bf16.mxu0 0
    %1057 = vmatpush1.bf16.msra.mxu0 0
    %1058 = vmatprep.subr.bf16.mxu0 0
    %1059 = vmatpush1.bf16.msra.mxu0 0
    %1060 = vmatprep.subr.bf16.mxu0 0
    %1061 = vmatpush1.bf16.msra.mxu0 0
    %1062 = vmatprep.subr.bf16.mxu0 0
    %1063 = vmatpush1.bf16.msra.mxu0 0
    %1064 = vmatprep.subr.bf16.mxu0 0
    %1065 = vmatpush1.bf16.msra.mxu0 0
    %1066 = vmatprep.subr.bf16.mxu0 0
    %1067 = vmatpush1.bf16.msra.mxu0 0
    %1068 = vmatprep.mubr.bf16.mxu0 0
    %1069 = vmatmul.mubr.bf16.gmra.mrb[0].mxu0 %v994
    %v1070 = vpop.f32.mrb[0].mxu0
    %v1071 = vadd.f32 0.0, %v1070
    %v1072 = vpop.f32.mrb[0].mxu0
    %v1073 = vadd.f32 0.0, %v1072
    %v1074 = vpop.f32.mrb[0].mxu0
    %v1075 = vpop.f32.mrb[0].mxu0
    %1076 = vdwg.mxu0
    %v1077 = vadd.f32 %v989, %v1030
    %v1078 = vadd.f32 %v990, %v1032
    %v1079 = vadd.f32 %v991, %v1071
    %v1080 = vadd.f32 %v992, %v1073
    %v1081 = vxor.u32 %v1077, 2147483648
    %v1082 = vmul.f32 %v1081, 1.442695
    %v1083 = vpow.pop %v1082
    %v1084 = vadd.f32 %v1083, 1.0
    %v1085 = vrcp.pop %v1084
    %v1086 = vmul.f32 1.0, %v1085
    %v1087 = vxor.u32 %v1078, 2147483648
    %v1088 = vmul.f32 %v1087, 1.442695
    %v1089 = vpow.pop %v1088
    %v1090 = vadd.f32 %v1089, 1.0
    %v1091 = vrcp.pop %v1090
    %v1092 = vmul.f32 1.0, %v1091
    %v1093 = vtanh.pop %v1079
    %v1094 = vxor.u32 %v1080, 2147483648
    %v1095 = vmul.f32 %v1094, 1.442695
    %v1096 = vpow.pop %v1095
    %v1097 = vadd.f32 %v1096, 1.0
    %v1098 = vrcp.pop %v1097
    %v1099 = vmul.f32 1.0, %v1098
    %v1100 = vld [vmem:[#allocation4] sm:$0xff]
    %v1101 = vmul.f32 %v1092, %v1100
    %v1102 = vmul.f32 %v1086, %v1093
    %v1103 = vadd.f32 %v1101, %v1102
    %v1104 = vtanh.pop %v1103
    %v1105 = vmul.f32 %v1099, %v1104
    %1106 = vst [vmem:[#allocation4] sm:$0xff] %v1103
    %1107 = vst [vmem:[#allocation3] sm:$0xff] %v1105
    %s1108 = scalar_lea.vmem [#allocation14], 16
    %1109 = vst [vmem:[%s1108] sm:$0xff] %v1105
    %s1110 = smul.u32 3, 4
    %s1111 = smul.addr %s1110, 8
    %s1112 = scalar_lea.vmem [#allocation2], %s1111
    %v1113 = vld [vmem:[%s1112] sm:$0xff]
    %v1114 = vld [vmem:[%s1112 + $0x8] sm:$0xff]
    %v1115 = vld [vmem:[%s1112 + $0x10] sm:$0xff]
    %v1116 = vld [vmem:[%s1112 + $0x18] sm:$0xff]
    %v1117 = vld [vmem:[#allocation3] sm:$0xff]
    %v1118 = vpack.c.bf16 %v1117, %v1117
    %1119 = vmatprep.subr.bf16.mxu0 %v685
    %1120 = vmatpush1.bf16.msra.mxu0 %v684
    %1121 = vmatprep.subr.bf16.mxu0 %v689
    %1122 = vmatpush1.bf16.msra.mxu0 %v688
    %1123 = vmatprep.subr.bf16.mxu0 %v693
    %1124 = vmatpush1.bf16.msra.mxu0 %v692
    %1125 = vmatprep.subr.bf16.mxu0 %v697
    %1126 = vmatpush1.bf16.msra.mxu0 %v696
    %1127 = vmatprep.subr.bf16.mxu0 %v701
    %1128 = vmatpush1.bf16.msra.mxu0 %v700
    %1129 = vmatprep.subr.bf16.mxu0 %v705
    %1130 = vmatpush1.bf16.msra.mxu0 %v704
    %1131 = vmatprep.subr.bf16.mxu0 %v709
    %1132 = vmatpush1.bf16.msra.mxu0 %v708
    %1133 = vmatprep.subr.bf16.mxu0 %v713
    %1134 = vmatpush1.bf16.msra.mxu0 %v712
    %1135 = vmatprep.subr.bf16.mxu0 0
    %1136 = vmatpush1.bf16.msra.mxu0 0
    %1137 = vmatprep.subr.bf16.mxu0 0
    %1138 = vmatpush1.bf16.msra.mxu0 0
    %1139 = vmatprep.subr.bf16.mxu0 0
    %1140 = vmatpush1.bf16.msra.mxu0 0
    %1141 = vmatprep.subr.bf16.mxu0 0
    %1142 = vmatpush1.bf16.msra.mxu0 0
    %1143 = vmatprep.subr.bf16.mxu0 0
    %1144 = vmatpush1.bf16.msra.mxu0 0
    %1145 = vmatprep.subr.bf16.mxu0 0
    %1146 = vmatpush1.bf16.msra.mxu0 0
    %1147 = vmatprep.subr.bf16.mxu0 0
    %1148 = vmatpush1.bf16.msra.mxu0 0
    %1149 = vmatprep.subr.bf16.mxu0 0
    %1150 = vmatpush1.bf16.msra.mxu0 0
    %1151 = vmatprep.mubr.bf16.mxu0 0
    %1152 = vmatmul.mubr.bf16.gmra.mrb[0].mxu0 %v1118
    %v1153 = vpop.f32.mrb[0].mxu0
    %v1154 = vadd.f32 0.0, %v1153
    %v1155 = vpop.f32.mrb[0].mxu0
    %v1156 = vadd.f32 0.0, %v1155
    %v1157 = vpop.f32.mrb[0].mxu0
    %v1158 = vpop.f32.mrb[0].mxu0
    %1159 = vdwg.mxu0
    %1160 = vmatprep.subr.bf16.mxu0 %v687
    %1161 = vmatpush1.bf16.msra.mxu0 %v686
    %1162 = vmatprep.subr.bf16.mxu0 %v691
    %1163 = vmatpush1.bf16.msra.mxu0 %v690
    %1164 = vmatprep.subr.bf16.mxu0 %v695
    %1165 = vmatpush1.bf16.msra.mxu0 %v694
    %1166 = vmatprep.subr.bf16.mxu0 %v699
    %1167 = vmatpush1.bf16.msra.mxu0 %v698
    %1168 = vmatprep.subr.bf16.mxu0 %v703
    %1169 = vmatpush1.bf16.msra.mxu0 %v702
    %1170 = vmatprep.subr.bf16.mxu0 %v707
    %1171 = vmatpush1.bf16.msra.mxu0 %v706
    %1172 = vmatprep.subr.bf16.mxu0 %v711
    %1173 = vmatpush1.bf16.msra.mxu0 %v710
    %1174 = vmatprep.subr.bf16.mxu0 %v715
    %1175 = vmatpush1.bf16.msra.mxu0 %v714
    %1176 = vmatprep.subr.bf16.mxu0 0
    %1177 = vmatpush1.bf16.msra.mxu0 0
    %1178 = vmatprep.subr.bf16.mxu0 0
    %1179 = vmatpush1.bf16.msra.mxu0 0
    %1180 = vmatprep.subr.bf16.mxu0 0
    %1181 = vmatpush1.bf16.msra.mxu0 0
    %1182 = vmatprep.subr.bf16.mxu0 0
    %1183 = vmatpush1.bf16.msra.mxu0 0
    %1184 = vmatprep.subr.bf16.mxu0 0
    %1185 = vmatpush1.bf16.msra.mxu0 0
    %1186 = vmatprep.subr.bf16.mxu0 0
    %1187 = vmatpush1.bf16.msra.mxu0 0
    %1188 = vmatprep.subr.bf16.mxu0 0
    %1189 = vmatpush1.bf16.msra.mxu0 0
    %1190 = vmatprep.subr.bf16.mxu0 0
    %1191 = vmatpush1.bf16.msra.mxu0 0
    %1192 = vmatprep.mubr.bf16.mxu0 0
    %1193 = vmatmul.mubr.bf16.gmra.mrb[0].mxu0 %v1118
    %v1194 = vpop.f32.mrb[0].mxu0
    %v1195 = vadd.f32 0.0, %v1194
    %v1196 = vpop.f32.mrb[0].mxu0
    %v1197 = vadd.f32 0.0, %v1196
    %v1198 = vpop.f32.mrb[0].mxu0
    %v1199 = vpop.f32.mrb[0].mxu0
    %1200 = vdwg.mxu0
    %v1201 = vadd.f32 %v1113, %v1154
    %v1202 = vadd.f32 %v1114, %v1156
    %v1203 = vadd.f32 %v1115, %v1195
    %v1204 = vadd.f32 %v1116, %v1197
    %v1205 = vxor.u32 %v1201, 2147483648
    %v1206 = vmul.f32 %v1205, 1.442695
    %v1207 = vpow.pop %v1206
    %v1208 = vadd.f32 %v1207, 1.0
    %v1209 = vrcp.pop %v1208
    %v1210 = vmul.f32 1.0, %v1209
    %v1211 = vxor.u32 %v1202, 2147483648
    %v1212 = vmul.f32 %v1211, 1.442695
    %v1213 = vpow.pop %v1212
    %v1214 = vadd.f32 %v1213, 1.0
    %v1215 = vrcp.pop %v1214
    %v1216 = vmul.f32 1.0, %v1215
    %v1217 = vtanh.pop %v1203
    %v1218 = vxor.u32 %v1204, 2147483648
    %v1219 = vmul.f32 %v1218, 1.442695
    %v1220 = vpow.pop %v1219
    %v1221 = vadd.f32 %v1220, 1.0
    %v1222 = vrcp.pop %v1221
    %v1223 = vmul.f32 1.0, %v1222
    %v1224 = vld [vmem:[#allocation4] sm:$0xff]
    %v1225 = vmul.f32 %v1216, %v1224
    %v1226 = vmul.f32 %v1210, %v1217
    %v1227 = vadd.f32 %v1225, %v1226
    %v1228 = vtanh.pop %v1227
    %v1229 = vmul.f32 %v1223, %v1228
    %1230 = vst [vmem:[#allocation4] sm:$0xff] %v1227
    %1231 = vst [vmem:[#allocation3] sm:$0xff] %v1229
    %s1232 = scalar_lea.vmem [#allocation14], 24
    %1233 = vst [vmem:[%s1232] sm:$0xff] %v1229
    %s1234 = smul.u32 4, 4
    %s1235 = smul.addr %s1234, 8
    %s1236 = scalar_lea.vmem [#allocation2], %s1235
    %v1237 = vld [vmem:[%s1236] sm:$0xff]
    %v1238 = vld [vmem:[%s1236 + $0x8] sm:$0xff]
    %v1239 = vld [vmem:[%s1236 + $0x10] sm:$0xff]
    %v1240 = vld [vmem:[%s1236 + $0x18] sm:$0xff]
    %v1241 = vld [vmem:[#allocation3] sm:$0xff]
    %v1242 = vpack.c.bf16 %v1241, %v1241
    %1243 = vmatprep.subr.bf16.mxu0 %v685
    %1244 = vmatpush1.bf16.msra.mxu0 %v684
    %1245 = vmatprep.subr.bf16.mxu0 %v689
    %1246 = vmatpush1.bf16.msra.mxu0 %v688
    %1247 = vmatprep.subr.bf16.mxu0 %v693
    %1248 = vmatpush1.bf16.msra.mxu0 %v692
    %1249 = vmatprep.subr.bf16.mxu0 %v697
    %1250 = vmatpush1.bf16.msra.mxu0 %v696
    %1251 = vmatprep.subr.bf16.mxu0 %v701
    %1252 = vmatpush1.bf16.msra.mxu0 %v700
    %1253 = vmatprep.subr.bf16.mxu0 %v705
    %1254 = vmatpush1.bf16.msra.mxu0 %v704
    %1255 = vmatprep.subr.bf16.mxu0 %v709
    %1256 = vmatpush1.bf16.msra.mxu0 %v708
    %1257 = vmatprep.subr.bf16.mxu0 %v713
    %1258 = vmatpush1.bf16.msra.mxu0 %v712
    %1259 = vmatprep.subr.bf16.mxu0 0
    %1260 = vmatpush1.bf16.msra.mxu0 0
    %1261 = vmatprep.subr.bf16.mxu0 0
    %1262 = vmatpush1.bf16.msra.mxu0 0
    %1263 = vmatprep.subr.bf16.mxu0 0
    %1264 = vmatpush1.bf16.msra.mxu0 0
    %1265 = vmatprep.subr.bf16.mxu0 0
    %1266 = vmatpush1.bf16.msra.mxu0 0
    %1267 = vmatprep.subr.bf16.mxu0 0
    %1268 = vmatpush1.bf16.msra.mxu0 0
    %1269 = vmatprep.subr.bf16.mxu0 0
    %1270 = vmatpush1.bf16.msra.mxu0 0
    %1271 = vmatprep.subr.bf16.mxu0 0
    %1272 = vmatpush1.bf16.msra.mxu0 0
    %1273 = vmatprep.subr.bf16.mxu0 0
    %1274 = vmatpush1.bf16.msra.mxu0 0
    %1275 = vmatprep.mubr.bf16.mxu0 0
    %1276 = vmatmul.mubr.bf16.gmra.mrb[0].mxu0 %v1242
    %v1277 = vpop.f32.mrb[0].mxu0
    %v1278 = vadd.f32 0.0, %v1277
    %v1279 = vpop.f32.mrb[0].mxu0
    %v1280 = vadd.f32 0.0, %v1279
    %v1281 = vpop.f32.mrb[0].mxu0
    %v1282 = vpop.f32.mrb[0].mxu0
    %1283 = vdwg.mxu0
    %1284 = vmatprep.subr.bf16.mxu0 %v687
    %1285 = vmatpush1.bf16.msra.mxu0 %v686
    %1286 = vmatprep.subr.bf16.mxu0 %v691
    %1287 = vmatpush1.bf16.msra.mxu0 %v690
    %1288 = vmatprep.subr.bf16.mxu0 %v695
    %1289 = vmatpush1.bf16.msra.mxu0 %v694
    %1290 = vmatprep.subr.bf16.mxu0 %v699
    %1291 = vmatpush1.bf16.msra.mxu0 %v698
    %1292 = vmatprep.subr.bf16.mxu0 %v703
    %1293 = vmatpush1.bf16.msra.mxu0 %v702
    %1294 = vmatprep.subr.bf16.mxu0 %v707
    %1295 = vmatpush1.bf16.msra.mxu0 %v706
    %1296 = vmatprep.subr.bf16.mxu0 %v711
    %1297 = vmatpush1.bf16.msra.mxu0 %v710
    %1298 = vmatprep.subr.bf16.mxu0 %v715
    %1299 = vmatpush1.bf16.msra.mxu0 %v714
    %1300 = vmatprep.subr.bf16.mxu0 0
    %1301 = vmatpush1.bf16.msra.mxu0 0
    %1302 = vmatprep.subr.bf16.mxu0 0
    %1303 = vmatpush1.bf16.msra.mxu0 0
    %1304 = vmatprep.subr.bf16.mxu0 0
    %1305 = vmatpush1.bf16.msra.mxu0 0
    %1306 = vmatprep.subr.bf16.mxu0 0
    %1307 = vmatpush1.bf16.msra.mxu0 0
    %1308 = vmatprep.subr.bf16.mxu0 0
    %1309 = vmatpush1.bf16.msra.mxu0 0
    %1310 = vmatprep.subr.bf16.mxu0 0
    %1311 = vmatpush1.bf16.msra.mxu0 0
    %1312 = vmatprep.subr.bf16.mxu0 0
    %1313 = vmatpush1.bf16.msra.mxu0 0
    %1314 = vmatprep.subr.bf16.mxu0 0
    %1315 = vmatpush1.bf16.msra.mxu0 0
    %1316 = vmatprep.mubr.bf16.mxu0 0
    %1317 = vmatmul.mubr.bf16.gmra.mrb[0].mxu0 %v1242
    %v1318 = vpop.f32.mrb[0].mxu0
    %v1319 = vadd.f32 0.0, %v1318
    %v1320 = vpop.f32.mrb[0].mxu0
    %v1321 = vadd.f32 0.0, %v1320
    %v1322 = vpop.f32.mrb[0].mxu0
    %v1323 = vpop.f32.mrb[0].mxu0
    %1324 = vdwg.mxu0
    %v1325 = vadd.f32 %v1237, %v1278
    %v1326 = vadd.f32 %v1238, %v1280
    %v1327 = vadd.f32 %v1239, %v1319
    %v1328 = vadd.f32 %v1240, %v1321
    %v1329 = vxor.u32 %v1325, 2147483648
    %v1330 = vmul.f32 %v1329, 1.442695
    %v1331 = vpow.pop %v1330
    %v1332 = vadd.f32 %v1331, 1.0
    %v1333 = vrcp.pop %v1332
    %v1334 = vmul.f32 1.0, %v1333
    %v1335 = vxor.u32 %v1326, 2147483648
    %v1336 = vmul.f32 %v1335, 1.442695
    %v1337 = vpow.pop %v1336
    %v1338 = vadd.f32 %v1337, 1.0
    %v1339 = vrcp.pop %v1338
    %v1340 = vmul.f32 1.0, %v1339
    %v1341 = vtanh.pop %v1327
    %v1342 = vxor.u32 %v1328, 2147483648
    %v1343 = vmul.f32 %v1342, 1.442695
    %v1344 = vpow.pop %v1343
    %v1345 = vadd.f32 %v1344, 1.0
    %v1346 = vrcp.pop %v1345
    %v1347 = vmul.f32 1.0, %v1346
    %v1348 = vld [vmem:[#allocation4] sm:$0xff]
    %v1349 = vmul.f32 %v1340, %v1348
    %v1350 = vmul.f32 %v1334, %v1341
    %v1351 = vadd.f32 %v1349, %v1350
    %v1352 = vtanh.pop %v1351
    %v1353 = vmul.f32 %v1347, %v1352
    %1354 = vst [vmem:[#allocation4] sm:$0xff] %v1351
    %1355 = vst [vmem:[#allocation3] sm:$0xff] %v1353
    %s1356 = scalar_lea.vmem [#allocation14], 32
    %1357 = vst [vmem:[%s1356] sm:$0xff] %v1353
    %s1358 = smul.u32 5, 4
    %s1359 = smul.addr %s1358, 8
    %s1360 = scalar_lea.vmem [#allocation2], %s1359
    %v1361 = vld [vmem:[%s1360] sm:$0xff]
    %v1362 = vld [vmem:[%s1360 + $0x8] sm:$0xff]
    %v1363 = vld [vmem:[%s1360 + $0x10] sm:$0xff]
    %v1364 = vld [vmem:[%s1360 + $0x18] sm:$0xff]
    %v1365 = vld [vmem:[#allocation3] sm:$0xff]
    %v1366 = vpack.c.bf16 %v1365, %v1365
    %1367 = vmatprep.subr.bf16.mxu0 %v685
    %1368 = vmatpush1.bf16.msra.mxu0 %v684
    %1369 = vmatprep.subr.bf16.mxu0 %v689
    %1370 = vmatpush1.bf16.msra.mxu0 %v688
    %1371 = vmatprep.subr.bf16.mxu0 %v693
    %1372 = vmatpush1.bf16.msra.mxu0 %v692
    %1373 = vmatprep.subr.bf16.mxu0 %v697
    %1374 = vmatpush1.bf16.msra.mxu0 %v696
    %1375 = vmatprep.subr.bf16.mxu0 %v701
    %1376 = vmatpush1.bf16.msra.mxu0 %v700
    %1377 = vmatprep.subr.bf16.mxu0 %v705
    %1378 = vmatpush1.bf16.msra.mxu0 %v704
    %1379 = vmatprep.subr.bf16.mxu0 %v709
    %1380 = vmatpush1.bf16.msra.mxu0 %v708
    %1381 = vmatprep.subr.bf16.mxu0 %v713
    %1382 = vmatpush1.bf16.msra.mxu0 %v712
    %1383 = vmatprep.subr.bf16.mxu0 0
    %1384 = vmatpush1.bf16.msra.mxu0 0
    %1385 = vmatprep.subr.bf16.mxu0 0
    %1386 = vmatpush1.bf16.msra.mxu0 0
    %1387 = vmatprep.subr.bf16.mxu0 0
    %1388 = vmatpush1.bf16.msra.mxu0 0
    %1389 = vmatprep.subr.bf16.mxu0 0
    %1390 = vmatpush1.bf16.msra.mxu0 0
    %1391 = vmatprep.subr.bf16.mxu0 0
    %1392 = vmatpush1.bf16.msra.mxu0 0
    %1393 = vmatprep.subr.bf16.mxu0 0
    %1394 = vmatpush1.bf16.msra.mxu0 0
    %1395 = vmatprep.subr.bf16.mxu0 0
    %1396 = vmatpush1.bf16.msra.mxu0 0
    %1397 = vmatprep.subr.bf16.mxu0 0
    %1398 = vmatpush1.bf16.msra.mxu0 0
    %1399 = vmatprep.mubr.bf16.mxu0 0
    %1400 = vmatmul.mubr.bf16.gmra.mrb[0].mxu0 %v1366
    %v1401 = vpop.f32.mrb[0].mxu0
    %v1402 = vadd.f32 0.0, %v1401
    %v1403 = vpop.f32.mrb[0].mxu0
    %v1404 = vadd.f32 0.0, %v1403
    %v1405 = vpop.f32.mrb[0].mxu0
    %v1406 = vpop.f32.mrb[0].mxu0
    %1407 = vdwg.mxu0
    %1408 = vmatprep.subr.bf16.mxu0 %v687
    %1409 = vmatpush1.bf16.msra.mxu0 %v686
    %1410 = vmatprep.subr.bf16.mxu0 %v691
    %1411 = vmatpush1.bf16.msra.mxu0 %v690
    %1412 = vmatprep.subr.bf16.mxu0 %v695
    %1413 = vmatpush1.bf16.msra.mxu0 %v694
    %1414 = vmatprep.subr.bf16.mxu0 %v699
    %1415 = vmatpush1.bf16.msra.mxu0 %v698
    %1416 = vmatprep.subr.bf16.mxu0 %v703
    %1417 = vmatpush1.bf16.msra.mxu0 %v702
    %1418 = vmatprep.subr.bf16.mxu0 %v707
    %1419 = vmatpush1.bf16.msra.mxu0 %v706
    %1420 = vmatprep.subr.bf16.mxu0 %v711
    %1421 = vmatpush1.bf16.msra.mxu0 %v710
    %1422 = vmatprep.subr.bf16.mxu0 %v715
    %1423 = vmatpush1.bf16.msra.mxu0 %v714
    %1424 = vmatprep.subr.bf16.mxu0 0
    %1425 = vmatpush1.bf16.msra.mxu0 0
    %1426 = vmatprep.subr.bf16.mxu0 0
    %1427 = vmatpush1.bf16.msra.mxu0 0
    %1428 = vmatprep.subr.bf16.mxu0 0
    %1429 = vmatpush1.bf16.msra.mxu0 0
    %1430 = vmatprep.subr.bf16.mxu0 0
    %1431 = vmatpush1.bf16.msra.mxu0 0
    %1432 = vmatprep.subr.bf16.mxu0 0
    %1433 = vmatpush1.bf16.msra.mxu0 0
    %1434 = vmatprep.subr.bf16.mxu0 0
    %1435 = vmatpush1.bf16.msra.mxu0 0
    %1436 = vmatprep.subr.bf16.mxu0 0
    %1437 = vmatpush1.bf16.msra.mxu0 0
    %1438 = vmatprep.subr.bf16.mxu0 0
    %1439 = vmatpush1.bf16.msra.mxu0 0
    %1440 = vmatprep.mubr.bf16.mxu0 0
    %1441 = vmatmul.mubr.bf16.gmra.mrb[0].mxu0 %v1366
    %v1442 = vpop.f32.mrb[0].mxu0
    %v1443 = vadd.f32 0.0, %v1442
    %v1444 = vpop.f32.mrb[0].mxu0
    %v1445 = vadd.f32 0.0, %v1444
    %v1446 = vpop.f32.mrb[0].mxu0
    %v1447 = vpop.f32.mrb[0].mxu0
    %1448 = vdwg.mxu0
    %v1449 = vadd.f32 %v1361, %v1402
    %v1450 = vadd.f32 %v1362, %v1404
    %v1451 = vadd.f32 %v1363, %v1443
    %v1452 = vadd.f32 %v1364, %v1445
    %v1453 = vxor.u32 %v1449, 2147483648
    %v1454 = vmul.f32 %v1453, 1.442695
    %v1455 = vpow.pop %v1454
    %v1456 = vadd.f32 %v1455, 1.0
    %v1457 = vrcp.pop %v1456
    %v1458 = vmul.f32 1.0, %v1457
    %v1459 = vxor.u32 %v1450, 2147483648
    %v1460 = vmul.f32 %v1459, 1.442695
    %v1461 = vpow.pop %v1460
    %v1462 = vadd.f32 %v1461, 1.0
    %v1463 = vrcp.pop %v1462
    %v1464 = vmul.f32 1.0, %v1463
    %v1465 = vtanh.pop %v1451
    %v1466 = vxor.u32 %v1452, 2147483648
    %v1467 = vmul.f32 %v1466, 1.442695
    %v1468 = vpow.pop %v1467
    %v1469 = vadd.f32 %v1468, 1.0
    %v1470 = vrcp.pop %v1469
    %v1471 = vmul.f32 1.0, %v1470
    %v1472 = vld [vmem:[#allocation4] sm:$0xff]
    %v1473 = vmul.f32 %v1464, %v1472
    %v1474 = vmul.f32 %v1458, %v1465
    %v1475 = vadd.f32 %v1473, %v1474
    %v1476 = vtanh.pop %v1475
    %v1477 = vmul.f32 %v1471, %v1476
    %1478 = vst [vmem:[#allocation4] sm:$0xff] %v1475
    %1479 = vst [vmem:[#allocation3] sm:$0xff] %v1477
    %s1480 = scalar_lea.vmem [#allocation14], 40
    %1481 = vst [vmem:[%s1480] sm:$0xff] %v1477
    %s1482 = smul.u32 6, 4
    %s1483 = smul.addr %s1482, 8
    %s1484 = scalar_lea.vmem [#allocation2], %s1483
    %v1485 = vld [vmem:[%s1484] sm:$0xff]
    %v1486 = vld [vmem:[%s1484 + $0x8] sm:$0xff]
    %v1487 = vld [vmem:[%s1484 + $0x10] sm:$0xff]
    %v1488 = vld [vmem:[%s1484 + $0x18] sm:$0xff]
    %v1489 = vld [vmem:[#allocation3] sm:$0xff]
    %v1490 = vpack.c.bf16 %v1489, %v1489
    %1491 = vmatprep.subr.bf16.mxu0 %v685
    %1492 = vmatpush1.bf16.msra.mxu0 %v684
    %1493 = vmatprep.subr.bf16.mxu0 %v689
    %1494 = vmatpush1.bf16.msra.mxu0 %v688
    %1495 = vmatprep.subr.bf16.mxu0 %v693
    %1496 = vmatpush1.bf16.msra.mxu0 %v692
    %1497 = vmatprep.subr.bf16.mxu0 %v697
    %1498 = vmatpush1.bf16.msra.mxu0 %v696
    %1499 = vmatprep.subr.bf16.mxu0 %v701
    %1500 = vmatpush1.bf16.msra.mxu0 %v700
    %1501 = vmatprep.subr.bf16.mxu0 %v705
    %1502 = vmatpush1.bf16.msra.mxu0 %v704
    %1503 = vmatprep.subr.bf16.mxu0 %v709
    %1504 = vmatpush1.bf16.msra.mxu0 %v708
    %1505 = vmatprep.subr.bf16.mxu0 %v713
    %1506 = vmatpush1.bf16.msra.mxu0 %v712
    %1507 = vmatprep.subr.bf16.mxu0 0
    %1508 = vmatpush1.bf16.msra.mxu0 0
    %1509 = vmatprep.subr.bf16.mxu0 0
    %1510 = vmatpush1.bf16.msra.mxu0 0
    %1511 = vmatprep.subr.bf16.mxu0 0
    %1512 = vmatpush1.bf16.msra.mxu0 0
    %1513 = vmatprep.subr.bf16.mxu0 0
    %1514 = vmatpush1.bf16.msra.mxu0 0
    %1515 = vmatprep.subr.bf16.mxu0 0
    %1516 = vmatpush1.bf16.msra.mxu0 0
    %1517 = vmatprep.subr.bf16.mxu0 0
    %1518 = vmatpush1.bf16.msra.mxu0 0
    %1519 = vmatprep.subr.bf16.mxu0 0
    %1520 = vmatpush1.bf16.msra.mxu0 0
    %1521 = vmatprep.subr.bf16.mxu0 0
    %1522 = vmatpush1.bf16.msra.mxu0 0
    %1523 = vmatprep.mubr.bf16.mxu0 0
    %1524 = vmatmul.mubr.bf16.gmra.mrb[0].mxu0 %v1490
    %v1525 = vpop.f32.mrb[0].mxu0
    %v1526 = vadd.f32 0.0, %v1525
    %v1527 = vpop.f32.mrb[0].mxu0
    %v1528 = vadd.f32 0.0, %v1527
    %v1529 = vpop.f32.mrb[0].mxu0
    %v1530 = vpop.f32.mrb[0].mxu0
    %1531 = vdwg.mxu0
    %1532 = vmatprep.subr.bf16.mxu0 %v687
    %1533 = vmatpush1.bf16.msra.mxu0 %v686
    %1534 = vmatprep.subr.bf16.mxu0 %v691
    %1535 = vmatpush1.bf16.msra.mxu0 %v690
    %1536 = vmatprep.subr.bf16.mxu0 %v695
    %1537 = vmatpush1.bf16.msra.mxu0 %v694
    %1538 = vmatprep.subr.bf16.mxu0 %v699
    %1539 = vmatpush1.bf16.msra.mxu0 %v698
    %1540 = vmatprep.subr.bf16.mxu0 %v703
    %1541 = vmatpush1.bf16.msra.mxu0 %v702
    %1542 = vmatprep.subr.bf16.mxu0 %v707
    %1543 = vmatpush1.bf16.msra.mxu0 %v706
    %1544 = vmatprep.subr.bf16.mxu0 %v711
    %1545 = vmatpush1.bf16.msra.mxu0 %v710
    %1546 = vmatprep.subr.bf16.mxu0 %v715
    %1547 = vmatpush1.bf16.msra.mxu0 %v714
    %1548 = vmatprep.subr.bf16.mxu0 0
    %1549 = vmatpush1.bf16.msra.mxu0 0
    %1550 = vmatprep.subr.bf16.mxu0 0
    %1551 = vmatpush1.bf16.msra.mxu0 0
    %1552 = vmatprep.subr.bf16.mxu0 0
    %1553 = vmatpush1.bf16.msra.mxu0 0
    %1554 = vmatprep.subr.bf16.mxu0 0
    %1555 = vmatpush1.bf16.msra.mxu0 0
    %1556 = vmatprep.subr.bf16.mxu0 0
    %1557 = vmatpush1.bf16.msra.mxu0 0
    %1558 = vmatprep.subr.bf16.mxu0 0
    %1559 = vmatpush1.bf16.msra.mxu0 0
    %1560 = vmatprep.subr.bf16.mxu0 0
    %1561 = vmatpush1.bf16.msra.mxu0 0
    %1562 = vmatprep.subr.bf16.mxu0 0
    %1563 = vmatpush1.bf16.msra.mxu0 0
    %1564 = vmatprep.mubr.bf16.mxu0 0
    %1565 = vmatmul.mubr.bf16.gmra.mrb[0].mxu0 %v1490
    %v1566 = vpop.f32.mrb[0].mxu0
    %v1567 = vadd.f32 0.0, %v1566
    %v1568 = vpop.f32.mrb[0].mxu0
    %v1569 = vadd.f32 0.0, %v1568
    %v1570 = vpop.f32.mrb[0].mxu0
    %v1571 = vpop.f32.mrb[0].mxu0
    %1572 = vdwg.mxu0
    %v1573 = vadd.f32 %v1485, %v1526
    %v1574 = vadd.f32 %v1486, %v1528
    %v1575 = vadd.f32 %v1487, %v1567
    %v1576 = vadd.f32 %v1488, %v1569
    %v1577 = vxor.u32 %v1573, 2147483648
    %v1578 = vmul.f32 %v1577, 1.442695
    %v1579 = vpow.pop %v1578
    %v1580 = vadd.f32 %v1579, 1.0
    %v1581 = vrcp.pop %v1580
    %v1582 = vmul.f32 1.0, %v1581
    %v1583 = vxor.u32 %v1574, 2147483648
    %v1584 = vmul.f32 %v1583, 1.442695
    %v1585 = vpow.pop %v1584
    %v1586 = vadd.f32 %v1585, 1.0
    %v1587 = vrcp.pop %v1586
    %v1588 = vmul.f32 1.0, %v1587
    %v1589 = vtanh.pop %v1575
    %v1590 = vxor.u32 %v1576, 2147483648
    %v1591 = vmul.f32 %v1590, 1.442695
    %v1592 = vpow.pop %v1591
    %v1593 = vadd.f32 %v1592, 1.0
    %v1594 = vrcp.pop %v1593
    %v1595 = vmul.f32 1.0, %v1594
    %v1596 = vld [vmem:[#allocation4] sm:$0xff]
    %v1597 = vmul.f32 %v1588, %v1596
    %v1598 = vmul.f32 %v1582, %v1589
    %v1599 = vadd.f32 %v1597, %v1598
    %v1600 = vtanh.pop %v1599
    %v1601 = vmul.f32 %v1595, %v1600
    %1602 = vst [vmem:[#allocation4] sm:$0xff] %v1599
    %1603 = vst [vmem:[#allocation3] sm:$0xff] %v1601
    %s1604 = scalar_lea.vmem [#allocation14], 48
    %1605 = vst [vmem:[%s1604] sm:$0xff] %v1601
    %s1606 = smul.u32 7, 4
    %s1607 = smul.addr %s1606, 8
    %s1608 = scalar_lea.vmem [#allocation2], %s1607
    %v1609 = vld [vmem:[%s1608] sm:$0xff]
    %v1610 = vld [vmem:[%s1608 + $0x8] sm:$0xff]
    %v1611 = vld [vmem:[%s1608 + $0x10] sm:$0xff]
    %v1612 = vld [vmem:[%s1608 + $0x18] sm:$0xff]
    %v1613 = vld [vmem:[#allocation3] sm:$0xff]
    %v1614 = vpack.c.bf16 %v1613, %v1613
    %1615 = vmatprep.subr.bf16.mxu0 %v685
    %1616 = vmatpush1.bf16.msra.mxu0 %v684
    %1617 = vmatprep.subr.bf16.mxu0 %v689
    %1618 = vmatpush1.bf16.msra.mxu0 %v688
    %1619 = vmatprep.subr.bf16.mxu0 %v693
    %1620 = vmatpush1.bf16.msra.mxu0 %v692
    %1621 = vmatprep.subr.bf16.mxu0 %v697
    %1622 = vmatpush1.bf16.msra.mxu0 %v696
    %1623 = vmatprep.subr.bf16.mxu0 %v701
    %1624 = vmatpush1.bf16.msra.mxu0 %v700
    %1625 = vmatprep.subr.bf16.mxu0 %v705
    %1626 = vmatpush1.bf16.msra.mxu0 %v704
    %1627 = vmatprep.subr.bf16.mxu0 %v709
    %1628 = vmatpush1.bf16.msra.mxu0 %v708
    %1629 = vmatprep.subr.bf16.mxu0 %v713
    %1630 = vmatpush1.bf16.msra.mxu0 %v712
    %1631 = vmatprep.subr.bf16.mxu0 0
    %1632 = vmatpush1.bf16.msra.mxu0 0
    %1633 = vmatprep.subr.bf16.mxu0 0
    %1634 = vmatpush1.bf16.msra.mxu0 0
    %1635 = vmatprep.subr.bf16.mxu0 0
    %1636 = vmatpush1.bf16.msra.mxu0 0
    %1637 = vmatprep.subr.bf16.mxu0 0
    %1638 = vmatpush1.bf16.msra.mxu0 0
    %1639 = vmatprep.subr.bf16.mxu0 0
    %1640 = vmatpush1.bf16.msra.mxu0 0
    %1641 = vmatprep.subr.bf16.mxu0 0
    %1642 = vmatpush1.bf16.msra.mxu0 0
    %1643 = vmatprep.subr.bf16.mxu0 0
    %1644 = vmatpush1.bf16.msra.mxu0 0
    %1645 = vmatprep.subr.bf16.mxu0 0
    %1646 = vmatpush1.bf16.msra.mxu0 0
    %1647 = vmatprep.mubr.bf16.mxu0 0
    %1648 = vmatmul.mubr.bf16.gmra.mrb[0].mxu0 %v1614
    %v1649 = vpop.f32.mrb[0].mxu0
    %v1650 = vadd.f32 0.0, %v1649
    %v1651 = vpop.f32.mrb[0].mxu0
    %v1652 = vadd.f32 0.0, %v1651
    %v1653 = vpop.f32.mrb[0].mxu0
    %v1654 = vpop.f32.mrb[0].mxu0
    %1655 = vdwg.mxu0
    %1656 = vmatprep.subr.bf16.mxu0 %v687
    %1657 = vmatpush1.bf16.msra.mxu0 %v686
    %1658 = vmatprep.subr.bf16.mxu0 %v691
    %1659 = vmatpush1.bf16.msra.mxu0 %v690
    %1660 = vmatprep.subr.bf16.mxu0 %v695
    %1661 = vmatpush1.bf16.msra.mxu0 %v694
    %1662 = vmatprep.subr.bf16.mxu0 %v699
    %1663 = vmatpush1.bf16.msra.mxu0 %v698
    %1664 = vmatprep.subr.bf16.mxu0 %v703
    %1665 = vmatpush1.bf16.msra.mxu0 %v702
    %1666 = vmatprep.subr.bf16.mxu0 %v707
    %1667 = vmatpush1.bf16.msra.mxu0 %v706
    %1668 = vmatprep.subr.bf16.mxu0 %v711
    %1669 = vmatpush1.bf16.msra.mxu0 %v710
    %1670 = vmatprep.subr.bf16.mxu0 %v715
    %1671 = vmatpush1.bf16.msra.mxu0 %v714
    %1672 = vmatprep.subr.bf16.mxu0 0
    %1673 = vmatpush1.bf16.msra.mxu0 0
    %1674 = vmatprep.subr.bf16.mxu0 0
    %1675 = vmatpush1.bf16.msra.mxu0 0
    %1676 = vmatprep.subr.bf16.mxu0 0
    %1677 = vmatpush1.bf16.msra.mxu0 0
    %1678 = vmatprep.subr.bf16.mxu0 0
    %1679 = vmatpush1.bf16.msra.mxu0 0
    %1680 = vmatprep.subr.bf16.mxu0 0
    %1681 = vmatpush1.bf16.msra.mxu0 0
    %1682 = vmatprep.subr.bf16.mxu0 0
    %1683 = vmatpush1.bf16.msra.mxu0 0
    %1684 = vmatprep.subr.bf16.mxu0 0
    %1685 = vmatpush1.bf16.msra.mxu0 0
    %1686 = vmatprep.subr.bf16.mxu0 0
    %1687 = vmatpush1.bf16.msra.mxu0 0
    %1688 = vmatprep.mubr.bf16.mxu0 0
    %1689 = vmatmul.mubr.bf16.gmra.mrb[0].mxu0 %v1614
    %v1690 = vpop.f32.mrb[0].mxu0
    %v1691 = vadd.f32 0.0, %v1690
    %v1692 = vpop.f32.mrb[0].mxu0
    %v1693 = vadd.f32 0.0, %v1692
    %v1694 = vpop.f32.mrb[0].mxu0
    %v1695 = vpop.f32.mrb[0].mxu0
    %1696 = vdwg.mxu0
    %v1697 = vadd.f32 %v1609, %v1650
    %v1698 = vadd.f32 %v1610, %v1652
    %v1699 = vadd.f32 %v1611, %v1691
    %v1700 = vadd.f32 %v1612, %v1693
    %v1701 = vxor.u32 %v1697, 2147483648
    %v1702 = vmul.f32 %v1701, 1.442695
    %v1703 = vpow.pop %v1702
    %v1704 = vadd.f32 %v1703, 1.0
    %v1705 = vrcp.pop %v1704
    %v1706 = vmul.f32 1.0, %v1705
    %v1707 = vxor.u32 %v1698, 2147483648
    %v1708 = vmul.f32 %v1707, 1.442695
    %v1709 = vpow.pop %v1708
    %v1710 = vadd.f32 %v1709, 1.0
    %v1711 = vrcp.pop %v1710
    %v1712 = vmul.f32 1.0, %v1711
    %v1713 = vtanh.pop %v1699
    %v1714 = vxor.u32 %v1700, 2147483648
    %v1715 = vmul.f32 %v1714, 1.442695
    %v1716 = vpow.pop %v1715
    %v1717 = vadd.f32 %v1716, 1.0
    %v1718 = vrcp.pop %v1717
    %v1719 = vmul.f32 1.0, %v1718
    %v1720 = vld [vmem:[#allocation4] sm:$0xff]
    %v1721 = vmul.f32 %v1712, %v1720
    %v1722 = vmul.f32 %v1706, %v1713
    %v1723 = vadd.f32 %v1721, %v1722
    %v1724 = vtanh.pop %v1723
    %v1725 = vmul.f32 %v1719, %v1724
    %1726 = vst [vmem:[#allocation4] sm:$0xff] %v1723
    %1727 = vst [vmem:[#allocation3] sm:$0xff] %v1725
    %s1728 = scalar_lea.vmem [#allocation14], 56
    %1729 = vst [vmem:[%s1728] sm:$0xff] %v1725
    %s1730 = smul.u32 8, 4
    %s1731 = smul.addr %s1730, 8
    %s1732 = scalar_lea.vmem [#allocation2], %s1731
    %v1733 = vld [vmem:[%s1732] sm:$0xff]
    %v1734 = vld [vmem:[%s1732 + $0x8] sm:$0xff]
    %v1735 = vld [vmem:[%s1732 + $0x10] sm:$0xff]
    %v1736 = vld [vmem:[%s1732 + $0x18] sm:$0xff]
    %v1737 = vld [vmem:[#allocation3] sm:$0xff]
    %v1738 = vpack.c.bf16 %v1737, %v1737
    %1739 = vmatprep.subr.bf16.mxu0 %v685
    %1740 = vmatpush1.bf16.msra.mxu0 %v684
    %1741 = vmatprep.subr.bf16.mxu0 %v689
    %1742 = vmatpush1.bf16.msra.mxu0 %v688
    %1743 = vmatprep.subr.bf16.mxu0 %v693
    %1744 = vmatpush1.bf16.msra.mxu0 %v692
    %1745 = vmatprep.subr.bf16.mxu0 %v697
    %1746 = vmatpush1.bf16.msra.mxu0 %v696
    %1747 = vmatprep.subr.bf16.mxu0 %v701
    %1748 = vmatpush1.bf16.msra.mxu0 %v700
    %1749 = vmatprep.subr.bf16.mxu0 %v705
    %1750 = vmatpush1.bf16.msra.mxu0 %v704
    %1751 = vmatprep.subr.bf16.mxu0 %v709
    %1752 = vmatpush1.bf16.msra.mxu0 %v708
    %1753 = vmatprep.subr.bf16.mxu0 %v713
    %1754 = vmatpush1.bf16.msra.mxu0 %v712
    %1755 = vmatprep.subr.bf16.mxu0 0
    %1756 = vmatpush1.bf16.msra.mxu0 0
    %1757 = vmatprep.subr.bf16.mxu0 0
    %1758 = vmatpush1.bf16.msra.mxu0 0
    %1759 = vmatprep.subr.bf16.mxu0 0
    %1760 = vmatpush1.bf16.msra.mxu0 0
    %1761 = vmatprep.subr.bf16.mxu0 0
    %1762 = vmatpush1.bf16.msra.mxu0 0
    %1763 = vmatprep.subr.bf16.mxu0 0
    %1764 = vmatpush1.bf16.msra.mxu0 0
    %1765 = vmatprep.subr.bf16.mxu0 0
    %1766 = vmatpush1.bf16.msra.mxu0 0
    %1767 = vmatprep.subr.bf16.mxu0 0
    %1768 = vmatpush1.bf16.msra.mxu0 0
    %1769 = vmatprep.subr.bf16.mxu0 0
    %1770 = vmatpush1.bf16.msra.mxu0 0
    %1771 = vmatprep.mubr.bf16.mxu0 0
    %1772 = vmatmul.mubr.bf16.gmra.mrb[0].mxu0 %v1738
    %v1773 = vpop.f32.mrb[0].mxu0
    %v1774 = vadd.f32 0.0, %v1773
    %v1775 = vpop.f32.mrb[0].mxu0
    %v1776 = vadd.f32 0.0, %v1775
    %v1777 = vpop.f32.mrb[0].mxu0
    %v1778 = vpop.f32.mrb[0].mxu0
    %1779 = vdwg.mxu0
    %1780 = vmatprep.subr.bf16.mxu0 %v687
    %1781 = vmatpush1.bf16.msra.mxu0 %v686
    %1782 = vmatprep.subr.bf16.mxu0 %v691
    %1783 = vmatpush1.bf16.msra.mxu0 %v690
    %1784 = vmatprep.subr.bf16.mxu0 %v695
    %1785 = vmatpush1.bf16.msra.mxu0 %v694
    %1786 = vmatprep.subr.bf16.mxu0 %v699
    %1787 = vmatpush1.bf16.msra.mxu0 %v698
    %1788 = vmatprep.subr.bf16.mxu0 %v703
    %1789 = vmatpush1.bf16.msra.mxu0 %v702
    %1790 = vmatprep.subr.bf16.mxu0 %v707
    %1791 = vmatpush1.bf16.msra.mxu0 %v706
    %1792 = vmatprep.subr.bf16.mxu0 %v711
    %1793 = vmatpush1.bf16.msra.mxu0 %v710
    %1794 = vmatprep.subr.bf16.mxu0 %v715
    %1795 = vmatpush1.bf16.msra.mxu0 %v714
    %1796 = vmatprep.subr.bf16.mxu0 0
    %1797 = vmatpush1.bf16.msra.mxu0 0
    %1798 = vmatprep.subr.bf16.mxu0 0
    %1799 = vmatpush1.bf16.msra.mxu0 0
    %1800 = vmatprep.subr.bf16.mxu0 0
    %1801 = vmatpush1.bf16.msra.mxu0 0
    %1802 = vmatprep.subr.bf16.mxu0 0
    %1803 = vmatpush1.bf16.msra.mxu0 0
    %1804 = vmatprep.subr.bf16.mxu0 0
    %1805 = vmatpush1.bf16.msra.mxu0 0
    %1806 = vmatprep.subr.bf16.mxu0 0
    %1807 = vmatpush1.bf16.msra.mxu0 0
    %1808 = vmatprep.subr.bf16.mxu0 0
    %1809 = vmatpush1.bf16.msra.mxu0 0
    %1810 = vmatprep.subr.bf16.mxu0 0
    %1811 = vmatpush1.bf16.msra.mxu0 0
    %1812 = vmatprep.mubr.bf16.mxu0 0
    %1813 = vmatmul.mubr.bf16.gmra.mrb[0].mxu0 %v1738
    %v1814 = vpop.f32.mrb[0].mxu0
    %v1815 = vadd.f32 0.0, %v1814
    %v1816 = vpop.f32.mrb[0].mxu0
    %v1817 = vadd.f32 0.0, %v1816
    %v1818 = vpop.f32.mrb[0].mxu0
    %v1819 = vpop.f32.mrb[0].mxu0
    %1820 = vdwg.mxu0
    %v1821 = vadd.f32 %v1733, %v1774
    %v1822 = vadd.f32 %v1734, %v1776
    %v1823 = vadd.f32 %v1735, %v1815
    %v1824 = vadd.f32 %v1736, %v1817
    %v1825 = vxor.u32 %v1821, 2147483648
    %v1826 = vmul.f32 %v1825, 1.442695
    %v1827 = vpow.pop %v1826
    %v1828 = vadd.f32 %v1827, 1.0
    %v1829 = vrcp.pop %v1828
    %v1830 = vmul.f32 1.0, %v1829
    %v1831 = vxor.u32 %v1822, 2147483648
    %v1832 = vmul.f32 %v1831, 1.442695
    %v1833 = vpow.pop %v1832
    %v1834 = vadd.f32 %v1833, 1.0
    %v1835 = vrcp.pop %v1834
    %v1836 = vmul.f32 1.0, %v1835
    %v1837 = vtanh.pop %v1823
    %v1838 = vxor.u32 %v1824, 2147483648
    %v1839 = vmul.f32 %v1838, 1.442695
    %v1840 = vpow.pop %v1839
    %v1841 = vadd.f32 %v1840, 1.0
    %v1842 = vrcp.pop %v1841
    %v1843 = vmul.f32 1.0, %v1842
    %v1844 = vld [vmem:[#allocation4] sm:$0xff]
    %v1845 = vmul.f32 %v1836, %v1844
    %v1846 = vmul.f32 %v1830, %v1837
    %v1847 = vadd.f32 %v1845, %v1846
    %v1848 = vtanh.pop %v1847
    %v1849 = vmul.f32 %v1843, %v1848
    %1850 = vst [vmem:[#allocation4] sm:$0xff] %v1847
    %1851 = vst [vmem:[#allocation3] sm:$0xff] %v1849
    %s1852 = scalar_lea.vmem [#allocation14], 64
    %1853 = vst [vmem:[%s1852] sm:$0xff] %v1849
    %v1854 = vld [vmem:[#allocation11] sm:$0xff]
    %v1855 = vld [vmem:[#allocation11 + $0x8] sm:$0xff]
    %v1856 = vld [vmem:[#allocation11 + $0x10] sm:$0xff]
    %v1857 = vld [vmem:[#allocation11 + $0x18] sm:$0xff]
    %v1858 = vld [vmem:[#allocation11 + $0x20] sm:$0xff]
    %v1859 = vld [vmem:[#allocation11 + $0x28] sm:$0xff]
    %v1860 = vld [vmem:[#allocation11 + $0x30] sm:$0xff]
    %v1861 = vld [vmem:[#allocation11 + $0x38] sm:$0xff]
    %v1862 = vld [vmem:[#allocation11 + $0x40] sm:$0xff]
    %v1863 = vld [vmem:[#allocation11 + $0x48] sm:$0xff]
    %v1864 = vld [vmem:[#allocation11 + $0x50] sm:$0xff]
    %v1865 = vld [vmem:[#allocation11 + $0x58] sm:$0xff]
    %v1866 = vld [vmem:[#allocation11 + $0x60] sm:$0xff]
    %v1867 = vld [vmem:[#allocation11 + $0x68] sm:$0xff]
    %v1868 = vld [vmem:[#allocation11 + $0x70] sm:$0xff]
    %v1869 = vld [vmem:[#allocation11 + $0x78] sm:$0xff]
    %v1870 = vld [vmem:[#allocation11 + $0x80] sm:$0xff]
    %v1871 = vld [vmem:[#allocation11 + $0x88] sm:$0xff]
    %v1872 = vld [vmem:[#allocation11 + $0x90] sm:$0xff]
    %v1873 = vld [vmem:[#allocation11 + $0x98] sm:$0xff]
    %v1874 = vld [vmem:[#allocation11 + $0xa0] sm:$0xff]
    %v1875 = vld [vmem:[#allocation11 + $0xa8] sm:$0xff]
    %v1876 = vld [vmem:[#allocation11 + $0xb0] sm:$0xff]
    %v1877 = vld [vmem:[#allocation11 + $0xb8] sm:$0xff]
    %v1878 = vld [vmem:[#allocation11 + $0xc0] sm:$0xff]
    %v1879 = vld [vmem:[#allocation11 + $0xc8] sm:$0xff]
    %v1880 = vld [vmem:[#allocation11 + $0xd0] sm:$0xff]
    %v1881 = vld [vmem:[#allocation11 + $0xd8] sm:$0xff]
    %v1882 = vld [vmem:[#allocation11 + $0xe0] sm:$0xff]
    %v1883 = vld [vmem:[#allocation11 + $0xe8] sm:$0xff]
    %v1884 = vld [vmem:[#allocation11 + $0xf0] sm:$0xff]
    %v1885 = vld [vmem:[#allocation11 + $0xf8] sm:$0xff]
    %v1886 = vld [vmem:[#allocation13] sm:$0xff]
    %v1887 = vld [vmem:[#allocation13 + $0x8] sm:$0xff]
    %v1888 = vld [vmem:[#allocation13 + $0x10] sm:$0xff]
    %v1889 = vld [vmem:[#allocation13 + $0x18] sm:$0xff]
    %v1890 = vld [vmem:[#allocation13 + $0x20] sm:$0xff]
    %v1891 = vld [vmem:[#allocation13 + $0x28] sm:$0xff]
    %v1892 = vld [vmem:[#allocation13 + $0x30] sm:$0xff]
    %v1893 = vld [vmem:[#allocation13 + $0x38] sm:$0xff]
    %v1894 = vld [vmem:[#allocation13 + $0x40] sm:$0xff]
    %v1895 = vld [vmem:[#allocation13 + $0x48] sm:$0xff]
    %v1896 = vld [vmem:[#allocation13 + $0x50] sm:$0xff]
    %v1897 = vld [vmem:[#allocation13 + $0x58] sm:$0xff]
    %v1898 = vld [vmem:[#allocation13 + $0x60] sm:$0xff]
    %v1899 = vld [vmem:[#allocation13 + $0x68] sm:$0xff]
    %v1900 = vld [vmem:[#allocation13 + $0x70] sm:$0xff]
    %v1901 = vld [vmem:[#allocation13 + $0x78] sm:$0xff]
    %v1902 = vld [vmem:[#allocation13 + $0x80] sm:$0xff]
    %v1903 = vld [vmem:[#allocation13 + $0x88] sm:$0xff]
    %v1904 = vld [vmem:[#allocation13 + $0x90] sm:$0xff]
    %v1905 = vld [vmem:[#allocation13 + $0x98] sm:$0xff]
    %v1906 = vld [vmem:[#allocation13 + $0xa0] sm:$0xff]
    %v1907 = vld [vmem:[#allocation13 + $0xa8] sm:$0xff]
    %v1908 = vld [vmem:[#allocation13 + $0xb0] sm:$0xff]
    %v1909 = vld [vmem:[#allocation13 + $0xb8] sm:$0xff]
    %v1910 = vld [vmem:[#allocation13 + $0xc0] sm:$0xff]
    %v1911 = vld [vmem:[#allocation13 + $0xc8] sm:$0xff]
    %v1912 = vld [vmem:[#allocation13 + $0xd0] sm:$0xff]
    %v1913 = vld [vmem:[#allocation13 + $0xd8] sm:$0xff]
    %v1914 = vld [vmem:[#allocation13 + $0xe0] sm:$0xff]
    %v1915 = vld [vmem:[#allocation13 + $0xe8] sm:$0xff]
    %v1916 = vld [vmem:[#allocation13 + $0xf0] sm:$0xff]
    %v1917 = vld [vmem:[#allocation13 + $0xf8] sm:$0xff]
    %v1918 = vld [vmem:[%s6] sm:$0xf]
    %v1919 = vld [vmem:[#allocation14] sm:$0xff]
    %v1920 = vld [vmem:[#allocation14 + $0x8] sm:$0xff]
    %v1921 = vld [vmem:[#allocation14 + $0x10] sm:$0xff]
    %v1922 = vld [vmem:[#allocation14 + $0x18] sm:$0xff]
    %v1923 = vld [vmem:[#allocation14 + $0x20] sm:$0xff]
    %v1924 = vld [vmem:[#allocation14 + $0x28] sm:$0xff]
    %v1925 = vld [vmem:[#allocation14 + $0x30] sm:$0xff]
    %v1926 = vld [vmem:[#allocation14 + $0x38] sm:$0xff]
    %v1927 = vld [vmem:[#allocation14 + $0x40] sm:$0xff]
    %v1928 = vpack.c.bf16 %v1920, %v1919
    %v1929 = vpack.c.bf16 %v1922, %v1921
    %v1930 = vpack.c.bf16 %v1924, %v1923
    %v1931 = vpack.c.bf16 %v1926, %v1925
    %v1932 = vpack.c.bf16 %v1927, %v1927
    %v1934 = vlaneseq
    %v1935 = vshrl.u32 %v1934, 7
    %v1936 = vsub.s32 0, %v1935
    %v1937 = vrot.slane %v1918, %v1936
    %v1938 = vlaneseq
    %v1939 = vshrl.u32 %v1938, 7
    %v1940 = vsub.s32 1, %v1939
    %v1941 = vrot.slane %v1918, %v1940
    %v1942 = vlaneseq
    %v1943 = vshrl.u32 %v1942, 7
    %v1944 = vsub.s32 2, %v1943
    %v1945 = vrot.slane %v1918, %v1944
    %v1946 = vlaneseq
    %v1947 = vshrl.u32 %v1946, 7
    %v1948 = vsub.s32 3, %v1947
    %v1949 = vrot.slane %v1918, %v1948
    %v1986 = vunpack.c.l.b16 %v1854
    %v1987 = vunpack.c.h.b16 %v1854
    %v1988 = vunpack.c.l.b16 %v1855
    %v1989 = vunpack.c.h.b16 %v1855
    %v1990 = vunpack.c.l.b16 %v1856
    %v1991 = vunpack.c.h.b16 %v1856
    %v1992 = vunpack.c.l.b16 %v1857
    %v1993 = vunpack.c.h.b16 %v1857
    %v1994 = vunpack.c.l.b16 %v1858
    %v1995 = vunpack.c.h.b16 %v1858
    %v1996 = vunpack.c.l.b16 %v1859
    %v1997 = vunpack.c.h.b16 %v1859
    %v1998 = vunpack.c.l.b16 %v1860
    %v1999 = vunpack.c.h.b16 %v1860
    %v2000 = vunpack.c.l.b16 %v1861
    %v2001 = vunpack.c.h.b16 %v1861
    %v2002 = vunpack.c.l.b16 %v1862
    %v2003 = vunpack.c.h.b16 %v1862
    %v2004 = vunpack.c.l.b16 %v1863
    %v2005 = vunpack.c.h.b16 %v1863
    %v2006 = vunpack.c.l.b16 %v1864
    %v2007 = vunpack.c.h.b16 %v1864
    %v2008 = vunpack.c.l.b16 %v1865
    %v2009 = vunpack.c.h.b16 %v1865
    %v2010 = vunpack.c.l.b16 %v1866
    %v2011 = vunpack.c.h.b16 %v1866
    %v2012 = vunpack.c.l.b16 %v1867
    %v2013 = vunpack.c.h.b16 %v1867
    %v2014 = vunpack.c.l.b16 %v1868
    %v2015 = vunpack.c.h.b16 %v1868
    %v2016 = vunpack.c.l.b16 %v1869
    %v2017 = vunpack.c.h.b16 %v1869
    %v2018 = vunpack.c.l.b16 %v1870
    %v2019 = vunpack.c.h.b16 %v1870
    %v2020 = vunpack.c.l.b16 %v1871
    %v2021 = vunpack.c.h.b16 %v1871
    %v2022 = vunpack.c.l.b16 %v1872
    %v2023 = vunpack.c.h.b16 %v1872
    %v2024 = vunpack.c.l.b16 %v1873
    %v2025 = vunpack.c.h.b16 %v1873
    %v2026 = vunpack.c.l.b16 %v1874
    %v2027 = vunpack.c.h.b16 %v1874
    %v2028 = vunpack.c.l.b16 %v1875
    %v2029 = vunpack.c.h.b16 %v1875
    %v2030 = vunpack.c.l.b16 %v1876
    %v2031 = vunpack.c.h.b16 %v1876
    %v2032 = vunpack.c.l.b16 %v1877
    %v2033 = vunpack.c.h.b16 %v1877
    %v2034 = vunpack.c.l.b16 %v1878
    %v2035 = vunpack.c.h.b16 %v1878
    %v2036 = vunpack.c.l.b16 %v1879
    %v2037 = vunpack.c.h.b16 %v1879
    %v2038 = vunpack.c.l.b16 %v1880
    %v2039 = vunpack.c.h.b16 %v1880
    %v2040 = vunpack.c.l.b16 %v1881
    %v2041 = vunpack.c.h.b16 %v1881
    %v2042 = vunpack.c.l.b16 %v1882
    %v2043 = vunpack.c.h.b16 %v1882
    %v2044 = vunpack.c.l.b16 %v1883
    %v2045 = vunpack.c.h.b16 %v1883
    %v2046 = vunpack.c.l.b16 %v1884
    %v2047 = vunpack.c.h.b16 %v1884
    %v2048 = vunpack.c.l.b16 %v1885
    %v2049 = vunpack.c.h.b16 %v1885
    %v2050 = vpack.c.b16 %v1990, %v1986
    %v2051 = vpack.c.b16 %v1991, %v1987
    %v2052 = vpack.c.b16 %v1992, %v1988
    %v2053 = vpack.c.b16 %v1993, %v1989
    %v2054 = vpack.c.b16 %v1998, %v1994
    %v2055 = vpack.c.b16 %v1999, %v1995
    %v2056 = vpack.c.b16 %v2000, %v1996
    %v2057 = vpack.c.b16 %v2001, %v1997
    %v2058 = vpack.c.b16 %v2006, %v2002
    %v2059 = vpack.c.b16 %v2007, %v2003
    %v2060 = vpack.c.b16 %v2008, %v2004
    %v2061 = vpack.c.b16 %v2009, %v2005
    %v2062 = vpack.c.b16 %v2014, %v2010
    %v2063 = vpack.c.b16 %v2015, %v2011
    %v2064 = vpack.c.b16 %v2016, %v2012
    %v2065 = vpack.c.b16 %v2017, %v2013
    %v2066 = vpack.c.b16 %v2022, %v2018
    %v2067 = vpack.c.b16 %v2023, %v2019
    %v2068 = vpack.c.b16 %v2024, %v2020
    %v2069 = vpack.c.b16 %v2025, %v2021
    %v2070 = vpack.c.b16 %v2030, %v2026
    %v2071 = vpack.c.b16 %v2031, %v2027
    %v2072 = vpack.c.b16 %v2032, %v2028
    %v2073 = vpack.c.b16 %v2033, %v2029
    %v2074 = vpack.c.b16 %v2038, %v2034
    %v2075 = vpack.c.b16 %v2039, %v2035
    %v2076 = vpack.c.b16 %v2040, %v2036
    %v2077 = vpack.c.b16 %v2041, %v2037
    %v2078 = vpack.c.b16 %v2046, %v2042
    %v2079 = vpack.c.b16 %v2047, %v2043
    %v2080 = vpack.c.b16 %v2048, %v2044
    %v2081 = vpack.c.b16 %v2049, %v2045
    %2114 = vmatprep.subr.bf16.mxu0 %v2051
    %2115 = vmatpush1.bf16.msra.mxu0 %v2050
    %2116 = vmatprep.subr.bf16.mxu0 %v2055
    %2117 = vmatpush1.bf16.msra.mxu0 %v2054
    %2118 = vmatprep.subr.bf16.mxu0 %v2059
    %2119 = vmatpush1.bf16.msra.mxu0 %v2058
    %2120 = vmatprep.subr.bf16.mxu0 %v2063
    %2121 = vmatpush1.bf16.msra.mxu0 %v2062
    %2122 = vmatprep.subr.bf16.mxu0 %v2067
    %2123 = vmatpush1.bf16.msra.mxu0 %v2066
    %2124 = vmatprep.subr.bf16.mxu0 %v2071
    %2125 = vmatpush1.bf16.msra.mxu0 %v2070
    %2126 = vmatprep.subr.bf16.mxu0 %v2075
    %2127 = vmatpush1.bf16.msra.mxu0 %v2074
    %2128 = vmatprep.subr.bf16.mxu0 %v2079
    %2129 = vmatpush1.bf16.msra.mxu0 %v2078
    %2130 = vmatprep.subr.bf16.mxu0 0
    %2131 = vmatpush1.bf16.msra.mxu0 0
    %2132 = vmatprep.subr.bf16.mxu0 0
    %2133 = vmatpush1.bf16.msra.mxu0 0
    %2134 = vmatprep.subr.bf16.mxu0 0
    %2135 = vmatpush1.bf16.msra.mxu0 0
    %2136 = vmatprep.subr.bf16.mxu0 0
    %2137 = vmatpush1.bf16.msra.mxu0 0
    %2138 = vmatprep.subr.bf16.mxu0 0
    %2139 = vmatpush1.bf16.msra.mxu0 0
    %2140 = vmatprep.subr.bf16.mxu0 0
    %2141 = vmatpush1.bf16.msra.mxu0 0
    %2142 = vmatprep.subr.bf16.mxu0 0
    %2143 = vmatpush1.bf16.msra.mxu0 0
    %2144 = vmatprep.subr.bf16.mxu0 0
    %2145 = vmatpush1.bf16.msra.mxu0 0
    %2146 = vmatprep.mubr.bf16.mxu0 0
    %2147 = vmatmul.mubr.bf16.gmra.mrb[0].mxu0 %v1928
    %v2148 = vpop.f32.mrb[0].mxu0
    %v2149 = vadd.f32 %v1937, %v2148
    %v2150 = vpop.f32.mrb[0].mxu0
    %v2151 = vadd.f32 %v1941, %v2150
    %v2152 = vpop.f32.mrb[0].mxu0
    %v2153 = vadd.f32 %v1937, %v2152
    %v2154 = vpop.f32.mrb[0].mxu0
    %v2155 = vadd.f32 %v1941, %v2154
    %2156 = vmatprep.mubr.bf16.mxu0 0
    %2157 = vmatmul.mubr.bf16.gmra.mrb[0].mxu0 %v1929
    %v2158 = vpop.f32.mrb[0].mxu0
    %v2159 = vadd.f32 %v1937, %v2158
    %v2160 = vpop.f32.mrb[0].mxu0
    %v2161 = vadd.f32 %v1941, %v2160
    %v2162 = vpop.f32.mrb[0].mxu0
    %v2163 = vadd.f32 %v1937, %v2162
    %v2164 = vpop.f32.mrb[0].mxu0
    %v2165 = vadd.f32 %v1941, %v2164
    %2166 = vmatprep.mubr.bf16.mxu0 0
    %2167 = vmatmul.mubr.bf16.gmra.mrb[0].mxu0 %v1930
    %v2168 = vpop.f32.mrb[0].mxu0
    %v2169 = vadd.f32 %v1937, %v2168
    %v2170 = vpop.f32.mrb[0].mxu0
    %v2171 = vadd.f32 %v1941, %v2170
    %v2172 = vpop.f32.mrb[0].mxu0
    %v2173 = vadd.f32 %v1937, %v2172
    %v2174 = vpop.f32.mrb[0].mxu0
    %v2175 = vadd.f32 %v1941, %v2174
    %2176 = vmatprep.mubr.bf16.mxu0 0
    %2177 = vmatmul.mubr.bf16.gmra.mrb[0].mxu0 %v1931
    %v2178 = vpop.f32.mrb[0].mxu0
    %v2179 = vadd.f32 %v1937, %v2178
    %v2180 = vpop.f32.mrb[0].mxu0
    %v2181 = vadd.f32 %v1941, %v2180
    %v2182 = vpop.f32.mrb[0].mxu0
    %v2183 = vadd.f32 %v1937, %v2182
    %v2184 = vpop.f32.mrb[0].mxu0
    %v2185 = vadd.f32 %v1941, %v2184
    %2186 = vmatprep.mubr.bf16.mxu0 0
    %2187 = vmatmul.mubr.bf16.gmra.mrb[0].mxu0 %v1932
    %v2188 = vpop.f32.mrb[0].mxu0
    %v2189 = vadd.f32 %v1937, %v2188
    %v2190 = vpop.f32.mrb[0].mxu0
    %v2191 = vadd.f32 %v1941, %v2190
    %v2192 = vpop.f32.mrb[0].mxu0
    %v2193 = vpop.f32.mrb[0].mxu0
    %2194 = vdwg.mxu0
    %2195 = vmatprep.subr.bf16.mxu0 %v2053
    %2196 = vmatpush1.bf16.msra.mxu0 %v2052
    %2197 = vmatprep.subr.bf16.mxu0 %v2057
    %2198 = vmatpush1.bf16.msra.mxu0 %v2056
    %2199 = vmatprep.subr.bf16.mxu0 %v2061
    %2200 = vmatpush1.bf16.msra.mxu0 %v2060
    %2201 = vmatprep.subr.bf16.mxu0 %v2065
    %2202 = vmatpush1.bf16.msra.mxu0 %v2064
    %2203 = vmatprep.subr.bf16.mxu0 %v2069
    %2204 = vmatpush1.bf16.msra.mxu0 %v2068
    %2205 = vmatprep.subr.bf16.mxu0 %v2073
    %2206 = vmatpush1.bf16.msra.mxu0 %v2072
    %2207 = vmatprep.subr.bf16.mxu0 %v2077
    %2208 = vmatpush1.bf16.msra.mxu0 %v2076
    %2209 = vmatprep.subr.bf16.mxu0 %v2081
    %2210 = vmatpush1.bf16.msra.mxu0 %v2080
    %2211 = vmatprep.subr.bf16.mxu0 0
    %2212 = vmatpush1.bf16.msra.mxu0 0
    %2213 = vmatprep.subr.bf16.mxu0 0
    %2214 = vmatpush1.bf16.msra.mxu0 0
    %2215 = vmatprep.subr.bf16.mxu0 0
    %2216 = vmatpush1.bf16.msra.mxu0 0
    %2217 = vmatprep.subr.bf16.mxu0 0
    %2218 = vmatpush1.bf16.msra.mxu0 0
    %2219 = vmatprep.subr.bf16.mxu0 0
    %2220 = vmatpush1.bf16.msra.mxu0 0
    %2221 = vmatprep.subr.bf16.mxu0 0
    %2222 = vmatpush1.bf16.msra.mxu0 0
    %2223 = vmatprep.subr.bf16.mxu0 0
    %2224 = vmatpush1.bf16.msra.mxu0 0
    %2225 = vmatprep.subr.bf16.mxu0 0
    %2226 = vmatpush1.bf16.msra.mxu0 0
    %2227 = vmatprep.mubr.bf16.mxu0 0
    %2228 = vmatmul.mubr.bf16.gmra.mrb[0].mxu0 %v1928
    %v2229 = vpop.f32.mrb[0].mxu0
    %v2230 = vadd.f32 %v1945, %v2229
    %v2231 = vpop.f32.mrb[0].mxu0
    %v2232 = vadd.f32 %v1949, %v2231
    %v2233 = vpop.f32.mrb[0].mxu0
    %v2234 = vadd.f32 %v1945, %v2233
    %v2235 = vpop.f32.mrb[0].mxu0
    %v2236 = vadd.f32 %v1949, %v2235
    %2237 = vmatprep.mubr.bf16.mxu0 0
    %2238 = vmatmul.mubr.bf16.gmra.mrb[0].mxu0 %v1929
    %v2239 = vpop.f32.mrb[0].mxu0
    %v2240 = vadd.f32 %v1945, %v2239
    %v2241 = vpop.f32.mrb[0].mxu0
    %v2242 = vadd.f32 %v1949, %v2241
    %v2243 = vpop.f32.mrb[0].mxu0
    %v2244 = vadd.f32 %v1945, %v2243
    %v2245 = vpop.f32.mrb[0].mxu0
    %v2246 = vadd.f32 %v1949, %v2245
    %2247 = vmatprep.mubr.bf16.mxu0 0
    %2248 = vmatmul.mubr.bf16.gmra.mrb[0].mxu0 %v1930
    %v2249 = vpop.f32.mrb[0].mxu0
    %v2250 = vadd.f32 %v1945, %v2249
    %v2251 = vpop.f32.mrb[0].mxu0
    %v2252 = vadd.f32 %v1949, %v2251
    %v2253 = vpop.f32.mrb[0].mxu0
    %v2254 = vadd.f32 %v1945, %v2253
    %v2255 = vpop.f32.mrb[0].mxu0
    %v2256 = vadd.f32 %v1949, %v2255
    %2257 = vmatprep.mubr.bf16.mxu0 0
    %2258 = vmatmul.mubr.bf16.gmra.mrb[0].mxu0 %v1931
    %v2259 = vpop.f32.mrb[0].mxu0
    %v2260 = vadd.f32 %v1945, %v2259
    %v2261 = vpop.f32.mrb[0].mxu0
    %v2262 = vadd.f32 %v1949, %v2261
    %v2263 = vpop.f32.mrb[0].mxu0
    %v2264 = vadd.f32 %v1945, %v2263
    %v2265 = vpop.f32.mrb[0].mxu0
    %v2266 = vadd.f32 %v1949, %v2265
    %2267 = vmatprep.mubr.bf16.mxu0 0
    %2268 = vmatmul.mubr.bf16.gmra.mrb[0].mxu0 %v1932
    %v2269 = vpop.f32.mrb[0].mxu0
    %v2270 = vadd.f32 %v1945, %v2269
    %v2271 = vpop.f32.mrb[0].mxu0
    %v2272 = vadd.f32 %v1949, %v2271
    %v2273 = vpop.f32.mrb[0].mxu0
    %v2274 = vpop.f32.mrb[0].mxu0
    %2275 = vdwg.mxu0
    %2276 = vst [vmem:[#allocation2] sm:$0xff] %v2149
    %2277 = vst [vmem:[#allocation2 + $0x8] sm:$0xff] %v2151
    %2278 = vst [vmem:[#allocation2 + $0x10] sm:$0xff] %v2230
    %2279 = vst [vmem:[#allocation2 + $0x18] sm:$0xff] %v2232
    %2280 = vst [vmem:[#allocation2 + $0x20] sm:$0xff] %v2153
    %2281 = vst [vmem:[#allocation2 + $0x28] sm:$0xff] %v2155
    %2282 = vst [vmem:[#allocation2 + $0x30] sm:$0xff] %v2234
    %2283 = vst [vmem:[#allocation2 + $0x38] sm:$0xff] %v2236
    %2284 = vst [vmem:[#allocation2 + $0x40] sm:$0xff] %v2159
    %2285 = vst [vmem:[#allocation2 + $0x48] sm:$0xff] %v2161
    %2286 = vst [vmem:[#allocation2 + $0x50] sm:$0xff] %v2240
    %2287 = vst [vmem:[#allocation2 + $0x58] sm:$0xff] %v2242
    %2288 = vst [vmem:[#allocation2 + $0x60] sm:$0xff] %v2163
    %2289 = vst [vmem:[#allocation2 + $0x68] sm:$0xff] %v2165
    %2290 = vst [vmem:[#allocation2 + $0x70] sm:$0xff] %v2244
    %2291 = vst [vmem:[#allocation2 + $0x78] sm:$0xff] %v2246
    %2292 = vst [vmem:[#allocation2 + $0x80] sm:$0xff] %v2169
    %2293 = vst [vmem:[#allocation2 + $0x88] sm:$0xff] %v2171
    %2294 = vst [vmem:[#allocation2 + $0x90] sm:$0xff] %v2250
    %2295 = vst [vmem:[#allocation2 + $0x98] sm:$0xff] %v2252
    %2296 = vst [vmem:[#allocation2 + $0xa0] sm:$0xff] %v2173
    %2297 = vst [vmem:[#allocation2 + $0xa8] sm:$0xff] %v2175
    %2298 = vst [vmem:[#allocation2 + $0xb0] sm:$0xff] %v2254
    %2299 = vst [vmem:[#allocation2 + $0xb8] sm:$0xff] %v2256
    %2300 = vst [vmem:[#allocation2 + $0xc0] sm:$0xff] %v2179
    %2301 = vst [vmem:[#allocation2 + $0xc8] sm:$0xff] %v2181
    %2302 = vst [vmem:[#allocation2 + $0xd0] sm:$0xff] %v2260
    %2303 = vst [vmem:[#allocation2 + $0xd8] sm:$0xff] %v2262
    %2304 = vst [vmem:[#allocation2 + $0xe0] sm:$0xff] %v2183
    %2305 = vst [vmem:[#allocation2 + $0xe8] sm:$0xff] %v2185
    %2306 = vst [vmem:[#allocation2 + $0xf0] sm:$0xff] %v2264
    %2307 = vst [vmem:[#allocation2 + $0xf8] sm:$0xff] %v2266
    %2308 = vst [vmem:[#allocation2 + $0x100] sm:$0xff] %v2189
    %2309 = vst [vmem:[#allocation2 + $0x108] sm:$0xff] %v2191
    %2310 = vst [vmem:[#allocation2 + $0x110] sm:$0xff] %v2270
    %2311 = vst [vmem:[#allocation2 + $0x118] sm:$0xff] %v2272
    %2312 = vst [vmem:[#allocation3] sm:$0xff] 0.0
    %2313 = vst [vmem:[#allocation4] sm:$0xff] 0.0
    %v2314 = vld [vmem:[%s581] sm:$0xff]
    %v2315 = vld [vmem:[%s581 + $0x8] sm:$0xff]
    %v2316 = vld [vmem:[%s581 + $0x10] sm:$0xff]
    %v2317 = vld [vmem:[%s581 + $0x18] sm:$0xff]
    %v2318 = vld [vmem:[#allocation3] sm:$0xff]
    %v2319 = vpack.c.bf16 %v2318, %v2318
    %v2352 = vunpack.c.l.b16 %v1886
    %v2353 = vunpack.c.h.b16 %v1886
    %v2354 = vunpack.c.l.b16 %v1887
    %v2355 = vunpack.c.h.b16 %v1887
    %v2356 = vunpack.c.l.b16 %v1888
    %v2357 = vunpack.c.h.b16 %v1888
    %v2358 = vunpack.c.l.b16 %v1889
    %v2359 = vunpack.c.h.b16 %v1889
    %v2360 = vunpack.c.l.b16 %v1890
    %v2361 = vunpack.c.h.b16 %v1890
    %v2362 = vunpack.c.l.b16 %v1891
    %v2363 = vunpack.c.h.b16 %v1891
    %v2364 = vunpack.c.l.b16 %v1892
    %v2365 = vunpack.c.h.b16 %v1892
    %v2366 = vunpack.c.l.b16 %v1893
    %v2367 = vunpack.c.h.b16 %v1893
    %v2368 = vunpack.c.l.b16 %v1894
    %v2369 = vunpack.c.h.b16 %v1894
    %v2370 = vunpack.c.l.b16 %v1895
    %v2371 = vunpack.c.h.b16 %v1895
    %v2372 = vunpack.c.l.b16 %v1896
    %v2373 = vunpack.c.h.b16 %v1896
    %v2374 = vunpack.c.l.b16 %v1897
    %v2375 = vunpack.c.h.b16 %v1897
    %v2376 = vunpack.c.l.b16 %v1898
    %v2377 = vunpack.c.h.b16 %v1898
    %v2378 = vunpack.c.l.b16 %v1899
    %v2379 = vunpack.c.h.b16 %v1899
    %v2380 = vunpack.c.l.b16 %v1900
    %v2381 = vunpack.c.h.b16 %v1900
    %v2382 = vunpack.c.l.b16 %v1901
    %v2383 = vunpack.c.h.b16 %v1901
    %v2384 = vunpack.c.l.b16 %v1902
    %v2385 = vunpack.c.h.b16 %v1902
    %v2386 = vunpack.c.l.b16 %v1903
    %v2387 = vunpack.c.h.b16 %v1903
    %v2388 = vunpack.c.l.b16 %v1904
    %v2389 = vunpack.c.h.b16 %v1904
    %v2390 = vunpack.c.l.b16 %v1905
    %v2391 = vunpack.c.h.b16 %v1905
    %v2392 = vunpack.c.l.b16 %v1906
    %v2393 = vunpack.c.h.b16 %v1906
    %v2394 = vunpack.c.l.b16 %v1907
    %v2395 = vunpack.c.h.b16 %v1907
    %v2396 = vunpack.c.l.b16 %v1908
    %v2397 = vunpack.c.h.b16 %v1908
    %v2398 = vunpack.c.l.b16 %v1909
    %v2399 = vunpack.c.h.b16 %v1909
    %v2400 = vunpack.c.l.b16 %v1910
    %v2401 = vunpack.c.h.b16 %v1910
    %v2402 = vunpack.c.l.b16 %v1911
    %v2403 = vunpack.c.h.b16 %v1911
    %v2404 = vunpack.c.l.b16 %v1912
    %v2405 = vunpack.c.h.b16 %v1912
    %v2406 = vunpack.c.l.b16 %v1913
    %v2407 = vunpack.c.h.b16 %v1913
    %v2408 = vunpack.c.l.b16 %v1914
    %v2409 = vunpack.c.h.b16 %v1914
    %v2410 = vunpack.c.l.b16 %v1915
    %v2411 = vunpack.c.h.b16 %v1915
    %v2412 = vunpack.c.l.b16 %v1916
    %v2413 = vunpack.c.h.b16 %v1916
    %v2414 = vunpack.c.l.b16 %v1917
    %v2415 = vunpack.c.h.b16 %v1917
    %v2416 = vpack.c.b16 %v2356, %v2352
    %v2417 = vpack.c.b16 %v2357, %v2353
    %v2418 = vpack.c.b16 %v2358, %v2354
    %v2419 = vpack.c.b16 %v2359, %v2355
    %v2420 = vpack.c.b16 %v2364, %v2360
    %v2421 = vpack.c.b16 %v2365, %v2361
    %v2422 = vpack.c.b16 %v2366, %v2362
    %v2423 = vpack.c.b16 %v2367, %v2363
    %v2424 = vpack.c.b16 %v2372, %v2368
    %v2425 = vpack.c.b16 %v2373, %v2369
    %v2426 = vpack.c.b16 %v2374, %v2370
    %v2427 = vpack.c.b16 %v2375, %v2371
    %v2428 = vpack.c.b16 %v2380, %v2376
    %v2429 = vpack.c.b16 %v2381, %v2377
    %v2430 = vpack.c.b16 %v2382, %v2378
    %v2431 = vpack.c.b16 %v2383, %v2379
    %v2432 = vpack.c.b16 %v2388, %v2384
    %v2433 = vpack.c.b16 %v2389, %v2385
    %v2434 = vpack.c.b16 %v2390, %v2386
    %v2435 = vpack.c.b16 %v2391, %v2387
    %v2436 = vpack.c.b16 %v2396, %v2392
    %v2437 = vpack.c.b16 %v2397, %v2393
    %v2438 = vpack.c.b16 %v2398, %v2394
    %v2439 = vpack.c.b16 %v2399, %v2395
    %v2440 = vpack.c.b16 %v2404, %v2400
    %v2441 = vpack.c.b16 %v2405, %v2401
    %v2442 = vpack.c.b16 %v2406, %v2402
    %v2443 = vpack.c.b16 %v2407, %v2403
    %v2444 = vpack.c.b16 %v2412, %v2408
    %v2445 = vpack.c.b16 %v2413, %v2409
    %v2446 = vpack.c.b16 %v2414, %v2410
    %v2447 = vpack.c.b16 %v2415, %v2411
    %2480 = vmatprep.subr.bf16.mxu0 %v2417
    %2481 = vmatpush1.bf16.msra.mxu0 %v2416
    %2482 = vmatprep.subr.bf16.mxu0 %v2421
    %2483 = vmatpush1.bf16.msra.mxu0 %v2420
    %2484 = vmatprep.subr.bf16.mxu0 %v2425
    %2485 = vmatpush1.bf16.msra.mxu0 %v2424
    %2486 = vmatprep.subr.bf16.mxu0 %v2429
    %2487 = vmatpush1.bf16.msra.mxu0 %v2428
    %2488 = vmatprep.subr.bf16.mxu0 %v2433
    %2489 = vmatpush1.bf16.msra.mxu0 %v2432
    %2490 = vmatprep.subr.bf16.mxu0 %v2437
    %2491 = vmatpush1.bf16.msra.mxu0 %v2436
    %2492 = vmatprep.subr.bf16.mxu0 %v2441
    %2493 = vmatpush1.bf16.msra.mxu0 %v2440
    %2494 = vmatprep.subr.bf16.mxu0 %v2445
    %2495 = vmatpush1.bf16.msra.mxu0 %v2444
    %2496 = vmatprep.subr.bf16.mxu0 0
    %2497 = vmatpush1.bf16.msra.mxu0 0
    %2498 = vmatprep.subr.bf16.mxu0 0
    %2499 = vmatpush1.bf16.msra.mxu0 0
    %2500 = vmatprep.subr.bf16.mxu0 0
    %2501 = vmatpush1.bf16.msra.mxu0 0
    %2502 = vmatprep.subr.bf16.mxu0 0
    %2503 = vmatpush1.bf16.msra.mxu0 0
    %2504 = vmatprep.subr.bf16.mxu0 0
    %2505 = vmatpush1.bf16.msra.mxu0 0
    %2506 = vmatprep.subr.bf16.mxu0 0
    %2507 = vmatpush1.bf16.msra.mxu0 0
    %2508 = vmatprep.subr.bf16.mxu0 0
    %2509 = vmatpush1.bf16.msra.mxu0 0
    %2510 = vmatprep.subr.bf16.mxu0 0
    %2511 = vmatpush1.bf16.msra.mxu0 0
    %2512 = vmatprep.mubr.bf16.mxu0 0
    %2513 = vmatmul.mubr.bf16.gmra.mrb[0].mxu0 %v2319
    %v2514 = vpop.f32.mrb[0].mxu0
    %v2515 = vadd.f32 0.0, %v2514
    %v2516 = vpop.f32.mrb[0].mxu0
    %v2517 = vadd.f32 0.0, %v2516
    %v2518 = vpop.f32.mrb[0].mxu0
    %v2519 = vpop.f32.mrb[0].mxu0
    %2520 = vdwg.mxu0
    %2521 = vmatprep.subr.bf16.mxu0 %v2419
    %2522 = vmatpush1.bf16.msra.mxu0 %v2418
    %2523 = vmatprep.subr.bf16.mxu0 %v2423
    %2524 = vmatpush1.bf16.msra.mxu0 %v2422
    %2525 = vmatprep.subr.bf16.mxu0 %v2427
    %2526 = vmatpush1.bf16.msra.mxu0 %v2426
    %2527 = vmatprep.subr.bf16.mxu0 %v2431
    %2528 = vmatpush1.bf16.msra.mxu0 %v2430
    %2529 = vmatprep.subr.bf16.mxu0 %v2435
    %2530 = vmatpush1.bf16.msra.mxu0 %v2434
    %2531 = vmatprep.subr.bf16.mxu0 %v2439
    %2532 = vmatpush1.bf16.msra.mxu0 %v2438
    %2533 = vmatprep.subr.bf16.mxu0 %v2443
    %2534 = vmatpush1.bf16.msra.mxu0 %v2442
    %2535 = vmatprep.subr.bf16.mxu0 %v2447
    %2536 = vmatpush1.bf16.msra.mxu0 %v2446
    %2537 = vmatprep.subr.bf16.mxu0 0
    %2538 = vmatpush1.bf16.msra.mxu0 0
    %2539 = vmatprep.subr.bf16.mxu0 0
    %2540 = vmatpush1.bf16.msra.mxu0 0
    %2541 = vmatprep.subr.bf16.mxu0 0
    %2542 = vmatpush1.bf16.msra.mxu0 0
    %2543 = vmatprep.subr.bf16.mxu0 0
    %2544 = vmatpush1.bf16.msra.mxu0 0
    %2545 = vmatprep.subr.bf16.mxu0 0
    %2546 = vmatpush1.bf16.msra.mxu0 0
    %2547 = vmatprep.subr.bf16.mxu0 0
    %2548 = vmatpush1.bf16.msra.mxu0 0
    %2549 = vmatprep.subr.bf16.mxu0 0
    %2550 = vmatpush1.bf16.msra.mxu0 0
    %2551 = vmatprep.subr.bf16.mxu0 0
    %2552 = vmatpush1.bf16.msra.mxu0 0
    %2553 = vmatprep.mubr.bf16.mxu0 0
    %2554 = vmatmul.mubr.bf16.gmra.mrb[0].mxu0 %v2319
    %v2555 = vpop.f32.mrb[0].mxu0
    %v2556 = vadd.f32 0.0, %v2555
    %v2557 = vpop.f32.mrb[0].mxu0
    %v2558 = vadd.f32 0.0, %v2557
    %v2559 = vpop.f32.mrb[0].mxu0
    %v2560 = vpop.f32.mrb[0].mxu0
    %2561 = vdwg.mxu0
    %v2562 = vadd.f32 %v2314, %v2515
    %v2563 = vadd.f32 %v2315, %v2517
    %v2564 = vadd.f32 %v2316, %v2556
    %v2565 = vadd.f32 %v2317, %v2558
    %v2566 = vxor.u32 %v2562, 2147483648
    %v2567 = vmul.f32 %v2566, 1.442695
    %v2568 = vpow.pop %v2567
    %v2569 = vadd.f32 %v2568, 1.0
    %v2570 = vrcp.pop %v2569
    %v2571 = vmul.f32 1.0, %v2570
    %v2572 = vxor.u32 %v2563, 2147483648
    %v2573 = vmul.f32 %v2572, 1.442695
    %v2574 = vpow.pop %v2573
    %v2575 = vadd.f32 %v2574, 1.0
    %v2576 = vrcp.pop %v2575
    %v2577 = vmul.f32 1.0, %v2576
    %v2578 = vtanh.pop %v2564
    %v2579 = vxor.u32 %v2565, 2147483648
    %v2580 = vmul.f32 %v2579, 1.442695
    %v2581 = vpow.pop %v2580
    %v2582 = vadd.f32 %v2581, 1.0
    %v2583 = vrcp.pop %v2582
    %v2584 = vmul.f32 1.0, %v2583
    %v2585 = vld [vmem:[#allocation4] sm:$0xff]
    %v2586 = vmul.f32 %v2577, %v2585
    %v2587 = vmul.f32 %v2571, %v2578
    %v2588 = vadd.f32 %v2586, %v2587
    %v2589 = vtanh.pop %v2588
    %v2590 = vmul.f32 %v2584, %v2589
    %2591 = vst [vmem:[#allocation4] sm:$0xff] %v2588
    %2592 = vst [vmem:[#allocation3] sm:$0xff] %v2590
    %2593 = vst [vmem:[#allocation14] sm:$0xff] %v2590
    %v2594 = vld [vmem:[%s864] sm:$0xff]
    %v2595 = vld [vmem:[%s864 + $0x8] sm:$0xff]
    %v2596 = vld [vmem:[%s864 + $0x10] sm:$0xff]
    %v2597 = vld [vmem:[%s864 + $0x18] sm:$0xff]
    %v2598 = vld [vmem:[#allocation3] sm:$0xff]
    %v2599 = vpack.c.bf16 %v2598, %v2598
    %2600 = vmatprep.subr.bf16.mxu0 %v2417
    %2601 = vmatpush1.bf16.msra.mxu0 %v2416
    %2602 = vmatprep.subr.bf16.mxu0 %v2421
    %2603 = vmatpush1.bf16.msra.mxu0 %v2420
    %2604 = vmatprep.subr.bf16.mxu0 %v2425
    %2605 = vmatpush1.bf16.msra.mxu0 %v2424
    %2606 = vmatprep.subr.bf16.mxu0 %v2429
    %2607 = vmatpush1.bf16.msra.mxu0 %v2428
    %2608 = vmatprep.subr.bf16.mxu0 %v2433
    %2609 = vmatpush1.bf16.msra.mxu0 %v2432
    %2610 = vmatprep.subr.bf16.mxu0 %v2437
    %2611 = vmatpush1.bf16.msra.mxu0 %v2436
    %2612 = vmatprep.subr.bf16.mxu0 %v2441
    %2613 = vmatpush1.bf16.msra.mxu0 %v2440
    %2614 = vmatprep.subr.bf16.mxu0 %v2445
    %2615 = vmatpush1.bf16.msra.mxu0 %v2444
    %2616 = vmatprep.subr.bf16.mxu0 0
    %2617 = vmatpush1.bf16.msra.mxu0 0
    %2618 = vmatprep.subr.bf16.mxu0 0
    %2619 = vmatpush1.bf16.msra.mxu0 0
    %2620 = vmatprep.subr.bf16.mxu0 0
    %2621 = vmatpush1.bf16.msra.mxu0 0
    %2622 = vmatprep.subr.bf16.mxu0 0
    %2623 = vmatpush1.bf16.msra.mxu0 0
    %2624 = vmatprep.subr.bf16.mxu0 0
    %2625 = vmatpush1.bf16.msra.mxu0 0
    %2626 = vmatprep.subr.bf16.mxu0 0
    %2627 = vmatpush1.bf16.msra.mxu0 0
    %2628 = vmatprep.subr.bf16.mxu0 0
    %2629 = vmatpush1.bf16.msra.mxu0 0
    %2630 = vmatprep.subr.bf16.mxu0 0
    %2631 = vmatpush1.bf16.msra.mxu0 0
    %2632 = vmatprep.mubr.bf16.mxu0 0
    %2633 = vmatmul.mubr.bf16.gmra.mrb[0].mxu0 %v2599
    %v2634 = vpop.f32.mrb[0].mxu0
    %v2635 = vadd.f32 0.0, %v2634
    %v2636 = vpop.f32.mrb[0].mxu0
    %v2637 = vadd.f32 0.0, %v2636
    %v2638 = vpop.f32.mrb[0].mxu0
    %v2639 = vpop.f32.mrb[0].mxu0
    %2640 = vdwg.mxu0
    %2641 = vmatprep.subr.bf16.mxu0 %v2419
    %2642 = vmatpush1.bf16.msra.mxu0 %v2418
    %2643 = vmatprep.subr.bf16.mxu0 %v2423
    %2644 = vmatpush1.bf16.msra.mxu0 %v2422
    %2645 = vmatprep.subr.bf16.mxu0 %v2427
    %2646 = vmatpush1.bf16.msra.mxu0 %v2426
    %2647 = vmatprep.subr.bf16.mxu0 %v2431
    %2648 = vmatpush1.bf16.msra.mxu0 %v2430
    %2649 = vmatprep.subr.bf16.mxu0 %v2435
    %2650 = vmatpush1.bf16.msra.mxu0 %v2434
    %2651 = vmatprep.subr.bf16.mxu0 %v2439
    %2652 = vmatpush1.bf16.msra.mxu0 %v2438
    %2653 = vmatprep.subr.bf16.mxu0 %v2443
    %2654 = vmatpush1.bf16.msra.mxu0 %v2442
    %2655 = vmatprep.subr.bf16.mxu0 %v2447
    %2656 = vmatpush1.bf16.msra.mxu0 %v2446
    %2657 = vmatprep.subr.bf16.mxu0 0
    %2658 = vmatpush1.bf16.msra.mxu0 0
    %2659 = vmatprep.subr.bf16.mxu0 0
    %2660 = vmatpush1.bf16.msra.mxu0 0
    %2661 = vmatprep.subr.bf16.mxu0 0
    %2662 = vmatpush1.bf16.msra.mxu0 0
    %2663 = vmatprep.subr.bf16.mxu0 0
    %2664 = vmatpush1.bf16.msra.mxu0 0
    %2665 = vmatprep.subr.bf16.mxu0 0
    %2666 = vmatpush1.bf16.msra.mxu0 0
    %2667 = vmatprep.subr.bf16.mxu0 0
    %2668 = vmatpush1.bf16.msra.mxu0 0
    %2669 = vmatprep.subr.bf16.mxu0 0
    %2670 = vmatpush1.bf16.msra.mxu0 0
    %2671 = vmatprep.subr.bf16.mxu0 0
    %2672 = vmatpush1.bf16.msra.mxu0 0
    %2673 = vmatprep.mubr.bf16.mxu0 0
    %2674 = vmatmul.mubr.bf16.gmra.mrb[0].mxu0 %v2599
    %v2675 = vpop.f32.mrb[0].mxu0
    %v2676 = vadd.f32 0.0, %v2675
    %v2677 = vpop.f32.mrb[0].mxu0
    %v2678 = vadd.f32 0.0, %v2677
    %v2679 = vpop.f32.mrb[0].mxu0
    %v2680 = vpop.f32.mrb[0].mxu0
    %2681 = vdwg.mxu0
    %v2682 = vadd.f32 %v2594, %v2635
    %v2683 = vadd.f32 %v2595, %v2637
    %v2684 = vadd.f32 %v2596, %v2676
    %v2685 = vadd.f32 %v2597, %v2678
    %v2686 = vxor.u32 %v2682, 2147483648
    %v2687 = vmul.f32 %v2686, 1.442695
    %v2688 = vpow.pop %v2687
    %v2689 = vadd.f32 %v2688, 1.0
    %v2690 = vrcp.pop %v2689
    %v2691 = vmul.f32 1.0, %v2690
    %v2692 = vxor.u32 %v2683, 2147483648
    %v2693 = vmul.f32 %v2692, 1.442695
    %v2694 = vpow.pop %v2693
    %v2695 = vadd.f32 %v2694, 1.0
    %v2696 = vrcp.pop %v2695
    %v2697 = vmul.f32 1.0, %v2696
    %v2698 = vtanh.pop %v2684
    %v2699 = vxor.u32 %v2685, 2147483648
    %v2700 = vmul.f32 %v2699, 1.442695
    %v2701 = vpow.pop %v2700
    %v2702 = vadd.f32 %v2701, 1.0
    %v2703 = vrcp.pop %v2702
    %v2704 = vmul.f32 1.0, %v2703
    %v2705 = vld [vmem:[#allocation4] sm:$0xff]
    %v2706 = vmul.f32 %v2697, %v2705
    %v2707 = vmul.f32 %v2691, %v2698
    %v2708 = vadd.f32 %v2706, %v2707
    %v2709 = vtanh.pop %v2708
    %v2710 = vmul.f32 %v2704, %v2709
    %2711 = vst [vmem:[#allocation4] sm:$0xff] %v2708
    %2712 = vst [vmem:[#allocation3] sm:$0xff] %v2710
    %2713 = vst [vmem:[%s984] sm:$0xff] %v2710
    %v2714 = vld [vmem:[%s988] sm:$0xff]
    %v2715 = vld [vmem:[%s988 + $0x8] sm:$0xff]
    %v2716 = vld [vmem:[%s988 + $0x10] sm:$0xff]
    %v2717 = vld [vmem:[%s988 + $0x18] sm:$0xff]
    %v2718 = vld [vmem:[#allocation3] sm:$0xff]
    %v2719 = vpack.c.bf16 %v2718, %v2718
    %2720 = vmatprep.subr.bf16.mxu0 %v2417
    %2721 = vmatpush1.bf16.msra.mxu0 %v2416
    %2722 = vmatprep.subr.bf16.mxu0 %v2421
    %2723 = vmatpush1.bf16.msra.mxu0 %v2420
    %2724 = vmatprep.subr.bf16.mxu0 %v2425
    %2725 = vmatpush1.bf16.msra.mxu0 %v2424
    %2726 = vmatprep.subr.bf16.mxu0 %v2429
    %2727 = vmatpush1.bf16.msra.mxu0 %v2428
    %2728 = vmatprep.subr.bf16.mxu0 %v2433
    %2729 = vmatpush1.bf16.msra.mxu0 %v2432
    %2730 = vmatprep.subr.bf16.mxu0 %v2437
    %2731 = vmatpush1.bf16.msra.mxu0 %v2436
    %2732 = vmatprep.subr.bf16.mxu0 %v2441
    %2733 = vmatpush1.bf16.msra.mxu0 %v2440
    %2734 = vmatprep.subr.bf16.mxu0 %v2445
    %2735 = vmatpush1.bf16.msra.mxu0 %v2444
    %2736 = vmatprep.subr.bf16.mxu0 0
    %2737 = vmatpush1.bf16.msra.mxu0 0
    %2738 = vmatprep.subr.bf16.mxu0 0
    %2739 = vmatpush1.bf16.msra.mxu0 0
    %2740 = vmatprep.subr.bf16.mxu0 0
    %2741 = vmatpush1.bf16.msra.mxu0 0
    %2742 = vmatprep.subr.bf16.mxu0 0
    %2743 = vmatpush1.bf16.msra.mxu0 0
    %2744 = vmatprep.subr.bf16.mxu0 0
    %2745 = vmatpush1.bf16.msra.mxu0 0
    %2746 = vmatprep.subr.bf16.mxu0 0
    %2747 = vmatpush1.bf16.msra.mxu0 0
    %2748 = vmatprep.subr.bf16.mxu0 0
    %2749 = vmatpush1.bf16.msra.mxu0 0
    %2750 = vmatprep.subr.bf16.mxu0 0
    %2751 = vmatpush1.bf16.msra.mxu0 0
    %2752 = vmatprep.mubr.bf16.mxu0 0
    %2753 = vmatmul.mubr.bf16.gmra.mrb[0].mxu0 %v2719
    %v2754 = vpop.f32.mrb[0].mxu0
    %v2755 = vadd.f32 0.0, %v2754
    %v2756 = vpop.f32.mrb[0].mxu0
    %v2757 = vadd.f32 0.0, %v2756
    %v2758 = vpop.f32.mrb[0].mxu0
    %v2759 = vpop.f32.mrb[0].mxu0
    %2760 = vdwg.mxu0
    %2761 = vmatprep.subr.bf16.mxu0 %v2419
    %2762 = vmatpush1.bf16.msra.mxu0 %v2418
    %2763 = vmatprep.subr.bf16.mxu0 %v2423
    %2764 = vmatpush1.bf16.msra.mxu0 %v2422
    %2765 = vmatprep.subr.bf16.mxu0 %v2427
    %2766 = vmatpush1.bf16.msra.mxu0 %v2426
    %2767 = vmatprep.subr.bf16.mxu0 %v2431
    %2768 = vmatpush1.bf16.msra.mxu0 %v2430
    %2769 = vmatprep.subr.bf16.mxu0 %v2435
    %2770 = vmatpush1.bf16.msra.mxu0 %v2434
    %2771 = vmatprep.subr.bf16.mxu0 %v2439
    %2772 = vmatpush1.bf16.msra.mxu0 %v2438
    %2773 = vmatprep.subr.bf16.mxu0 %v2443
    %2774 = vmatpush1.bf16.msra.mxu0 %v2442
    %2775 = vmatprep.subr.bf16.mxu0 %v2447
    %2776 = vmatpush1.bf16.msra.mxu0 %v2446
    %2777 = vmatprep.subr.bf16.mxu0 0
    %2778 = vmatpush1.bf16.msra.mxu0 0
    %2779 = vmatprep.subr.bf16.mxu0 0
    %2780 = vmatpush1.bf16.msra.mxu0 0
    %2781 = vmatprep.subr.bf16.mxu0 0
    %2782 = vmatpush1.bf16.msra.mxu0 0
    %2783 = vmatprep.subr.bf16.mxu0 0
    %2784 = vmatpush1.bf16.msra.mxu0 0
    %2785 = vmatprep.subr.bf16.mxu0 0
    %2786 = vmatpush1.bf16.msra.mxu0 0
    %2787 = vmatprep.subr.bf16.mxu0 0
    %2788 = vmatpush1.bf16.msra.mxu0 0
    %2789 = vmatprep.subr.bf16.mxu0 0
    %2790 = vmatpush1.bf16.msra.mxu0 0
    %2791 = vmatprep.subr.bf16.mxu0 0
    %2792 = vmatpush1.bf16.msra.mxu0 0
    %2793 = vmatprep.mubr.bf16.mxu0 0
    %2794 = vmatmul.mubr.bf16.gmra.mrb[0].mxu0 %v2719
    %v2795 = vpop.f32.mrb[0].mxu0
    %v2796 = vadd.f32 0.0, %v2795
    %v2797 = vpop.f32.mrb[0].mxu0
    %v2798 = vadd.f32 0.0, %v2797
    %v2799 = vpop.f32.mrb[0].mxu0
    %v2800 = vpop.f32.mrb[0].mxu0
    %2801 = vdwg.mxu0
    %v2802 = vadd.f32 %v2714, %v2755
    %v2803 = vadd.f32 %v2715, %v2757
    %v2804 = vadd.f32 %v2716, %v2796
    %v2805 = vadd.f32 %v2717, %v2798
    %v2806 = vxor.u32 %v2802, 2147483648
    %v2807 = vmul.f32 %v2806, 1.442695
    %v2808 = vpow.pop %v2807
    %v2809 = vadd.f32 %v2808, 1.0
    %v2810 = vrcp.pop %v2809
    %v2811 = vmul.f32 1.0, %v2810
    %v2812 = vxor.u32 %v2803, 2147483648
    %v2813 = vmul.f32 %v2812, 1.442695
    %v2814 = vpow.pop %v2813
    %v2815 = vadd.f32 %v2814, 1.0
    %v2816 = vrcp.pop %v2815
    %v2817 = vmul.f32 1.0, %v2816
    %v2818 = vtanh.pop %v2804
    %v2819 = vxor.u32 %v2805, 2147483648
    %v2820 = vmul.f32 %v2819, 1.442695
    %v2821 = vpow.pop %v2820
    %v2822 = vadd.f32 %v2821, 1.0
    %v2823 = vrcp.pop %v2822
    %v2824 = vmul.f32 1.0, %v2823
    %v2825 = vld [vmem:[#allocation4] sm:$0xff]
    %v2826 = vmul.f32 %v2817, %v2825
    %v2827 = vmul.f32 %v2811, %v2818
    %v2828 = vadd.f32 %v2826, %v2827
    %v2829 = vtanh.pop %v2828
    %v2830 = vmul.f32 %v2824, %v2829
    %2831 = vst [vmem:[#allocation4] sm:$0xff] %v2828
    %2832 = vst [vmem:[#allocation3] sm:$0xff] %v2830
    %2833 = vst [vmem:[%s1108] sm:$0xff] %v2830
    %v2834 = vld [vmem:[%s1112] sm:$0xff]
    %v2835 = vld [vmem:[%s1112 + $0x8] sm:$0xff]
    %v2836 = vld [vmem:[%s1112 + $0x10] sm:$0xff]
    %v2837 = vld [vmem:[%s1112 + $0x18] sm:$0xff]
    %v2838 = vld [vmem:[#allocation3] sm:$0xff]
    %v2839 = vpack.c.bf16 %v2838, %v2838
    %2840 = vmatprep.subr.bf16.mxu0 %v2417
    %2841 = vmatpush1.bf16.msra.mxu0 %v2416
    %2842 = vmatprep.subr.bf16.mxu0 %v2421
    %2843 = vmatpush1.bf16.msra.mxu0 %v2420
    %2844 = vmatprep.subr.bf16.mxu0 %v2425
    %2845 = vmatpush1.bf16.msra.mxu0 %v2424
    %2846 = vmatprep.subr.bf16.mxu0 %v2429
    %2847 = vmatpush1.bf16.msra.mxu0 %v2428
    %2848 = vmatprep.subr.bf16.mxu0 %v2433
    %2849 = vmatpush1.bf16.msra.mxu0 %v2432
    %2850 = vmatprep.subr.bf16.mxu0 %v2437
    %2851 = vmatpush1.bf16.msra.mxu0 %v2436
    %2852 = vmatprep.subr.bf16.mxu0 %v2441
    %2853 = vmatpush1.bf16.msra.mxu0 %v2440
    %2854 = vmatprep.subr.bf16.mxu0 %v2445
    %2855 = vmatpush1.bf16.msra.mxu0 %v2444
    %2856 = vmatprep.subr.bf16.mxu0 0
    %2857 = vmatpush1.bf16.msra.mxu0 0
    %2858 = vmatprep.subr.bf16.mxu0 0
    %2859 = vmatpush1.bf16.msra.mxu0 0
    %2860 = vmatprep.subr.bf16.mxu0 0
    %2861 = vmatpush1.bf16.msra.mxu0 0
    %2862 = vmatprep.subr.bf16.mxu0 0
    %2863 = vmatpush1.bf16.msra.mxu0 0
    %2864 = vmatprep.subr.bf16.mxu0 0
    %2865 = vmatpush1.bf16.msra.mxu0 0
    %2866 = vmatprep.subr.bf16.mxu0 0
    %2867 = vmatpush1.bf16.msra.mxu0 0
    %2868 = vmatprep.subr.bf16.mxu0 0
    %2869 = vmatpush1.bf16.msra.mxu0 0
    %2870 = vmatprep.subr.bf16.mxu0 0
    %2871 = vmatpush1.bf16.msra.mxu0 0
    %2872 = vmatprep.mubr.bf16.mxu0 0
    %2873 = vmatmul.mubr.bf16.gmra.mrb[0].mxu0 %v2839
    %v2874 = vpop.f32.mrb[0].mxu0
    %v2875 = vadd.f32 0.0, %v2874
    %v2876 = vpop.f32.mrb[0].mxu0
    %v2877 = vadd.f32 0.0, %v2876
    %v2878 = vpop.f32.mrb[0].mxu0
    %v2879 = vpop.f32.mrb[0].mxu0
    %2880 = vdwg.mxu0
    %2881 = vmatprep.subr.bf16.mxu0 %v2419
    %2882 = vmatpush1.bf16.msra.mxu0 %v2418
    %2883 = vmatprep.subr.bf16.mxu0 %v2423
    %2884 = vmatpush1.bf16.msra.mxu0 %v2422
    %2885 = vmatprep.subr.bf16.mxu0 %v2427
    %2886 = vmatpush1.bf16.msra.mxu0 %v2426
    %2887 = vmatprep.subr.bf16.mxu0 %v2431
    %2888 = vmatpush1.bf16.msra.mxu0 %v2430
    %2889 = vmatprep.subr.bf16.mxu0 %v2435
    %2890 = vmatpush1.bf16.msra.mxu0 %v2434
    %2891 = vmatprep.subr.bf16.mxu0 %v2439
    %2892 = vmatpush1.bf16.msra.mxu0 %v2438
    %2893 = vmatprep.subr.bf16.mxu0 %v2443
    %2894 = vmatpush1.bf16.msra.mxu0 %v2442
    %2895 = vmatprep.subr.bf16.mxu0 %v2447
    %2896 = vmatpush1.bf16.msra.mxu0 %v2446
    %2897 = vmatprep.subr.bf16.mxu0 0
    %2898 = vmatpush1.bf16.msra.mxu0 0
    %2899 = vmatprep.subr.bf16.mxu0 0
    %2900 = vmatpush1.bf16.msra.mxu0 0
    %2901 = vmatprep.subr.bf16.mxu0 0
    %2902 = vmatpush1.bf16.msra.mxu0 0
    %2903 = vmatprep.subr.bf16.mxu0 0
    %2904 = vmatpush1.bf16.msra.mxu0 0
    %2905 = vmatprep.subr.bf16.mxu0 0
    %2906 = vmatpush1.bf16.msra.mxu0 0
    %2907 = vmatprep.subr.bf16.mxu0 0
    %2908 = vmatpush1.bf16.msra.mxu0 0
    %2909 = vmatprep.subr.bf16.mxu0 0
    %2910 = vmatpush1.bf16.msra.mxu0 0
    %2911 = vmatprep.subr.bf16.mxu0 0
    %2912 = vmatpush1.bf16.msra.mxu0 0
    %2913 = vmatprep.mubr.bf16.mxu0 0
    %2914 = vmatmul.mubr.bf16.gmra.mrb[0].mxu0 %v2839
    %v2915 = vpop.f32.mrb[0].mxu0
    %v2916 = vadd.f32 0.0, %v2915
    %v2917 = vpop.f32.mrb[0].mxu0
    %v2918 = vadd.f32 0.0, %v2917
    %v2919 = vpop.f32.mrb[0].mxu0
    %v2920 = vpop.f32.mrb[0].mxu0
    %2921 = vdwg.mxu0
    %v2922 = vadd.f32 %v2834, %v2875
    %v2923 = vadd.f32 %v2835, %v2877
    %v2924 = vadd.f32 %v2836, %v2916
    %v2925 = vadd.f32 %v2837, %v2918
    %v2926 = vxor.u32 %v2922, 2147483648
    %v2927 = vmul.f32 %v2926, 1.442695
    %v2928 = vpow.pop %v2927
    %v2929 = vadd.f32 %v2928, 1.0
    %v2930 = vrcp.pop %v2929
    %v2931 = vmul.f32 1.0, %v2930
    %v2932 = vxor.u32 %v2923, 2147483648
    %v2933 = vmul.f32 %v2932, 1.442695
    %v2934 = vpow.pop %v2933
    %v2935 = vadd.f32 %v2934, 1.0
    %v2936 = vrcp.pop %v2935
    %v2937 = vmul.f32 1.0, %v2936
    %v2938 = vtanh.pop %v2924
    %v2939 = vxor.u32 %v2925, 2147483648
    %v2940 = vmul.f32 %v2939, 1.442695
    %v2941 = vpow.pop %v2940
    %v2942 = vadd.f32 %v2941, 1.0
    %v2943 = vrcp.pop %v2942
    %v2944 = vmul.f32 1.0, %v2943
    %v2945 = vld [vmem:[#allocation4] sm:$0xff]
    %v2946 = vmul.f32 %v2937, %v2945
    %v2947 = vmul.f32 %v2931, %v2938
    %v2948 = vadd.f32 %v2946, %v2947
    %v2949 = vtanh.pop %v2948
    %v2950 = vmul.f32 %v2944, %v2949
    %2951 = vst [vmem:[#allocation4] sm:$0xff] %v2948
    %2952 = vst [vmem:[#allocation3] sm:$0xff] %v2950
    %2953 = vst [vmem:[%s1232] sm:$0xff] %v2950
    %v2954 = vld [vmem:[%s1236] sm:$0xff]
    %v2955 = vld [vmem:[%s1236 + $0x8] sm:$0xff]
    %v2956 = vld [vmem:[%s1236 + $0x10] sm:$0xff]
    %v2957 = vld [vmem:[%s1236 + $0x18] sm:$0xff]
    %v2958 = vld [vmem:[#allocation3] sm:$0xff]
    %v2959 = vpack.c.bf16 %v2958, %v2958
    %2960 = vmatprep.subr.bf16.mxu0 %v2417
    %2961 = vmatpush1.bf16.msra.mxu0 %v2416
    %2962 = vmatprep.subr.bf16.mxu0 %v2421
    %2963 = vmatpush1.bf16.msra.mxu0 %v2420
    %2964 = vmatprep.subr.bf16.mxu0 %v2425
    %2965 = vmatpush1.bf16.msra.mxu0 %v2424
    %2966 = vmatprep.subr.bf16.mxu0 %v2429
    %2967 = vmatpush1.bf16.msra.mxu0 %v2428
    %2968 = vmatprep.subr.bf16.mxu0 %v2433
    %2969 = vmatpush1.bf16.msra.mxu0 %v2432
    %2970 = vmatprep.subr.bf16.mxu0 %v2437
    %2971 = vmatpush1.bf16.msra.mxu0 %v2436
    %2972 = vmatprep.subr.bf16.mxu0 %v2441
    %2973 = vmatpush1.bf16.msra.mxu0 %v2440
    %2974 = vmatprep.subr.bf16.mxu0 %v2445
    %2975 = vmatpush1.bf16.msra.mxu0 %v2444
    %2976 = vmatprep.subr.bf16.mxu0 0
    %2977 = vmatpush1.bf16.msra.mxu0 0
    %2978 = vmatprep.subr.bf16.mxu0 0
    %2979 = vmatpush1.bf16.msra.mxu0 0
    %2980 = vmatprep.subr.bf16.mxu0 0
    %2981 = vmatpush1.bf16.msra.mxu0 0
    %2982 = vmatprep.subr.bf16.mxu0 0
    %2983 = vmatpush1.bf16.msra.mxu0 0
    %2984 = vmatprep.subr.bf16.mxu0 0
    %2985 = vmatpush1.bf16.msra.mxu0 0
    %2986 = vmatprep.subr.bf16.mxu0 0
    %2987 = vmatpush1.bf16.msra.mxu0 0
    %2988 = vmatprep.subr.bf16.mxu0 0
    %2989 = vmatpush1.bf16.msra.mxu0 0
    %2990 = vmatprep.subr.bf16.mxu0 0
    %2991 = vmatpush1.bf16.msra.mxu0 0
    %2992 = vmatprep.mubr.bf16.mxu0 0
    %2993 = vmatmul.mubr.bf16.gmra.mrb[0].mxu0 %v2959
    %v2994 = vpop.f32.mrb[0].mxu0
    %v2995 = vadd.f32 0.0, %v2994
    %v2996 = vpop.f32.mrb[0].mxu0
    %v2997 = vadd.f32 0.0, %v2996
    %v2998 = vpop.f32.mrb[0].mxu0
    %v2999 = vpop.f32.mrb[0].mxu0
    %3000 = vdwg.mxu0
    %3001 = vmatprep.subr.bf16.mxu0 %v2419
    %3002 = vmatpush1.bf16.msra.mxu0 %v2418
    %3003 = vmatprep.subr.bf16.mxu0 %v2423
    %3004 = vmatpush1.bf16.msra.mxu0 %v2422
    %3005 = vmatprep.subr.bf16.mxu0 %v2427
    %3006 = vmatpush1.bf16.msra.mxu0 %v2426
    %3007 = vmatprep.subr.bf16.mxu0 %v2431
    %3008 = vmatpush1.bf16.msra.mxu0 %v2430
    %3009 = vmatprep.subr.bf16.mxu0 %v2435
    %3010 = vmatpush1.bf16.msra.mxu0 %v2434
    %3011 = vmatprep.subr.bf16.mxu0 %v2439
    %3012 = vmatpush1.bf16.msra.mxu0 %v2438
    %3013 = vmatprep.subr.bf16.mxu0 %v2443
    %3014 = vmatpush1.bf16.msra.mxu0 %v2442
    %3015 = vmatprep.subr.bf16.mxu0 %v2447
    %3016 = vmatpush1.bf16.msra.mxu0 %v2446
    %3017 = vmatprep.subr.bf16.mxu0 0
    %3018 = vmatpush1.bf16.msra.mxu0 0
    %3019 = vmatprep.subr.bf16.mxu0 0
    %3020 = vmatpush1.bf16.msra.mxu0 0
    %3021 = vmatprep.subr.bf16.mxu0 0
    %3022 = vmatpush1.bf16.msra.mxu0 0
    %3023 = vmatprep.subr.bf16.mxu0 0
    %3024 = vmatpush1.bf16.msra.mxu0 0
    %3025 = vmatprep.subr.bf16.mxu0 0
    %3026 = vmatpush1.bf16.msra.mxu0 0
    %3027 = vmatprep.subr.bf16.mxu0 0
    %3028 = vmatpush1.bf16.msra.mxu0 0
    %3029 = vmatprep.subr.bf16.mxu0 0
    %3030 = vmatpush1.bf16.msra.mxu0 0
    %3031 = vmatprep.subr.bf16.mxu0 0
    %3032 = vmatpush1.bf16.msra.mxu0 0
    %3033 = vmatprep.mubr.bf16.mxu0 0
    %3034 = vmatmul.mubr.bf16.gmra.mrb[0].mxu0 %v2959
    %v3035 = vpop.f32.mrb[0].mxu0
    %v3036 = vadd.f32 0.0, %v3035
    %v3037 = vpop.f32.mrb[0].mxu0
    %v3038 = vadd.f32 0.0, %v3037
    %v3039 = vpop.f32.mrb[0].mxu0
    %v3040 = vpop.f32.mrb[0].mxu0
    %3041 = vdwg.mxu0
    %v3042 = vadd.f32 %v2954, %v2995
    %v3043 = vadd.f32 %v2955, %v2997
    %v3044 = vadd.f32 %v2956, %v3036
    %v3045 = vadd.f32 %v2957, %v3038
    %v3046 = vxor.u32 %v3042, 2147483648
    %v3047 = vmul.f32 %v3046, 1.442695
    %v3048 = vpow.pop %v3047
    %v3049 = vadd.f32 %v3048, 1.0
    %v3050 = vrcp.pop %v3049
    %v3051 = vmul.f32 1.0, %v3050
    %v3052 = vxor.u32 %v3043, 2147483648
    %v3053 = vmul.f32 %v3052, 1.442695
    %v3054 = vpow.pop %v3053
    %v3055 = vadd.f32 %v3054, 1.0
    %v3056 = vrcp.pop %v3055
    %v3057 = vmul.f32 1.0, %v3056
    %v3058 = vtanh.pop %v3044
    %v3059 = vxor.u32 %v3045, 2147483648
    %v3060 = vmul.f32 %v3059, 1.442695
    %v3061 = vpow.pop %v3060
    %v3062 = vadd.f32 %v3061, 1.0
    %v3063 = vrcp.pop %v3062
    %v3064 = vmul.f32 1.0, %v3063
    %v3065 = vld [vmem:[#allocation4] sm:$0xff]
    %v3066 = vmul.f32 %v3057, %v3065
    %v3067 = vmul.f32 %v3051, %v3058
    %v3068 = vadd.f32 %v3066, %v3067
    %v3069 = vtanh.pop %v3068
    %v3070 = vmul.f32 %v3064, %v3069
    %3071 = vst [vmem:[#allocation4] sm:$0xff] %v3068
    %3072 = vst [vmem:[#allocation3] sm:$0xff] %v3070
    %3073 = vst [vmem:[%s1356] sm:$0xff] %v3070
    %v3074 = vld [vmem:[%s1360] sm:$0xff]
    %v3075 = vld [vmem:[%s1360 + $0x8] sm:$0xff]
    %v3076 = vld [vmem:[%s1360 + $0x10] sm:$0xff]
    %v3077 = vld [vmem:[%s1360 + $0x18] sm:$0xff]
    %v3078 = vld [vmem:[#allocation3] sm:$0xff]
    %v3079 = vpack.c.bf16 %v3078, %v3078
    %3080 = vmatprep.subr.bf16.mxu0 %v2417
    %3081 = vmatpush1.bf16.msra.mxu0 %v2416
    %3082 = vmatprep.subr.bf16.mxu0 %v2421
    %3083 = vmatpush1.bf16.msra.mxu0 %v2420
    %3084 = vmatprep.subr.bf16.mxu0 %v2425
    %3085 = vmatpush1.bf16.msra.mxu0 %v2424
    %3086 = vmatprep.subr.bf16.mxu0 %v2429
    %3087 = vmatpush1.bf16.msra.mxu0 %v2428
    %3088 = vmatprep.subr.bf16.mxu0 %v2433
    %3089 = vmatpush1.bf16.msra.mxu0 %v2432
    %3090 = vmatprep.subr.bf16.mxu0 %v2437
    %3091 = vmatpush1.bf16.msra.mxu0 %v2436
    %3092 = vmatprep.subr.bf16.mxu0 %v2441
    %3093 = vmatpush1.bf16.msra.mxu0 %v2440
    %3094 = vmatprep.subr.bf16.mxu0 %v2445
    %3095 = vmatpush1.bf16.msra.mxu0 %v2444
    %3096 = vmatprep.subr.bf16.mxu0 0
    %3097 = vmatpush1.bf16.msra.mxu0 0
    %3098 = vmatprep.subr.bf16.mxu0 0
    %3099 = vmatpush1.bf16.msra.mxu0 0
    %3100 = vmatprep.subr.bf16.mxu0 0
    %3101 = vmatpush1.bf16.msra.mxu0 0
    %3102 = vmatprep.subr.bf16.mxu0 0
    %3103 = vmatpush1.bf16.msra.mxu0 0
    %3104 = vmatprep.subr.bf16.mxu0 0
    %3105 = vmatpush1.bf16.msra.mxu0 0
    %3106 = vmatprep.subr.bf16.mxu0 0
    %3107 = vmatpush1.bf16.msra.mxu0 0
    %3108 = vmatprep.subr.bf16.mxu0 0
    %3109 = vmatpush1.bf16.msra.mxu0 0
    %3110 = vmatprep.subr.bf16.mxu0 0
    %3111 = vmatpush1.bf16.msra.mxu0 0
    %3112 = vmatprep.mubr.bf16.mxu0 0
    %3113 = vmatmul.mubr.bf16.gmra.mrb[0].mxu0 %v3079
    %v3114 = vpop.f32.mrb[0].mxu0
    %v3115 = vadd.f32 0.0, %v3114
    %v3116 = vpop.f32.mrb[0].mxu0
    %v3117 = vadd.f32 0.0, %v3116
    %v3118 = vpop.f32.mrb[0].mxu0
    %v3119 = vpop.f32.mrb[0].mxu0
    %3120 = vdwg.mxu0
    %3121 = vmatprep.subr.bf16.mxu0 %v2419
    %3122 = vmatpush1.bf16.msra.mxu0 %v2418
    %3123 = vmatprep.subr.bf16.mxu0 %v2423
    %3124 = vmatpush1.bf16.msra.mxu0 %v2422
    %3125 = vmatprep.subr.bf16.mxu0 %v2427
    %3126 = vmatpush1.bf16.msra.mxu0 %v2426
    %3127 = vmatprep.subr.bf16.mxu0 %v2431
    %3128 = vmatpush1.bf16.msra.mxu0 %v2430
    %3129 = vmatprep.subr.bf16.mxu0 %v2435
    %3130 = vmatpush1.bf16.msra.mxu0 %v2434
    %3131 = vmatprep.subr.bf16.mxu0 %v2439
    %3132 = vmatpush1.bf16.msra.mxu0 %v2438
    %3133 = vmatprep.subr.bf16.mxu0 %v2443
    %3134 = vmatpush1.bf16.msra.mxu0 %v2442
    %3135 = vmatprep.subr.bf16.mxu0 %v2447
    %3136 = vmatpush1.bf16.msra.mxu0 %v2446
    %3137 = vmatprep.subr.bf16.mxu0 0
    %3138 = vmatpush1.bf16.msra.mxu0 0
    %3139 = vmatprep.subr.bf16.mxu0 0
    %3140 = vmatpush1.bf16.msra.mxu0 0
    %3141 = vmatprep.subr.bf16.mxu0 0
    %3142 = vmatpush1.bf16.msra.mxu0 0
    %3143 = vmatprep.subr.bf16.mxu0 0
    %3144 = vmatpush1.bf16.msra.mxu0 0
    %3145 = vmatprep.subr.bf16.mxu0 0
    %3146 = vmatpush1.bf16.msra.mxu0 0
    %3147 = vmatprep.subr.bf16.mxu0 0
    %3148 = vmatpush1.bf16.msra.mxu0 0
    %3149 = vmatprep.subr.bf16.mxu0 0
    %3150 = vmatpush1.bf16.msra.mxu0 0
    %3151 = vmatprep.subr.bf16.mxu0 0
    %3152 = vmatpush1.bf16.msra.mxu0 0
    %3153 = vmatprep.mubr.bf16.mxu0 0
    %3154 = vmatmul.mubr.bf16.gmra.mrb[0].mxu0 %v3079
    %v3155 = vpop.f32.mrb[0].mxu0
    %v3156 = vadd.f32 0.0, %v3155
    %v3157 = vpop.f32.mrb[0].mxu0
    %v3158 = vadd.f32 0.0, %v3157
    %v3159 = vpop.f32.mrb[0].mxu0
    %v3160 = vpop.f32.mrb[0].mxu0
    %3161 = vdwg.mxu0
    %v3162 = vadd.f32 %v3074, %v3115
    %v3163 = vadd.f32 %v3075, %v3117
    %v3164 = vadd.f32 %v3076, %v3156
    %v3165 = vadd.f32 %v3077, %v3158
    %v3166 = vxor.u32 %v3162, 2147483648
    %v3167 = vmul.f32 %v3166, 1.442695
    %v3168 = vpow.pop %v3167
    %v3169 = vadd.f32 %v3168, 1.0
    %v3170 = vrcp.pop %v3169
    %v3171 = vmul.f32 1.0, %v3170
    %v3172 = vxor.u32 %v3163, 2147483648
    %v3173 = vmul.f32 %v3172, 1.442695
    %v3174 = vpow.pop %v3173
    %v3175 = vadd.f32 %v3174, 1.0
    %v3176 = vrcp.pop %v3175
    %v3177 = vmul.f32 1.0, %v3176
    %v3178 = vtanh.pop %v3164
    %v3179 = vxor.u32 %v3165, 2147483648
    %v3180 = vmul.f32 %v3179, 1.442695
    %v3181 = vpow.pop %v3180
    %v3182 = vadd.f32 %v3181, 1.0
    %v3183 = vrcp.pop %v3182
    %v3184 = vmul.f32 1.0, %v3183
    %v3185 = vld [vmem:[#allocation4] sm:$0xff]
    %v3186 = vmul.f32 %v3177, %v3185
    %v3187 = vmul.f32 %v3171, %v3178
    %v3188 = vadd.f32 %v3186, %v3187
    %v3189 = vtanh.pop %v3188
    %v3190 = vmul.f32 %v3184, %v3189
    %3191 = vst [vmem:[#allocation4] sm:$0xff] %v3188
    %3192 = vst [vmem:[#allocation3] sm:$0xff] %v3190
    %3193 = vst [vmem:[%s1480] sm:$0xff] %v3190
    %v3194 = vld [vmem:[%s1484] sm:$0xff]
    %v3195 = vld [vmem:[%s1484 + $0x8] sm:$0xff]
    %v3196 = vld [vmem:[%s1484 + $0x10] sm:$0xff]
    %v3197 = vld [vmem:[%s1484 + $0x18] sm:$0xff]
    %v3198 = vld [vmem:[#allocation3] sm:$0xff]
    %v3199 = vpack.c.bf16 %v3198, %v3198
    %3200 = vmatprep.subr.bf16.mxu0 %v2417
    %3201 = vmatpush1.bf16.msra.mxu0 %v2416
    %3202 = vmatprep.subr.bf16.mxu0 %v2421
    %3203 = vmatpush1.bf16.msra.mxu0 %v2420
    %3204 = vmatprep.subr.bf16.mxu0 %v2425
    %3205 = vmatpush1.bf16.msra.mxu0 %v2424
    %3206 = vmatprep.subr.bf16.mxu0 %v2429
    %3207 = vmatpush1.bf16.msra.mxu0 %v2428
    %3208 = vmatprep.subr.bf16.mxu0 %v2433
    %3209 = vmatpush1.bf16.msra.mxu0 %v2432
    %3210 = vmatprep.subr.bf16.mxu0 %v2437
    %3211 = vmatpush1.bf16.msra.mxu0 %v2436
    %3212 = vmatprep.subr.bf16.mxu0 %v2441
    %3213 = vmatpush1.bf16.msra.mxu0 %v2440
    %3214 = vmatprep.subr.bf16.mxu0 %v2445
    %3215 = vmatpush1.bf16.msra.mxu0 %v2444
    %3216 = vmatprep.subr.bf16.mxu0 0
    %3217 = vmatpush1.bf16.msra.mxu0 0
    %3218 = vmatprep.subr.bf16.mxu0 0
    %3219 = vmatpush1.bf16.msra.mxu0 0
    %3220 = vmatprep.subr.bf16.mxu0 0
    %3221 = vmatpush1.bf16.msra.mxu0 0
    %3222 = vmatprep.subr.bf16.mxu0 0
    %3223 = vmatpush1.bf16.msra.mxu0 0
    %3224 = vmatprep.subr.bf16.mxu0 0
    %3225 = vmatpush1.bf16.msra.mxu0 0
    %3226 = vmatprep.subr.bf16.mxu0 0
    %3227 = vmatpush1.bf16.msra.mxu0 0
    %3228 = vmatprep.subr.bf16.mxu0 0
    %3229 = vmatpush1.bf16.msra.mxu0 0
    %3230 = vmatprep.subr.bf16.mxu0 0
    %3231 = vmatpush1.bf16.msra.mxu0 0
    %3232 = vmatprep.mubr.bf16.mxu0 0
    %3233 = vmatmul.mubr.bf16.gmra.mrb[0].mxu0 %v3199
    %v3234 = vpop.f32.mrb[0].mxu0
    %v3235 = vadd.f32 0.0, %v3234
    %v3236 = vpop.f32.mrb[0].mxu0
    %v3237 = vadd.f32 0.0, %v3236
    %v3238 = vpop.f32.mrb[0].mxu0
    %v3239 = vpop.f32.mrb[0].mxu0
    %3240 = vdwg.mxu0
    %3241 = vmatprep.subr.bf16.mxu0 %v2419
    %3242 = vmatpush1.bf16.msra.mxu0 %v2418
    %3243 = vmatprep.subr.bf16.mxu0 %v2423
    %3244 = vmatpush1.bf16.msra.mxu0 %v2422
    %3245 = vmatprep.subr.bf16.mxu0 %v2427
    %3246 = vmatpush1.bf16.msra.mxu0 %v2426
    %3247 = vmatprep.subr.bf16.mxu0 %v2431
    %3248 = vmatpush1.bf16.msra.mxu0 %v2430
    %3249 = vmatprep.subr.bf16.mxu0 %v2435
    %3250 = vmatpush1.bf16.msra.mxu0 %v2434
    %3251 = vmatprep.subr.bf16.mxu0 %v2439
    %3252 = vmatpush1.bf16.msra.mxu0 %v2438
    %3253 = vmatprep.subr.bf16.mxu0 %v2443
    %3254 = vmatpush1.bf16.msra.mxu0 %v2442
    %3255 = vmatprep.subr.bf16.mxu0 %v2447
    %3256 = vmatpush1.bf16.msra.mxu0 %v2446
    %3257 = vmatprep.subr.bf16.mxu0 0
    %3258 = vmatpush1.bf16.msra.mxu0 0
    %3259 = vmatprep.subr.bf16.mxu0 0
    %3260 = vmatpush1.bf16.msra.mxu0 0
    %3261 = vmatprep.subr.bf16.mxu0 0
    %3262 = vmatpush1.bf16.msra.mxu0 0
    %3263 = vmatprep.subr.bf16.mxu0 0
    %3264 = vmatpush1.bf16.msra.mxu0 0
    %3265 = vmatprep.subr.bf16.mxu0 0
    %3266 = vmatpush1.bf16.msra.mxu0 0
    %3267 = vmatprep.subr.bf16.mxu0 0
    %3268 = vmatpush1.bf16.msra.mxu0 0
    %3269 = vmatprep.subr.bf16.mxu0 0
    %3270 = vmatpush1.bf16.msra.mxu0 0
    %3271 = vmatprep.subr.bf16.mxu0 0
    %3272 = vmatpush1.bf16.msra.mxu0 0
    %3273 = vmatprep.mubr.bf16.mxu0 0
    %3274 = vmatmul.mubr.bf16.gmra.mrb[0].mxu0 %v3199
    %v3275 = vpop.f32.mrb[0].mxu0
    %v3276 = vadd.f32 0.0, %v3275
    %v3277 = vpop.f32.mrb[0].mxu0
    %v3278 = vadd.f32 0.0, %v3277
    %v3279 = vpop.f32.mrb[0].mxu0
    %v3280 = vpop.f32.mrb[0].mxu0
    %3281 = vdwg.mxu0
    %v3282 = vadd.f32 %v3194, %v3235
    %v3283 = vadd.f32 %v3195, %v3237
    %v3284 = vadd.f32 %v3196, %v3276
    %v3285 = vadd.f32 %v3197, %v3278
    %v3286 = vxor.u32 %v3282, 2147483648
    %v3287 = vmul.f32 %v3286, 1.442695
    %v3288 = vpow.pop %v3287
    %v3289 = vadd.f32 %v3288, 1.0
    %v3290 = vrcp.pop %v3289
    %v3291 = vmul.f32 1.0, %v3290
    %v3292 = vxor.u32 %v3283, 2147483648
    %v3293 = vmul.f32 %v3292, 1.442695
    %v3294 = vpow.pop %v3293
    %v3295 = vadd.f32 %v3294, 1.0
    %v3296 = vrcp.pop %v3295
    %v3297 = vmul.f32 1.0, %v3296
    %v3298 = vtanh.pop %v3284
    %v3299 = vxor.u32 %v3285, 2147483648
    %v3300 = vmul.f32 %v3299, 1.442695
    %v3301 = vpow.pop %v3300
    %v3302 = vadd.f32 %v3301, 1.0
    %v3303 = vrcp.pop %v3302
    %v3304 = vmul.f32 1.0, %v3303
    %v3305 = vld [vmem:[#allocation4] sm:$0xff]
    %v3306 = vmul.f32 %v3297, %v3305
    %v3307 = vmul.f32 %v3291, %v3298
    %v3308 = vadd.f32 %v3306, %v3307
    %v3309 = vtanh.pop %v3308
    %v3310 = vmul.f32 %v3304, %v3309
    %3311 = vst [vmem:[#allocation4] sm:$0xff] %v3308
    %3312 = vst [vmem:[#allocation3] sm:$0xff] %v3310
    %3313 = vst [vmem:[%s1604] sm:$0xff] %v3310
    %v3314 = vld [vmem:[%s1608] sm:$0xff]
    %v3315 = vld [vmem:[%s1608 + $0x8] sm:$0xff]
    %v3316 = vld [vmem:[%s1608 + $0x10] sm:$0xff]
    %v3317 = vld [vmem:[%s1608 + $0x18] sm:$0xff]
    %v3318 = vld [vmem:[#allocation3] sm:$0xff]
    %v3319 = vpack.c.bf16 %v3318, %v3318
    %3320 = vmatprep.subr.bf16.mxu0 %v2417
    %3321 = vmatpush1.bf16.msra.mxu0 %v2416
    %3322 = vmatprep.subr.bf16.mxu0 %v2421
    %3323 = vmatpush1.bf16.msra.mxu0 %v2420
    %3324 = vmatprep.subr.bf16.mxu0 %v2425
    %3325 = vmatpush1.bf16.msra.mxu0 %v2424
    %3326 = vmatprep.subr.bf16.mxu0 %v2429
    %3327 = vmatpush1.bf16.msra.mxu0 %v2428
    %3328 = vmatprep.subr.bf16.mxu0 %v2433
    %3329 = vmatpush1.bf16.msra.mxu0 %v2432
    %3330 = vmatprep.subr.bf16.mxu0 %v2437
    %3331 = vmatpush1.bf16.msra.mxu0 %v2436
    %3332 = vmatprep.subr.bf16.mxu0 %v2441
    %3333 = vmatpush1.bf16.msra.mxu0 %v2440
    %3334 = vmatprep.subr.bf16.mxu0 %v2445
    %3335 = vmatpush1.bf16.msra.mxu0 %v2444
    %3336 = vmatprep.subr.bf16.mxu0 0
    %3337 = vmatpush1.bf16.msra.mxu0 0
    %3338 = vmatprep.subr.bf16.mxu0 0
    %3339 = vmatpush1.bf16.msra.mxu0 0
    %3340 = vmatprep.subr.bf16.mxu0 0
    %3341 = vmatpush1.bf16.msra.mxu0 0
    %3342 = vmatprep.subr.bf16.mxu0 0
    %3343 = vmatpush1.bf16.msra.mxu0 0
    %3344 = vmatprep.subr.bf16.mxu0 0
    %3345 = vmatpush1.bf16.msra.mxu0 0
    %3346 = vmatprep.subr.bf16.mxu0 0
    %3347 = vmatpush1.bf16.msra.mxu0 0
    %3348 = vmatprep.subr.bf16.mxu0 0
    %3349 = vmatpush1.bf16.msra.mxu0 0
    %3350 = vmatprep.subr.bf16.mxu0 0
    %3351 = vmatpush1.bf16.msra.mxu0 0
    %3352 = vmatprep.mubr.bf16.mxu0 0
    %3353 = vmatmul.mubr.bf16.gmra.mrb[0].mxu0 %v3319
    %v3354 = vpop.f32.mrb[0].mxu0
    %v3355 = vadd.f32 0.0, %v3354
    %v3356 = vpop.f32.mrb[0].mxu0
    %v3357 = vadd.f32 0.0, %v3356
    %v3358 = vpop.f32.mrb[0].mxu0
    %v3359 = vpop.f32.mrb[0].mxu0
    %3360 = vdwg.mxu0
    %3361 = vmatprep.subr.bf16.mxu0 %v2419
    %3362 = vmatpush1.bf16.msra.mxu0 %v2418
    %3363 = vmatprep.subr.bf16.mxu0 %v2423
    %3364 = vmatpush1.bf16.msra.mxu0 %v2422
    %3365 = vmatprep.subr.bf16.mxu0 %v2427
    %3366 = vmatpush1.bf16.msra.mxu0 %v2426
    %3367 = vmatprep.subr.bf16.mxu0 %v2431
    %3368 = vmatpush1.bf16.msra.mxu0 %v2430
    %3369 = vmatprep.subr.bf16.mxu0 %v2435
    %3370 = vmatpush1.bf16.msra.mxu0 %v2434
    %3371 = vmatprep.subr.bf16.mxu0 %v2439
    %3372 = vmatpush1.bf16.msra.mxu0 %v2438
    %3373 = vmatprep.subr.bf16.mxu0 %v2443
    %3374 = vmatpush1.bf16.msra.mxu0 %v2442
    %3375 = vmatprep.subr.bf16.mxu0 %v2447
    %3376 = vmatpush1.bf16.msra.mxu0 %v2446
    %3377 = vmatprep.subr.bf16.mxu0 0
    %3378 = vmatpush1.bf16.msra.mxu0 0
    %3379 = vmatprep.subr.bf16.mxu0 0
    %3380 = vmatpush1.bf16.msra.mxu0 0
    %3381 = vmatprep.subr.bf16.mxu0 0
    %3382 = vmatpush1.bf16.msra.mxu0 0
    %3383 = vmatprep.subr.bf16.mxu0 0
    %3384 = vmatpush1.bf16.msra.mxu0 0
    %3385 = vmatprep.subr.bf16.mxu0 0
    %3386 = vmatpush1.bf16.msra.mxu0 0
    %3387 = vmatprep.subr.bf16.mxu0 0
    %3388 = vmatpush1.bf16.msra.mxu0 0
    %3389 = vmatprep.subr.bf16.mxu0 0
    %3390 = vmatpush1.bf16.msra.mxu0 0
    %3391 = vmatprep.subr.bf16.mxu0 0
    %3392 = vmatpush1.bf16.msra.mxu0 0
    %3393 = vmatprep.mubr.bf16.mxu0 0
    %3394 = vmatmul.mubr.bf16.gmra.mrb[0].mxu0 %v3319
    %v3395 = vpop.f32.mrb[0].mxu0
    %v3396 = vadd.f32 0.0, %v3395
    %v3397 = vpop.f32.mrb[0].mxu0
    %v3398 = vadd.f32 0.0, %v3397
    %v3399 = vpop.f32.mrb[0].mxu0
    %v3400 = vpop.f32.mrb[0].mxu0
    %3401 = vdwg.mxu0
    %v3402 = vadd.f32 %v3314, %v3355
    %v3403 = vadd.f32 %v3315, %v3357
    %v3404 = vadd.f32 %v3316, %v3396
    %v3405 = vadd.f32 %v3317, %v3398
    %v3406 = vxor.u32 %v3402, 2147483648
    %v3407 = vmul.f32 %v3406, 1.442695
    %v3408 = vpow.pop %v3407
    %v3409 = vadd.f32 %v3408, 1.0
    %v3410 = vrcp.pop %v3409
    %v3411 = vmul.f32 1.0, %v3410
    %v3412 = vxor.u32 %v3403, 2147483648
    %v3413 = vmul.f32 %v3412, 1.442695
    %v3414 = vpow.pop %v3413
    %v3415 = vadd.f32 %v3414, 1.0
    %v3416 = vrcp.pop %v3415
    %v3417 = vmul.f32 1.0, %v3416
    %v3418 = vtanh.pop %v3404
    %v3419 = vxor.u32 %v3405, 2147483648
    %v3420 = vmul.f32 %v3419, 1.442695
    %v3421 = vpow.pop %v3420
    %v3422 = vadd.f32 %v3421, 1.0
    %v3423 = vrcp.pop %v3422
    %v3424 = vmul.f32 1.0, %v3423
    %v3425 = vld [vmem:[#allocation4] sm:$0xff]
    %v3426 = vmul.f32 %v3417, %v3425
    %v3427 = vmul.f32 %v3411, %v3418
    %v3428 = vadd.f32 %v3426, %v3427
    %v3429 = vtanh.pop %v3428
    %v3430 = vmul.f32 %v3424, %v3429
    %3431 = vst [vmem:[#allocation4] sm:$0xff] %v3428
    %3432 = vst [vmem:[#allocation3] sm:$0xff] %v3430
    %3433 = vst [vmem:[%s1728] sm:$0xff] %v3430
    %v3434 = vld [vmem:[%s1732] sm:$0xff]
    %v3435 = vld [vmem:[%s1732 + $0x8] sm:$0xff]
    %v3436 = vld [vmem:[%s1732 + $0x10] sm:$0xff]
    %v3437 = vld [vmem:[%s1732 + $0x18] sm:$0xff]
    %v3438 = vld [vmem:[#allocation3] sm:$0xff]
    %v3439 = vpack.c.bf16 %v3438, %v3438
    %3440 = vmatprep.subr.bf16.mxu0 %v2417
    %3441 = vmatpush1.bf16.msra.mxu0 %v2416
    %3442 = vmatprep.subr.bf16.mxu0 %v2421
    %3443 = vmatpush1.bf16.msra.mxu0 %v2420
    %3444 = vmatprep.subr.bf16.mxu0 %v2425
    %3445 = vmatpush1.bf16.msra.mxu0 %v2424
    %3446 = vmatprep.subr.bf16.mxu0 %v2429
    %3447 = vmatpush1.bf16.msra.mxu0 %v2428
    %3448 = vmatprep.subr.bf16.mxu0 %v2433
    %3449 = vmatpush1.bf16.msra.mxu0 %v2432
    %3450 = vmatprep.subr.bf16.mxu0 %v2437
    %3451 = vmatpush1.bf16.msra.mxu0 %v2436
    %3452 = vmatprep.subr.bf16.mxu0 %v2441
    %3453 = vmatpush1.bf16.msra.mxu0 %v2440
    %3454 = vmatprep.subr.bf16.mxu0 %v2445
    %3455 = vmatpush1.bf16.msra.mxu0 %v2444
    %3456 = vmatprep.subr.bf16.mxu0 0
    %3457 = vmatpush1.bf16.msra.mxu0 0
    %3458 = vmatprep.subr.bf16.mxu0 0
    %3459 = vmatpush1.bf16.msra.mxu0 0
    %3460 = vmatprep.subr.bf16.mxu0 0
    %3461 = vmatpush1.bf16.msra.mxu0 0
    %3462 = vmatprep.subr.bf16.mxu0 0
    %3463 = vmatpush1.bf16.msra.mxu0 0
    %3464 = vmatprep.subr.bf16.mxu0 0
    %3465 = vmatpush1.bf16.msra.mxu0 0
    %3466 = vmatprep.subr.bf16.mxu0 0
    %3467 = vmatpush1.bf16.msra.mxu0 0
    %3468 = vmatprep.subr.bf16.mxu0 0
    %3469 = vmatpush1.bf16.msra.mxu0 0
    %3470 = vmatprep.subr.bf16.mxu0 0
    %3471 = vmatpush1.bf16.msra.mxu0 0
    %3472 = vmatprep.mubr.bf16.mxu0 0
    %3473 = vmatmul.mubr.bf16.gmra.mrb[0].mxu0 %v3439
    %v3474 = vpop.f32.mrb[0].mxu0
    %v3475 = vadd.f32 0.0, %v3474
    %v3476 = vpop.f32.mrb[0].mxu0
    %v3477 = vadd.f32 0.0, %v3476
    %v3478 = vpop.f32.mrb[0].mxu0
    %v3479 = vpop.f32.mrb[0].mxu0
    %3480 = vdwg.mxu0
    %3481 = vmatprep.subr.bf16.mxu0 %v2419
    %3482 = vmatpush1.bf16.msra.mxu0 %v2418
    %3483 = vmatprep.subr.bf16.mxu0 %v2423
    %3484 = vmatpush1.bf16.msra.mxu0 %v2422
    %3485 = vmatprep.subr.bf16.mxu0 %v2427
    %3486 = vmatpush1.bf16.msra.mxu0 %v2426
    %3487 = vmatprep.subr.bf16.mxu0 %v2431
    %3488 = vmatpush1.bf16.msra.mxu0 %v2430
    %3489 = vmatprep.subr.bf16.mxu0 %v2435
    %3490 = vmatpush1.bf16.msra.mxu0 %v2434
    %3491 = vmatprep.subr.bf16.mxu0 %v2439
    %3492 = vmatpush1.bf16.msra.mxu0 %v2438
    %3493 = vmatprep.subr.bf16.mxu0 %v2443
    %3494 = vmatpush1.bf16.msra.mxu0 %v2442
    %3495 = vmatprep.subr.bf16.mxu0 %v2447
    %3496 = vmatpush1.bf16.msra.mxu0 %v2446
    %3497 = vmatprep.subr.bf16.mxu0 0
    %3498 = vmatpush1.bf16.msra.mxu0 0
    %3499 = vmatprep.subr.bf16.mxu0 0
    %3500 = vmatpush1.bf16.msra.mxu0 0
    %3501 = vmatprep.subr.bf16.mxu0 0
    %3502 = vmatpush1.bf16.msra.mxu0 0
    %3503 = vmatprep.subr.bf16.mxu0 0
    %3504 = vmatpush1.bf16.msra.mxu0 0
    %3505 = vmatprep.subr.bf16.mxu0 0
    %3506 = vmatpush1.bf16.msra.mxu0 0
    %3507 = vmatprep.subr.bf16.mxu0 0
    %3508 = vmatpush1.bf16.msra.mxu0 0
    %3509 = vmatprep.subr.bf16.mxu0 0
    %3510 = vmatpush1.bf16.msra.mxu0 0
    %3511 = vmatprep.subr.bf16.mxu0 0
    %3512 = vmatpush1.bf16.msra.mxu0 0
    %3513 = vmatprep.mubr.bf16.mxu0 0
    %3514 = vmatmul.mubr.bf16.gmra.mrb[0].mxu0 %v3439
    %v3515 = vpop.f32.mrb[0].mxu0
    %v3516 = vadd.f32 0.0, %v3515
    %v3517 = vpop.f32.mrb[0].mxu0
    %v3518 = vadd.f32 0.0, %v3517
    %v3519 = vpop.f32.mrb[0].mxu0
    %v3520 = vpop.f32.mrb[0].mxu0
    %3521 = vdwg.mxu0
    %v3522 = vadd.f32 %v3434, %v3475
    %v3523 = vadd.f32 %v3435, %v3477
    %v3524 = vadd.f32 %v3436, %v3516
    %v3525 = vadd.f32 %v3437, %v3518
    %v3526 = vxor.u32 %v3522, 2147483648
    %v3527 = vmul.f32 %v3526, 1.442695
    %v3528 = vpow.pop %v3527
    %v3529 = vadd.f32 %v3528, 1.0
    %v3530 = vrcp.pop %v3529
    %v3531 = vmul.f32 1.0, %v3530
    %v3532 = vxor.u32 %v3523, 2147483648
    %v3533 = vmul.f32 %v3532, 1.442695
    %v3534 = vpow.pop %v3533
    %v3535 = vadd.f32 %v3534, 1.0
    %v3536 = vrcp.pop %v3535
    %v3537 = vmul.f32 1.0, %v3536
    %v3538 = vtanh.pop %v3524
    %v3539 = vxor.u32 %v3525, 2147483648
    %v3540 = vmul.f32 %v3539, 1.442695
    %v3541 = vpow.pop %v3540
    %v3542 = vadd.f32 %v3541, 1.0
    %v3543 = vrcp.pop %v3542
    %v3544 = vmul.f32 1.0, %v3543
    %v3545 = vld [vmem:[#allocation4] sm:$0xff]
    %v3546 = vmul.f32 %v3537, %v3545
    %v3547 = vmul.f32 %v3531, %v3538
    %v3548 = vadd.f32 %v3546, %v3547
    %v3549 = vtanh.pop %v3548
    %v3550 = vmul.f32 %v3544, %v3549
    %3551 = vst [vmem:[#allocation4] sm:$0xff] %v3548
    %3552 = vst [vmem:[#allocation3] sm:$0xff] %v3550
    %3553 = vst [vmem:[%s1852] sm:$0xff] %v3550
    // Predicated region
    $region50: #{tpu_custom_call.1} parent=1 // pred_check
      _
    $region51: #{tpu_custom_call.1} parent=1 // pred_check_branch
      %3555 = sbr.rel (0) target = $region53
    $region52: #{tpu_custom_call.1} parent=1 // pred_region
      %s3557 = ssub.s32 1152, 1152
      %3558 = vsyncadd [#allocation7], %s3557
      %s3559 = sshll.u32 [#allocation14], 4
      %s3560 = int_to_ptr.vmem [resolvable:$true] %s3559
      %3565 = dma.vmem_to_hbm [thread:$0]  %s3560, 1152, %s7, [#allocation7], 128, 128, 8
    $region53: #{tpu_custom_call.1} parent=1 // pred_fallthru
      _
    // Predicated region
    $region54: #{tpu_custom_call.1} parent=1 // pred_check
      _
    $region55: #{tpu_custom_call.1} parent=1 // pred_check_branch
      %3567 = sbr.rel (0) target = $region57
    $region56: #{tpu_custom_call.1} parent=1 // pred_region
      %3568 = dma.done [#allocation7], 1152
    $region57: #{tpu_custom_call.1} parent=1 // pred_fallthru
      _
    %3569 = vsyncpa [#allocation6], 1
    %3570 = vsyncpa [#allocation9], 1
    %3571 = vsyncpa [#allocation12], 1
    %3572 = vsyncpa [#allocation7], 1

</llo_original>
